<compile_context>
chip_gen: v7x
topology: tpu7x:2x2x1
jax: 0.10.0
libtpu: 0.0.40
codegen_flags: <defaults>
</compile_context>

<pallas_src>
import functools

import jax
import jax.numpy as jnp
from jax import lax
from jax.experimental import pallas as pl
from jax.experimental.pallas import tpu as pltpu


# ----------------------------------------------------------------------------
# Fused TextEncoder kernel: one grid step == one batch element's full forward.
# ----------------------------------------------------------------------------

def _text_encoder_kernel(
    tok_ref,                       # [1, L, D]  token embeddings for this batch element
    pe_ref,                        # [L, D]     positional + token-type embeddings
    emb_g_ref, emb_b_ref,          # [1, D]     embedding LayerNorm
    wqkv_ref, bqkv_ref,            # [NL, D, 3D], [NL, 1, 3D]  fused Q|K|V projection
    wo_ref, bo_ref,                # [NL, D, D], [NL, 1, D]    attention output proj
    ln1_g_ref, ln1_b_ref,          # [NL, 1, D]
    wi_ref, bi_ref,                # [NL, D, I], [NL, 1, I]    FFN up
    wo2_ref, bo2_ref,              # [NL, I, D], [NL, 1, D]    FFN down
    ln2_g_ref, ln2_b_ref,          # [NL, 1, D]
    fcw_ref, fcb_ref,              # [D, E], [1, E]            self.fc Linear
    out_ref,                       # [1, L, E]
    *, num_layers, heads, head_dim, eps):

    def layer_norm(y, g, b):
        mean = jnp.mean(y, axis=-1, keepdims=True)
        var = jnp.mean((y - mean) ** 2, axis=-1, keepdims=True)
        return (y - mean) * lax.rsqrt(var + eps) * g + b

    # --- BERT embeddings: tok + pos + type, then LayerNorm (all in VMEM) ---
    x = tok_ref[0].astype(jnp.float32) + pe_ref[...].astype(jnp.float32)   # [L, D]
    x = layer_norm(x, emb_g_ref[...], emb_b_ref[...])

    d_model = x.shape[-1]
    scale = 1.0 / float(head_dim) ** 0.5

    # --- transformer layers (statically unrolled: num_layers is tiny) ---
    for l in range(num_layers):
        # Fused QKV projection: one [L, D] x [D, 3D] matmul.
        qkv = jnp.dot(x, wqkv_ref[l], preferred_element_type=jnp.float32) + bqkv_ref[l]

        # Per-head attention; fold the output projection into per-head matmuls so no
        # concat/transpose is needed (ctx @ Wo == sum_h ctx_h @ Wo[h*Dh:(h+1)*Dh, :]).
        # attention_mask is None in the reference forward (all-ones), so no masking.
        wo_l = wo_ref[l]                                                    # [D, D]
        attn_out = jnp.zeros_like(x)
        for h in range(heads):
            lo = h * head_dim
            hi = lo + head_dim
            qh = qkv[:, lo:hi]                                              # [L, Dh]
            kh = qkv[:, d_model + lo:d_model + hi]                          # [L, Dh]
            vh = qkv[:, 2 * d_model + lo:2 * d_model + hi]                  # [L, Dh]
            # QK^T via dot_general contracting last axes (no explicit transpose).
            s = lax.dot_general(qh, kh, (((1,), (1,)), ((), ())),
                                preferred_element_type=jnp.float32) * scale  # [L, L]
            m = jnp.max(s, axis=-1, keepdims=True)
            p = jnp.exp(s - m)
            denom = jnp.sum(p, axis=-1, keepdims=True)
            p = p * pl.reciprocal(denom, approx=True)                       # EUP recip
            ctx_h = jnp.dot(p, vh, preferred_element_type=jnp.float32)      # [L, Dh]
            attn_out = attn_out + jnp.dot(ctx_h, wo_l[lo:hi, :],
                                          preferred_element_type=jnp.float32)
        attn_out = attn_out + bo_ref[l]

        # Residual + LayerNorm (fused, stays in VMEM).
        x = layer_norm(x + attn_out, ln1_g_ref[l], ln1_b_ref[l])

        # FFN: up-proj -> GELU -> down-proj, then residual + LayerNorm.
        ffn = jnp.dot(x, wi_ref[l], preferred_element_type=jnp.float32) + bi_ref[l]
        # TODO(synk): HF BERT default is the exact erf GELU; tanh approximation is used
        # here because it lowers to the EUP tanh path (tiny numerical drift).
        ffn = jax.nn.gelu(ffn, approximate=True)
        ffn = jnp.dot(ffn, wo2_ref[l], preferred_element_type=jnp.float32) + bo2_ref[l]
        x = layer_norm(x + ffn, ln2_g_ref[l], ln2_b_ref[l])

    # --- self.fc = Linear(bert_size, embed_size) + ReLU + Dropout(0.1) ---
    out = jnp.dot(x, fcw_ref[...], preferred_element_type=jnp.float32) + fcb_ref[...]
    out = jnp.maximum(out, 0.0)           # ReLU; Dropout(0.1) is identity at inference
    out_ref[0] = out.astype(out_ref.dtype)


# ----------------------------------------------------------------------------
# Wrapper: one pallas_call for the whole forward, grid over batch ("parallel").
# ----------------------------------------------------------------------------

def _replicated(shape):
    nd = len(shape)
    return pl.BlockSpec(shape, lambda b, _nd=nd: (0,) * _nd)


def text_encoder_forward(params, captions, cfg):
    B, L = captions.shape
    D = cfg["hidden"]
    H = cfg["heads"]
    Dh = cfg["head_dim"]
    E = cfg["embed_size"]
    I = cfg["intermediate"]
    NL = cfg["layers"]

    # Embedding gathers are glue (no clean tiled-BlockSpec equivalent); everything else
    # runs inside the single fused Pallas kernel.
    tok = jnp.take(params["word_emb"], captions, axis=0).astype(jnp.float32)  # [B, L, D]
    pe = (params["pos_emb"][:L] + params["type_emb"][0][None, :]).astype(jnp.float32)

    kernel = functools.partial(
        _text_encoder_kernel,
        num_layers=NL, heads=H, head_dim=Dh, eps=1e-12)

    in_specs = [
        pl.BlockSpec((1, L, D), lambda b: (b, 0, 0)),      # tok (per-batch block)
        _replicated((L, D)),                               # pos+type embeddings
        _replicated((1, D)), _replicated((1, D)),          # embedding LN gamma/beta
        _replicated((NL, D, 3 * D)), _replicated((NL, 1, 3 * D)),   # wqkv, bqkv
        _replicated((NL, D, D)), _replicated((NL, 1, D)),           # wo, bo
        _replicated((NL, 1, D)), _replicated((NL, 1, D)),           # ln1 gamma/beta
        _replicated((NL, D, I)), _replicated((NL, 1, I)),           # wi, bi
        _replicated((NL, I, D)), _replicated((NL, 1, D)),           # wo2, bo2
        _replicated((NL, 1, D)), _replicated((NL, 1, D)),           # ln2 gamma/beta
        _replicated((D, E)), _replicated((1, E)),                   # fc weight/bias
    ]

    out = pl.pallas_call(
        kernel,
        out_shape=jax.ShapeDtypeStruct((B, L, E), jnp.float32),
        grid=(B,),
        in_specs=in_specs,
        out_specs=pl.BlockSpec((1, L, E), lambda b: (b, 0, 0)),
        compiler_params=pltpu.CompilerParams(
            dimension_semantics=("parallel",)),
    )(
        tok, pe,
        params["emb_ln_g"], params["emb_ln_b"],
        params["wqkv"], params["bqkv"],
        params["wo"], params["bo"],
        params["ln1_g"], params["ln1_b"],
        params["wi"], params["bi"],
        params["wo2"], params["bo2"],
        params["ln2_g"], params["ln2_b"],
        params["fc_w"], params["fc_b"],
    )
    return out


# ----------------------------------------------------------------------------
# Deterministic synthetic parameters (no checkpoint load).
# ----------------------------------------------------------------------------

CFG = dict(
    vocab=50,        # vocabulary size
    max_pos=32,      # max position embeddings
    hidden=32,       # opt.bert_size
    heads=2,
    head_dim=16,
    layers=2,
    intermediate=64,
    embed_size=32,   # opt.embed_size
    seq=8,
    batch=2,
)


def init_params(key, cfg):
    D, I, E, NL = cfg["hidden"], cfg["intermediate"], cfg["embed_size"], cfg["layers"]
    std = 0.02

    def normal(k, shape):
        return (std * jax.random.normal(k, shape)).astype(jnp.float32)

    keys = iter(jax.random.split(key, 32))
    params = {
        "word_emb": normal(next(keys), (cfg["vocab"], D)),
        "pos_emb": normal(next(keys), (cfg["max_pos"], D)),
        "type_emb": normal(next(keys), (2, D)),
        "emb_ln_g": jnp.ones((1, D), jnp.float32),
        "emb_ln_b": jnp.zeros((1, D), jnp.float32),
        # Per-layer weights stacked on a leading layer axis; Q|K|V fused to [D, 3D].
        "wqkv": normal(next(keys), (NL, D, 3 * D)),
        "bqkv": jnp.zeros((NL, 1, 3 * D), jnp.float32),
        "wo": normal(next(keys), (NL, D, D)),
        "bo": jnp.zeros((NL, 1, D), jnp.float32),
        "ln1_g": jnp.ones((NL, 1, D), jnp.float32),
        "ln1_b": jnp.zeros((NL, 1, D), jnp.float32),
        "wi": normal(next(keys), (NL, D, I)),
        "bi": jnp.zeros((NL, 1, I), jnp.float32),
        "wo2": normal(next(keys), (NL, I, D)),
        "bo2": jnp.zeros((NL, 1, D), jnp.float32),
        "ln2_g": jnp.ones((NL, 1, D), jnp.float32),
        "ln2_b": jnp.zeros((NL, 1, D), jnp.float32),
        "fc_w": normal(next(keys), (D, E)),
        "fc_b": jnp.zeros((1, E), jnp.float32),
    }
    return params


# ----------------------------------------------------------------------------

if __name__ == "__main__":
    key = jax.random.PRNGKey(0)
    pkey, ckey = jax.random.split(key)

    params = init_params(pkey, CFG)
    captions = jax.random.randint(
        ckey, (CFG["batch"], CFG["seq"]), 0, CFG["vocab"], dtype=jnp.int32)

    out = text_encoder_forward(params, captions, CFG)
    out = jax.block_until_ready(out)

    assert out.shape == (CFG["batch"], CFG["seq"], CFG["embed_size"])
    assert jnp.all(out >= 0.0)          # ReLU output is non-negative
    assert jnp.all(jnp.isfinite(out))
    print("KERNEL_OK")
</pallas_src>

<mosaic_0001>
module attributes {stable_mosaic.version = 11 : i64} {
  func.func @_text_encoder_kernel(%arg0: i32, %arg1: memref<1x8x32xf32, #tpu.memory_space<vmem>>, %arg2: memref<8x32xf32, #tpu.memory_space<vmem>>, %arg3: memref<1x32xf32, #tpu.memory_space<vmem>>, %arg4: memref<1x32xf32, #tpu.memory_space<vmem>>, %arg5: memref<2x32x96xf32, #tpu.memory_space<vmem>>, %arg6: memref<2x1x96xf32, #tpu.memory_space<vmem>>, %arg7: memref<2x32x32xf32, #tpu.memory_space<vmem>>, %arg8: memref<2x1x32xf32, #tpu.memory_space<vmem>>, %arg9: memref<2x1x32xf32, #tpu.memory_space<vmem>>, %arg10: memref<2x1x32xf32, #tpu.memory_space<vmem>>, %arg11: memref<2x32x64xf32, #tpu.memory_space<vmem>>, %arg12: memref<2x1x64xf32, #tpu.memory_space<vmem>>, %arg13: memref<2x64x32xf32, #tpu.memory_space<vmem>>, %arg14: memref<2x1x32xf32, #tpu.memory_space<vmem>>, %arg15: memref<2x1x32xf32, #tpu.memory_space<vmem>>, %arg16: memref<2x1x32xf32, #tpu.memory_space<vmem>>, %arg17: memref<32x32xf32, #tpu.memory_space<vmem>>, %arg18: memref<1x32xf32, #tpu.memory_space<vmem>>, %arg19: memref<1x8x32xf32, #tpu.memory_space<vmem>>) attributes {dimension_semantics = [#tpu.dimension_semantics<parallel>], iteration_bounds = array<i64: 2>, scalar_prefetch = 0 : i64, scratch_operands = 0 : i64, tpu.core_type = #tpu.core_type<tc>, window_params = [{transform_indices = @transform_0, window_bounds = array<i64: 1, 8, 32>}, {pipeline_mode = #tpu.pipeline_mode<synchronous>, transform_indices = @transform_1, window_bounds = array<i64: 8, 32>}, {pipeline_mode = #tpu.pipeline_mode<synchronous>, transform_indices = @transform_2, window_bounds = array<i64: 1, 32>}, {pipeline_mode = #tpu.pipeline_mode<synchronous>, transform_indices = @transform_3, window_bounds = array<i64: 1, 32>}, {pipeline_mode = #tpu.pipeline_mode<synchronous>, transform_indices = @transform_4, window_bounds = array<i64: 2, 32, 96>}, {pipeline_mode = #tpu.pipeline_mode<synchronous>, transform_indices = @transform_5, window_bounds = array<i64: 2, 1, 96>}, {pipeline_mode = #tpu.pipeline_mode<synchronous>, transform_indices = @transform_6, window_bounds = array<i64: 2, 32, 32>}, {pipeline_mode = #tpu.pipeline_mode<synchronous>, transform_indices = @transform_7, window_bounds = array<i64: 2, 1, 32>}, {pipeline_mode = #tpu.pipeline_mode<synchronous>, transform_indices = @transform_8, window_bounds = array<i64: 2, 1, 32>}, {pipeline_mode = #tpu.pipeline_mode<synchronous>, transform_indices = @transform_9, window_bounds = array<i64: 2, 1, 32>}, {pipeline_mode = #tpu.pipeline_mode<synchronous>, transform_indices = @transform_10, window_bounds = array<i64: 2, 32, 64>}, {pipeline_mode = #tpu.pipeline_mode<synchronous>, transform_indices = @transform_11, window_bounds = array<i64: 2, 1, 64>}, {pipeline_mode = #tpu.pipeline_mode<synchronous>, transform_indices = @transform_12, window_bounds = array<i64: 2, 64, 32>}, {pipeline_mode = #tpu.pipeline_mode<synchronous>, transform_indices = @transform_13, window_bounds = array<i64: 2, 1, 32>}, {pipeline_mode = #tpu.pipeline_mode<synchronous>, transform_indices = @transform_14, window_bounds = array<i64: 2, 1, 32>}, {pipeline_mode = #tpu.pipeline_mode<synchronous>, transform_indices = @transform_15, window_bounds = array<i64: 2, 1, 32>}, {pipeline_mode = #tpu.pipeline_mode<synchronous>, transform_indices = @transform_16, window_bounds = array<i64: 32, 32>}, {pipeline_mode = #tpu.pipeline_mode<synchronous>, transform_indices = @transform_17, window_bounds = array<i64: 1, 32>}, {transform_indices = @transform_18, window_bounds = array<i64: 1, 8, 32>}]} {
    %c0 = arith.constant 0 : index
    %c0_0 = arith.constant 0 : index
    %c0_1 = arith.constant 0 : index
    %0 = vector.load %arg1[%c0, %c0_0, %c0_1] : memref<1x8x32xf32, #tpu.memory_space<vmem>>, vector<1x8x32xf32>
    %1 = vector.shape_cast %0 : vector<1x8x32xf32> to vector<8x32xf32>
    %c0_2 = arith.constant 0 : index
    %c0_3 = arith.constant 0 : index
    %2 = vector.load %arg2[%c0_2, %c0_3] : memref<8x32xf32, #tpu.memory_space<vmem>>, vector<8x32xf32>
    %3 = arith.addf %1, %2 : vector<8x32xf32>
    %c0_4 = arith.constant 0 : index
    %c0_5 = arith.constant 0 : index
    %4 = vector.load %arg3[%c0_4, %c0_5] : memref<1x32xf32, #tpu.memory_space<vmem>>, vector<1x32xf32>
    %c0_6 = arith.constant 0 : index
    %c0_7 = arith.constant 0 : index
    %5 = vector.load %arg4[%c0_6, %c0_7] : memref<1x32xf32, #tpu.memory_space<vmem>>, vector<1x32xf32>
    %cst = arith.constant dense<0.000000e+00> : vector<8xf32>
    %6 = vector.multi_reduction <add>, %3, %cst [1] : vector<8x32xf32> to vector<8xf32>
    %7 = vector.shape_cast %6 : vector<8xf32> to vector<8x1xf32>
    %cst_8 = arith.constant 3.200000e+01 : f32
    %8 = vector.broadcast %cst_8 : f32 to vector<8x1xf32>
    %9 = arith.divf %7, %8 : vector<8x1xf32>
    %10 = vector.broadcast %9 : vector<8x1xf32> to vector<8x32xf32>
    %11 = arith.subf %3, %10 : vector<8x32xf32>
    %12 = arith.mulf %11, %11 : vector<8x32xf32>
    %cst_9 = arith.constant dense<0.000000e+00> : vector<8xf32>
    %13 = vector.multi_reduction <add>, %12, %cst_9 [1] : vector<8x32xf32> to vector<8xf32>
    %14 = vector.shape_cast %13 : vector<8xf32> to vector<8x1xf32>
    %cst_10 = arith.constant 3.200000e+01 : f32
    %15 = vector.broadcast %cst_10 : f32 to vector<8x1xf32>
    %16 = arith.divf %14, %15 : vector<8x1xf32>
    %17 = vector.broadcast %9 : vector<8x1xf32> to vector<8x32xf32>
    %18 = arith.subf %3, %17 : vector<8x32xf32>
    %cst_11 = arith.constant 9.99999996E-13 : f32
    %19 = vector.broadcast %cst_11 : f32 to vector<8x1xf32>
    %20 = arith.addf %16, %19 : vector<8x1xf32>
    %21 = math.rsqrt %20 : vector<8x1xf32>
    %22 = vector.broadcast %21 : vector<8x1xf32> to vector<8x32xf32>
    %23 = arith.mulf %18, %22 : vector<8x32xf32>
    %24 = vector.broadcast %4 : vector<1x32xf32> to vector<8x32xf32>
    %25 = arith.mulf %23, %24 : vector<8x32xf32>
    %26 = vector.broadcast %5 : vector<1x32xf32> to vector<8x32xf32>
    %27 = arith.addf %25, %26 : vector<8x32xf32>
    %c0_12 = arith.constant 0 : index
    %c0_13 = arith.constant 0 : index
    %c0_14 = arith.constant 0 : index
    %28 = vector.load %arg5[%c0_12, %c0_13, %c0_14] : memref<2x32x96xf32, #tpu.memory_space<vmem>>, vector<1x32x96xf32>
    %29 = vector.shape_cast %28 : vector<1x32x96xf32> to vector<32x96xf32>
    %cst_15 = arith.constant dense<0.000000e+00> : vector<8x96xf32>
    %30 = tpu.matmul %27, %29, %cst_15 {dimension_numbers = #tpu.dot_dimension_numbers<[1], [0], [0], [1], [0, 0, 1, 1], [], []>} : vector<8x32xf32>, vector<32x96xf32>, vector<8x96xf32> -> vector<8x96xf32>
    %c0_16 = arith.constant 0 : index
    %c0_17 = arith.constant 0 : index
    %c0_18 = arith.constant 0 : index
    %31 = vector.load %arg6[%c0_16, %c0_17, %c0_18] : memref<2x1x96xf32, #tpu.memory_space<vmem>>, vector<1x1x96xf32>
    %32 = vector.shape_cast %31 : vector<1x1x96xf32> to vector<1x96xf32>
    %33 = vector.broadcast %32 : vector<1x96xf32> to vector<8x96xf32>
    %34 = arith.addf %30, %33 : vector<8x96xf32>
    %c0_19 = arith.constant 0 : index
    %c0_20 = arith.constant 0 : index
    %c0_21 = arith.constant 0 : index
    %35 = vector.load %arg7[%c0_19, %c0_20, %c0_21] : memref<2x32x32xf32, #tpu.memory_space<vmem>>, vector<1x32x32xf32>
    %36 = vector.shape_cast %35 : vector<1x32x32xf32> to vector<32x32xf32>
    %cst_22 = arith.constant 0.000000e+00 : f32
    %37 = vector.broadcast %cst_22 : f32 to vector<8x32xf32>
    %38 = vector.extract_strided_slice %34 {offsets = [0, 0], sizes = [8, 16], strides = [1, 1]} : vector<8x96xf32> to vector<8x16xf32>
    %39 = vector.extract_strided_slice %34 {offsets = [0, 32], sizes = [8, 16], strides = [1, 1]} : vector<8x96xf32> to vector<8x16xf32>
    %40 = vector.extract_strided_slice %34 {offsets = [0, 64], sizes = [8, 16], strides = [1, 1]} : vector<8x96xf32> to vector<8x16xf32>
    %cst_23 = arith.constant dense<0.000000e+00> : vector<8x8xf32>
    %41 = tpu.matmul %38, %39, %cst_23 {dimension_numbers = #tpu.dot_dimension_numbers<[1], [1], [0], [0], [0, 0, 1, 0], [], []>} : vector<8x16xf32>, vector<8x16xf32>, vector<8x8xf32> -> vector<8x8xf32>
    %cst_24 = arith.constant 2.500000e-01 : f32
    %42 = vector.broadcast %cst_24 : f32 to vector<8x8xf32>
    %43 = arith.mulf %41, %42 : vector<8x8xf32>
    %cst_25 = arith.constant dense<0xFF800000> : vector<8xf32>
    %44 = vector.multi_reduction <maximumf>, %43, %cst_25 [1] : vector<8x8xf32> to vector<8xf32>
    %45 = vector.shape_cast %44 : vector<8xf32> to vector<8x1xf32>
    %46 = vector.broadcast %45 : vector<8x1xf32> to vector<8x8xf32>
    %47 = arith.subf %43, %46 : vector<8x8xf32>
    %48 = math.exp %47 : vector<8x8xf32>
    %cst_26 = arith.constant dense<0.000000e+00> : vector<8xf32>
    %49 = vector.multi_reduction <add>, %48, %cst_26 [1] : vector<8x8xf32> to vector<8xf32>
    %50 = vector.shape_cast %49 : vector<8xf32> to vector<8x1xf32>
    %51 = tpu.reciprocal %50 {approx = true} : vector<8x1xf32> -> vector<8x1xf32>
    %52 = vector.broadcast %51 : vector<8x1xf32> to vector<8x8xf32>
    %53 = arith.mulf %48, %52 : vector<8x8xf32>
    %cst_27 = arith.constant dense<0.000000e+00> : vector<8x16xf32>
    %54 = tpu.matmul %53, %40, %cst_27 {dimension_numbers = #tpu.dot_dimension_numbers<[1], [0], [0], [1], [0, 0, 1, 1], [], []>} : vector<8x8xf32>, vector<8x16xf32>, vector<8x16xf32> -> vector<8x16xf32>
    %55 = vector.extract_strided_slice %36 {offsets = [0, 0], sizes = [16, 32], strides = [1, 1]} : vector<32x32xf32> to vector<16x32xf32>
    %cst_28 = arith.constant dense<0.000000e+00> : vector<8x32xf32>
    %56 = tpu.matmul %54, %55, %cst_28 {dimension_numbers = #tpu.dot_dimension_numbers<[1], [0], [0], [1], [0, 0, 1, 1], [], []>} : vector<8x16xf32>, vector<16x32xf32>, vector<8x32xf32> -> vector<8x32xf32>
    %57 = arith.addf %37, %56 : vector<8x32xf32>
    %58 = vector.extract_strided_slice %34 {offsets = [0, 16], sizes = [8, 16], strides = [1, 1]} : vector<8x96xf32> to vector<8x16xf32>
    %59 = vector.extract_strided_slice %34 {offsets = [0, 48], sizes = [8, 16], strides = [1, 1]} : vector<8x96xf32> to vector<8x16xf32>
    %60 = vector.extract_strided_slice %34 {offsets = [0, 80], sizes = [8, 16], strides = [1, 1]} : vector<8x96xf32> to vector<8x16xf32>
    %cst_29 = arith.constant dense<0.000000e+00> : vector<8x8xf32>
    %61 = tpu.matmul %58, %59, %cst_29 {dimension_numbers = #tpu.dot_dimension_numbers<[1], [1], [0], [0], [0, 0, 1, 0], [], []>} : vector<8x16xf32>, vector<8x16xf32>, vector<8x8xf32> -> vector<8x8xf32>
    %cst_30 = arith.constant 2.500000e-01 : f32
    %62 = vector.broadcast %cst_30 : f32 to vector<8x8xf32>
    %63 = arith.mulf %61, %62 : vector<8x8xf32>
    %cst_31 = arith.constant dense<0xFF800000> : vector<8xf32>
    %64 = vector.multi_reduction <maximumf>, %63, %cst_31 [1] : vector<8x8xf32> to vector<8xf32>
    %65 = vector.shape_cast %64 : vector<8xf32> to vector<8x1xf32>
    %66 = vector.broadcast %65 : vector<8x1xf32> to vector<8x8xf32>
    %67 = arith.subf %63, %66 : vector<8x8xf32>
    %68 = math.exp %67 : vector<8x8xf32>
    %cst_32 = arith.constant dense<0.000000e+00> : vector<8xf32>
    %69 = vector.multi_reduction <add>, %68, %cst_32 [1] : vector<8x8xf32> to vector<8xf32>
    %70 = vector.shape_cast %69 : vector<8xf32> to vector<8x1xf32>
    %71 = tpu.reciprocal %70 {approx = true} : vector<8x1xf32> -> vector<8x1xf32>
    %72 = vector.broadcast %71 : vector<8x1xf32> to vector<8x8xf32>
    %73 = arith.mulf %68, %72 : vector<8x8xf32>
    %cst_33 = arith.constant dense<0.000000e+00> : vector<8x16xf32>
    %74 = tpu.matmul %73, %60, %cst_33 {dimension_numbers = #tpu.dot_dimension_numbers<[1], [0], [0], [1], [0, 0, 1, 1], [], []>} : vector<8x8xf32>, vector<8x16xf32>, vector<8x16xf32> -> vector<8x16xf32>
    %75 = vector.extract_strided_slice %36 {offsets = [16, 0], sizes = [16, 32], strides = [1, 1]} : vector<32x32xf32> to vector<16x32xf32>
    %cst_34 = arith.constant dense<0.000000e+00> : vector<8x32xf32>
    %76 = tpu.matmul %74, %75, %cst_34 {dimension_numbers = #tpu.dot_dimension_numbers<[1], [0], [0], [1], [0, 0, 1, 1], [], []>} : vector<8x16xf32>, vector<16x32xf32>, vector<8x32xf32> -> vector<8x32xf32>
    %77 = arith.addf %57, %76 : vector<8x32xf32>
    %c0_35 = arith.constant 0 : index
    %c0_36 = arith.constant 0 : index
    %c0_37 = arith.constant 0 : index
    %78 = vector.load %arg8[%c0_35, %c0_36, %c0_37] : memref<2x1x32xf32, #tpu.memory_space<vmem>>, vector<1x1x32xf32>
    %79 = vector.shape_cast %78 : vector<1x1x32xf32> to vector<1x32xf32>
    %80 = vector.broadcast %79 : vector<1x32xf32> to vector<8x32xf32>
    %81 = arith.addf %77, %80 : vector<8x32xf32>
    %82 = arith.addf %27, %81 : vector<8x32xf32>
    %c0_38 = arith.constant 0 : index
    %c0_39 = arith.constant 0 : index
    %c0_40 = arith.constant 0 : index
    %83 = vector.load %arg9[%c0_38, %c0_39, %c0_40] : memref<2x1x32xf32, #tpu.memory_space<vmem>>, vector<1x1x32xf32>
    %84 = vector.shape_cast %83 : vector<1x1x32xf32> to vector<1x32xf32>
    %c0_41 = arith.constant 0 : index
    %c0_42 = arith.constant 0 : index
    %c0_43 = arith.constant 0 : index
    %85 = vector.load %arg10[%c0_41, %c0_42, %c0_43] : memref<2x1x32xf32, #tpu.memory_space<vmem>>, vector<1x1x32xf32>
    %86 = vector.shape_cast %85 : vector<1x1x32xf32> to vector<1x32xf32>
    %cst_44 = arith.constant dense<0.000000e+00> : vector<8xf32>
    %87 = vector.multi_reduction <add>, %82, %cst_44 [1] : vector<8x32xf32> to vector<8xf32>
    %88 = vector.shape_cast %87 : vector<8xf32> to vector<8x1xf32>
    %cst_45 = arith.constant 3.200000e+01 : f32
    %89 = vector.broadcast %cst_45 : f32 to vector<8x1xf32>
    %90 = arith.divf %88, %89 : vector<8x1xf32>
    %91 = vector.broadcast %90 : vector<8x1xf32> to vector<8x32xf32>
    %92 = arith.subf %82, %91 : vector<8x32xf32>
    %93 = arith.mulf %92, %92 : vector<8x32xf32>
    %cst_46 = arith.constant dense<0.000000e+00> : vector<8xf32>
    %94 = vector.multi_reduction <add>, %93, %cst_46 [1] : vector<8x32xf32> to vector<8xf32>
    %95 = vector.shape_cast %94 : vector<8xf32> to vector<8x1xf32>
    %cst_47 = arith.constant 3.200000e+01 : f32
    %96 = vector.broadcast %cst_47 : f32 to vector<8x1xf32>
    %97 = arith.divf %95, %96 : vector<8x1xf32>
    %98 = vector.broadcast %90 : vector<8x1xf32> to vector<8x32xf32>
    %99 = arith.subf %82, %98 : vector<8x32xf32>
    %cst_48 = arith.constant 9.99999996E-13 : f32
    %100 = vector.broadcast %cst_48 : f32 to vector<8x1xf32>
    %101 = arith.addf %97, %100 : vector<8x1xf32>
    %102 = math.rsqrt %101 : vector<8x1xf32>
    %103 = vector.broadcast %102 : vector<8x1xf32> to vector<8x32xf32>
    %104 = arith.mulf %99, %103 : vector<8x32xf32>
    %105 = vector.broadcast %84 : vector<1x32xf32> to vector<8x32xf32>
    %106 = arith.mulf %104, %105 : vector<8x32xf32>
    %107 = vector.broadcast %86 : vector<1x32xf32> to vector<8x32xf32>
    %108 = arith.addf %106, %107 : vector<8x32xf32>
    %c0_49 = arith.constant 0 : index
    %c0_50 = arith.constant 0 : index
    %c0_51 = arith.constant 0 : index
    %109 = vector.load %arg11[%c0_49, %c0_50, %c0_51] : memref<2x32x64xf32, #tpu.memory_space<vmem>>, vector<1x32x64xf32>
    %110 = vector.shape_cast %109 : vector<1x32x64xf32> to vector<32x64xf32>
    %cst_52 = arith.constant dense<0.000000e+00> : vector<8x64xf32>
    %111 = tpu.matmul %108, %110, %cst_52 {dimension_numbers = #tpu.dot_dimension_numbers<[1], [0], [0], [1], [0, 0, 1, 1], [], []>} : vector<8x32xf32>, vector<32x64xf32>, vector<8x64xf32> -> vector<8x64xf32>
    %c0_53 = arith.constant 0 : index
    %c0_54 = arith.constant 0 : index
    %c0_55 = arith.constant 0 : index
    %112 = vector.load %arg12[%c0_53, %c0_54, %c0_55] : memref<2x1x64xf32, #tpu.memory_space<vmem>>, vector<1x1x64xf32>
    %113 = vector.shape_cast %112 : vector<1x1x64xf32> to vector<1x64xf32>
    %114 = vector.broadcast %113 : vector<1x64xf32> to vector<8x64xf32>
    %115 = arith.addf %111, %114 : vector<8x64xf32>
    %116 = arith.mulf %115, %115 : vector<8x64xf32>
    %117 = arith.mulf %115, %116 : vector<8x64xf32>
    %cst_56 = arith.constant 4.471500e-02 : f32
    %118 = vector.broadcast %cst_56 : f32 to vector<8x64xf32>
    %119 = arith.mulf %118, %117 : vector<8x64xf32>
    %120 = arith.addf %115, %119 : vector<8x64xf32>
    %cst_57 = arith.constant 0.797884583 : f32
    %121 = vector.broadcast %cst_57 : f32 to vector<8x64xf32>
    %122 = arith.mulf %121, %120 : vector<8x64xf32>
    %123 = math.tanh %122 : vector<8x64xf32>
    %cst_58 = arith.constant 1.000000e+00 : f32
    %124 = vector.broadcast %cst_58 : f32 to vector<8x64xf32>
    %125 = arith.addf %124, %123 : vector<8x64xf32>
    %cst_59 = arith.constant 5.000000e-01 : f32
    %126 = vector.broadcast %cst_59 : f32 to vector<8x64xf32>
    %127 = arith.mulf %126, %125 : vector<8x64xf32>
    %128 = arith.mulf %115, %127 : vector<8x64xf32>
    %c0_60 = arith.constant 0 : index
    %c0_61 = arith.constant 0 : index
    %c0_62 = arith.constant 0 : index
    %129 = vector.load %arg13[%c0_60, %c0_61, %c0_62] : memref<2x64x32xf32, #tpu.memory_space<vmem>>, vector<1x64x32xf32>
    %130 = vector.shape_cast %129 : vector<1x64x32xf32> to vector<64x32xf32>
    %cst_63 = arith.constant dense<0.000000e+00> : vector<8x32xf32>
    %131 = tpu.matmul %128, %130, %cst_63 {dimension_numbers = #tpu.dot_dimension_numbers<[1], [0], [0], [1], [0, 0, 1, 1], [], []>} : vector<8x64xf32>, vector<64x32xf32>, vector<8x32xf32> -> vector<8x32xf32>
    %c0_64 = arith.constant 0 : index
    %c0_65 = arith.constant 0 : index
    %c0_66 = arith.constant 0 : index
    %132 = vector.load %arg14[%c0_64, %c0_65, %c0_66] : memref<2x1x32xf32, #tpu.memory_space<vmem>>, vector<1x1x32xf32>
    %133 = vector.shape_cast %132 : vector<1x1x32xf32> to vector<1x32xf32>
    %134 = vector.broadcast %133 : vector<1x32xf32> to vector<8x32xf32>
    %135 = arith.addf %131, %134 : vector<8x32xf32>
    %136 = arith.addf %108, %135 : vector<8x32xf32>
    %c0_67 = arith.constant 0 : index
    %c0_68 = arith.constant 0 : index
    %c0_69 = arith.constant 0 : index
    %137 = vector.load %arg15[%c0_67, %c0_68, %c0_69] : memref<2x1x32xf32, #tpu.memory_space<vmem>>, vector<1x1x32xf32>
    %138 = vector.shape_cast %137 : vector<1x1x32xf32> to vector<1x32xf32>
    %c0_70 = arith.constant 0 : index
    %c0_71 = arith.constant 0 : index
    %c0_72 = arith.constant 0 : index
    %139 = vector.load %arg16[%c0_70, %c0_71, %c0_72] : memref<2x1x32xf32, #tpu.memory_space<vmem>>, vector<1x1x32xf32>
    %140 = vector.shape_cast %139 : vector<1x1x32xf32> to vector<1x32xf32>
    %cst_73 = arith.constant dense<0.000000e+00> : vector<8xf32>
    %141 = vector.multi_reduction <add>, %136, %cst_73 [1] : vector<8x32xf32> to vector<8xf32>
    %142 = vector.shape_cast %141 : vector<8xf32> to vector<8x1xf32>
    %cst_74 = arith.constant 3.200000e+01 : f32
    %143 = vector.broadcast %cst_74 : f32 to vector<8x1xf32>
    %144 = arith.divf %142, %143 : vector<8x1xf32>
    %145 = vector.broadcast %144 : vector<8x1xf32> to vector<8x32xf32>
    %146 = arith.subf %136, %145 : vector<8x32xf32>
    %147 = arith.mulf %146, %146 : vector<8x32xf32>
    %cst_75 = arith.constant dense<0.000000e+00> : vector<8xf32>
    %148 = vector.multi_reduction <add>, %147, %cst_75 [1] : vector<8x32xf32> to vector<8xf32>
    %149 = vector.shape_cast %148 : vector<8xf32> to vector<8x1xf32>
    %cst_76 = arith.constant 3.200000e+01 : f32
    %150 = vector.broadcast %cst_76 : f32 to vector<8x1xf32>
    %151 = arith.divf %149, %150 : vector<8x1xf32>
    %152 = vector.broadcast %144 : vector<8x1xf32> to vector<8x32xf32>
    %153 = arith.subf %136, %152 : vector<8x32xf32>
    %cst_77 = arith.constant 9.99999996E-13 : f32
    %154 = vector.broadcast %cst_77 : f32 to vector<8x1xf32>
    %155 = arith.addf %151, %154 : vector<8x1xf32>
    %156 = math.rsqrt %155 : vector<8x1xf32>
    %157 = vector.broadcast %156 : vector<8x1xf32> to vector<8x32xf32>
    %158 = arith.mulf %153, %157 : vector<8x32xf32>
    %159 = vector.broadcast %138 : vector<1x32xf32> to vector<8x32xf32>
    %160 = arith.mulf %158, %159 : vector<8x32xf32>
    %161 = vector.broadcast %140 : vector<1x32xf32> to vector<8x32xf32>
    %162 = arith.addf %160, %161 : vector<8x32xf32>
    %c1 = arith.constant 1 : index
    %c0_78 = arith.constant 0 : index
    %c0_79 = arith.constant 0 : index
    %163 = vector.load %arg5[%c1, %c0_78, %c0_79] : memref<2x32x96xf32, #tpu.memory_space<vmem>>, vector<1x32x96xf32>
    %164 = vector.shape_cast %163 : vector<1x32x96xf32> to vector<32x96xf32>
    %cst_80 = arith.constant dense<0.000000e+00> : vector<8x96xf32>
    %165 = tpu.matmul %162, %164, %cst_80 {dimension_numbers = #tpu.dot_dimension_numbers<[1], [0], [0], [1], [0, 0, 1, 1], [], []>} : vector<8x32xf32>, vector<32x96xf32>, vector<8x96xf32> -> vector<8x96xf32>
    %c1_81 = arith.constant 1 : index
    %c0_82 = arith.constant 0 : index
    %c0_83 = arith.constant 0 : index
    %166 = vector.load %arg6[%c1_81, %c0_82, %c0_83] : memref<2x1x96xf32, #tpu.memory_space<vmem>>, vector<1x1x96xf32>
    %167 = vector.shape_cast %166 : vector<1x1x96xf32> to vector<1x96xf32>
    %168 = vector.broadcast %167 : vector<1x96xf32> to vector<8x96xf32>
    %169 = arith.addf %165, %168 : vector<8x96xf32>
    %c1_84 = arith.constant 1 : index
    %c0_85 = arith.constant 0 : index
    %c0_86 = arith.constant 0 : index
    %170 = vector.load %arg7[%c1_84, %c0_85, %c0_86] : memref<2x32x32xf32, #tpu.memory_space<vmem>>, vector<1x32x32xf32>
    %171 = vector.shape_cast %170 : vector<1x32x32xf32> to vector<32x32xf32>
    %cst_87 = arith.constant 0.000000e+00 : f32
    %172 = vector.broadcast %cst_87 : f32 to vector<8x32xf32>
    %173 = vector.extract_strided_slice %169 {offsets = [0, 0], sizes = [8, 16], strides = [1, 1]} : vector<8x96xf32> to vector<8x16xf32>
    %174 = vector.extract_strided_slice %169 {offsets = [0, 32], sizes = [8, 16], strides = [1, 1]} : vector<8x96xf32> to vector<8x16xf32>
    %175 = vector.extract_strided_slice %169 {offsets = [0, 64], sizes = [8, 16], strides = [1, 1]} : vector<8x96xf32> to vector<8x16xf32>
    %cst_88 = arith.constant dense<0.000000e+00> : vector<8x8xf32>
    %176 = tpu.matmul %173, %174, %cst_88 {dimension_numbers = #tpu.dot_dimension_numbers<[1], [1], [0], [0], [0, 0, 1, 0], [], []>} : vector<8x16xf32>, vector<8x16xf32>, vector<8x8xf32> -> vector<8x8xf32>
    %cst_89 = arith.constant 2.500000e-01 : f32
    %177 = vector.broadcast %cst_89 : f32 to vector<8x8xf32>
    %178 = arith.mulf %176, %177 : vector<8x8xf32>
    %cst_90 = arith.constant dense<0xFF800000> : vector<8xf32>
    %179 = vector.multi_reduction <maximumf>, %178, %cst_90 [1] : vector<8x8xf32> to vector<8xf32>
    %180 = vector.shape_cast %179 : vector<8xf32> to vector<8x1xf32>
    %181 = vector.broadcast %180 : vector<8x1xf32> to vector<8x8xf32>
    %182 = arith.subf %178, %181 : vector<8x8xf32>
    %183 = math.exp %182 : vector<8x8xf32>
    %cst_91 = arith.constant dense<0.000000e+00> : vector<8xf32>
    %184 = vector.multi_reduction <add>, %183, %cst_91 [1] : vector<8x8xf32> to vector<8xf32>
    %185 = vector.shape_cast %184 : vector<8xf32> to vector<8x1xf32>
    %186 = tpu.reciprocal %185 {approx = true} : vector<8x1xf32> -> vector<8x1xf32>
    %187 = vector.broadcast %186 : vector<8x1xf32> to vector<8x8xf32>
    %188 = arith.mulf %183, %187 : vector<8x8xf32>
    %cst_92 = arith.constant dense<0.000000e+00> : vector<8x16xf32>
    %189 = tpu.matmul %188, %175, %cst_92 {dimension_numbers = #tpu.dot_dimension_numbers<[1], [0], [0], [1], [0, 0, 1, 1], [], []>} : vector<8x8xf32>, vector<8x16xf32>, vector<8x16xf32> -> vector<8x16xf32>
    %190 = vector.extract_strided_slice %171 {offsets = [0, 0], sizes = [16, 32], strides = [1, 1]} : vector<32x32xf32> to vector<16x32xf32>
    %cst_93 = arith.constant dense<0.000000e+00> : vector<8x32xf32>
    %191 = tpu.matmul %189, %190, %cst_93 {dimension_numbers = #tpu.dot_dimension_numbers<[1], [0], [0], [1], [0, 0, 1, 1], [], []>} : vector<8x16xf32>, vector<16x32xf32>, vector<8x32xf32> -> vector<8x32xf32>
    %192 = arith.addf %172, %191 : vector<8x32xf32>
    %193 = vector.extract_strided_slice %169 {offsets = [0, 16], sizes = [8, 16], strides = [1, 1]} : vector<8x96xf32> to vector<8x16xf32>
    %194 = vector.extract_strided_slice %169 {offsets = [0, 48], sizes = [8, 16], strides = [1, 1]} : vector<8x96xf32> to vector<8x16xf32>
    %195 = vector.extract_strided_slice %169 {offsets = [0, 80], sizes = [8, 16], strides = [1, 1]} : vector<8x96xf32> to vector<8x16xf32>
    %cst_94 = arith.constant dense<0.000000e+00> : vector<8x8xf32>
    %196 = tpu.matmul %193, %194, %cst_94 {dimension_numbers = #tpu.dot_dimension_numbers<[1], [1], [0], [0], [0, 0, 1, 0], [], []>} : vector<8x16xf32>, vector<8x16xf32>, vector<8x8xf32> -> vector<8x8xf32>
    %cst_95 = arith.constant 2.500000e-01 : f32
    %197 = vector.broadcast %cst_95 : f32 to vector<8x8xf32>
    %198 = arith.mulf %196, %197 : vector<8x8xf32>
    %cst_96 = arith.constant dense<0xFF800000> : vector<8xf32>
    %199 = vector.multi_reduction <maximumf>, %198, %cst_96 [1] : vector<8x8xf32> to vector<8xf32>
    %200 = vector.shape_cast %199 : vector<8xf32> to vector<8x1xf32>
    %201 = vector.broadcast %200 : vector<8x1xf32> to vector<8x8xf32>
    %202 = arith.subf %198, %201 : vector<8x8xf32>
    %203 = math.exp %202 : vector<8x8xf32>
    %cst_97 = arith.constant dense<0.000000e+00> : vector<8xf32>
    %204 = vector.multi_reduction <add>, %203, %cst_97 [1] : vector<8x8xf32> to vector<8xf32>
    %205 = vector.shape_cast %204 : vector<8xf32> to vector<8x1xf32>
    %206 = tpu.reciprocal %205 {approx = true} : vector<8x1xf32> -> vector<8x1xf32>
    %207 = vector.broadcast %206 : vector<8x1xf32> to vector<8x8xf32>
    %208 = arith.mulf %203, %207 : vector<8x8xf32>
    %cst_98 = arith.constant dense<0.000000e+00> : vector<8x16xf32>
    %209 = tpu.matmul %208, %195, %cst_98 {dimension_numbers = #tpu.dot_dimension_numbers<[1], [0], [0], [1], [0, 0, 1, 1], [], []>} : vector<8x8xf32>, vector<8x16xf32>, vector<8x16xf32> -> vector<8x16xf32>
    %210 = vector.extract_strided_slice %171 {offsets = [16, 0], sizes = [16, 32], strides = [1, 1]} : vector<32x32xf32> to vector<16x32xf32>
    %cst_99 = arith.constant dense<0.000000e+00> : vector<8x32xf32>
    %211 = tpu.matmul %209, %210, %cst_99 {dimension_numbers = #tpu.dot_dimension_numbers<[1], [0], [0], [1], [0, 0, 1, 1], [], []>} : vector<8x16xf32>, vector<16x32xf32>, vector<8x32xf32> -> vector<8x32xf32>
    %212 = arith.addf %192, %211 : vector<8x32xf32>
    %c1_100 = arith.constant 1 : index
    %c0_101 = arith.constant 0 : index
    %c0_102 = arith.constant 0 : index
    %213 = vector.load %arg8[%c1_100, %c0_101, %c0_102] : memref<2x1x32xf32, #tpu.memory_space<vmem>>, vector<1x1x32xf32>
    %214 = vector.shape_cast %213 : vector<1x1x32xf32> to vector<1x32xf32>
    %215 = vector.broadcast %214 : vector<1x32xf32> to vector<8x32xf32>
    %216 = arith.addf %212, %215 : vector<8x32xf32>
    %217 = arith.addf %162, %216 : vector<8x32xf32>
    %c1_103 = arith.constant 1 : index
    %c0_104 = arith.constant 0 : index
    %c0_105 = arith.constant 0 : index
    %218 = vector.load %arg9[%c1_103, %c0_104, %c0_105] : memref<2x1x32xf32, #tpu.memory_space<vmem>>, vector<1x1x32xf32>
    %219 = vector.shape_cast %218 : vector<1x1x32xf32> to vector<1x32xf32>
    %c1_106 = arith.constant 1 : index
    %c0_107 = arith.constant 0 : index
    %c0_108 = arith.constant 0 : index
    %220 = vector.load %arg10[%c1_106, %c0_107, %c0_108] : memref<2x1x32xf32, #tpu.memory_space<vmem>>, vector<1x1x32xf32>
    %221 = vector.shape_cast %220 : vector<1x1x32xf32> to vector<1x32xf32>
    %cst_109 = arith.constant dense<0.000000e+00> : vector<8xf32>
    %222 = vector.multi_reduction <add>, %217, %cst_109 [1] : vector<8x32xf32> to vector<8xf32>
    %223 = vector.shape_cast %222 : vector<8xf32> to vector<8x1xf32>
    %cst_110 = arith.constant 3.200000e+01 : f32
    %224 = vector.broadcast %cst_110 : f32 to vector<8x1xf32>
    %225 = arith.divf %223, %224 : vector<8x1xf32>
    %226 = vector.broadcast %225 : vector<8x1xf32> to vector<8x32xf32>
    %227 = arith.subf %217, %226 : vector<8x32xf32>
    %228 = arith.mulf %227, %227 : vector<8x32xf32>
    %cst_111 = arith.constant dense<0.000000e+00> : vector<8xf32>
    %229 = vector.multi_reduction <add>, %228, %cst_111 [1] : vector<8x32xf32> to vector<8xf32>
    %230 = vector.shape_cast %229 : vector<8xf32> to vector<8x1xf32>
    %cst_112 = arith.constant 3.200000e+01 : f32
    %231 = vector.broadcast %cst_112 : f32 to vector<8x1xf32>
    %232 = arith.divf %230, %231 : vector<8x1xf32>
    %233 = vector.broadcast %225 : vector<8x1xf32> to vector<8x32xf32>
    %234 = arith.subf %217, %233 : vector<8x32xf32>
    %cst_113 = arith.constant 9.99999996E-13 : f32
    %235 = vector.broadcast %cst_113 : f32 to vector<8x1xf32>
    %236 = arith.addf %232, %235 : vector<8x1xf32>
    %237 = math.rsqrt %236 : vector<8x1xf32>
    %238 = vector.broadcast %237 : vector<8x1xf32> to vector<8x32xf32>
    %239 = arith.mulf %234, %238 : vector<8x32xf32>
    %240 = vector.broadcast %219 : vector<1x32xf32> to vector<8x32xf32>
    %241 = arith.mulf %239, %240 : vector<8x32xf32>
    %242 = vector.broadcast %221 : vector<1x32xf32> to vector<8x32xf32>
    %243 = arith.addf %241, %242 : vector<8x32xf32>
    %c1_114 = arith.constant 1 : index
    %c0_115 = arith.constant 0 : index
    %c0_116 = arith.constant 0 : index
    %244 = vector.load %arg11[%c1_114, %c0_115, %c0_116] : memref<2x32x64xf32, #tpu.memory_space<vmem>>, vector<1x32x64xf32>
    %245 = vector.shape_cast %244 : vector<1x32x64xf32> to vector<32x64xf32>
    %cst_117 = arith.constant dense<0.000000e+00> : vector<8x64xf32>
    %246 = tpu.matmul %243, %245, %cst_117 {dimension_numbers = #tpu.dot_dimension_numbers<[1], [0], [0], [1], [0, 0, 1, 1], [], []>} : vector<8x32xf32>, vector<32x64xf32>, vector<8x64xf32> -> vector<8x64xf32>
    %c1_118 = arith.constant 1 : index
    %c0_119 = arith.constant 0 : index
    %c0_120 = arith.constant 0 : index
    %247 = vector.load %arg12[%c1_118, %c0_119, %c0_120] : memref<2x1x64xf32, #tpu.memory_space<vmem>>, vector<1x1x64xf32>
    %248 = vector.shape_cast %247 : vector<1x1x64xf32> to vector<1x64xf32>
    %249 = vector.broadcast %248 : vector<1x64xf32> to vector<8x64xf32>
    %250 = arith.addf %246, %249 : vector<8x64xf32>
    %251 = arith.mulf %250, %250 : vector<8x64xf32>
    %252 = arith.mulf %250, %251 : vector<8x64xf32>
    %cst_121 = arith.constant 4.471500e-02 : f32
    %253 = vector.broadcast %cst_121 : f32 to vector<8x64xf32>
    %254 = arith.mulf %253, %252 : vector<8x64xf32>
    %255 = arith.addf %250, %254 : vector<8x64xf32>
    %cst_122 = arith.constant 0.797884583 : f32
    %256 = vector.broadcast %cst_122 : f32 to vector<8x64xf32>
    %257 = arith.mulf %256, %255 : vector<8x64xf32>
    %258 = math.tanh %257 : vector<8x64xf32>
    %cst_123 = arith.constant 1.000000e+00 : f32
    %259 = vector.broadcast %cst_123 : f32 to vector<8x64xf32>
    %260 = arith.addf %259, %258 : vector<8x64xf32>
    %cst_124 = arith.constant 5.000000e-01 : f32
    %261 = vector.broadcast %cst_124 : f32 to vector<8x64xf32>
    %262 = arith.mulf %261, %260 : vector<8x64xf32>
    %263 = arith.mulf %250, %262 : vector<8x64xf32>
    %c1_125 = arith.constant 1 : index
    %c0_126 = arith.constant 0 : index
    %c0_127 = arith.constant 0 : index
    %264 = vector.load %arg13[%c1_125, %c0_126, %c0_127] : memref<2x64x32xf32, #tpu.memory_space<vmem>>, vector<1x64x32xf32>
    %265 = vector.shape_cast %264 : vector<1x64x32xf32> to vector<64x32xf32>
    %cst_128 = arith.constant dense<0.000000e+00> : vector<8x32xf32>
    %266 = tpu.matmul %263, %265, %cst_128 {dimension_numbers = #tpu.dot_dimension_numbers<[1], [0], [0], [1], [0, 0, 1, 1], [], []>} : vector<8x64xf32>, vector<64x32xf32>, vector<8x32xf32> -> vector<8x32xf32>
    %c1_129 = arith.constant 1 : index
    %c0_130 = arith.constant 0 : index
    %c0_131 = arith.constant 0 : index
    %267 = vector.load %arg14[%c1_129, %c0_130, %c0_131] : memref<2x1x32xf32, #tpu.memory_space<vmem>>, vector<1x1x32xf32>
    %268 = vector.shape_cast %267 : vector<1x1x32xf32> to vector<1x32xf32>
    %269 = vector.broadcast %268 : vector<1x32xf32> to vector<8x32xf32>
    %270 = arith.addf %266, %269 : vector<8x32xf32>
    %271 = arith.addf %243, %270 : vector<8x32xf32>
    %c1_132 = arith.constant 1 : index
    %c0_133 = arith.constant 0 : index
    %c0_134 = arith.constant 0 : index
    %272 = vector.load %arg15[%c1_132, %c0_133, %c0_134] : memref<2x1x32xf32, #tpu.memory_space<vmem>>, vector<1x1x32xf32>
    %273 = vector.shape_cast %272 : vector<1x1x32xf32> to vector<1x32xf32>
    %c1_135 = arith.constant 1 : index
    %c0_136 = arith.constant 0 : index
    %c0_137 = arith.constant 0 : index
    %274 = vector.load %arg16[%c1_135, %c0_136, %c0_137] : memref<2x1x32xf32, #tpu.memory_space<vmem>>, vector<1x1x32xf32>
    %275 = vector.shape_cast %274 : vector<1x1x32xf32> to vector<1x32xf32>
    %cst_138 = arith.constant dense<0.000000e+00> : vector<8xf32>
    %276 = vector.multi_reduction <add>, %271, %cst_138 [1] : vector<8x32xf32> to vector<8xf32>
    %277 = vector.shape_cast %276 : vector<8xf32> to vector<8x1xf32>
    %cst_139 = arith.constant 3.200000e+01 : f32
    %278 = vector.broadcast %cst_139 : f32 to vector<8x1xf32>
    %279 = arith.divf %277, %278 : vector<8x1xf32>
    %280 = vector.broadcast %279 : vector<8x1xf32> to vector<8x32xf32>
    %281 = arith.subf %271, %280 : vector<8x32xf32>
    %282 = arith.mulf %281, %281 : vector<8x32xf32>
    %cst_140 = arith.constant dense<0.000000e+00> : vector<8xf32>
    %283 = vector.multi_reduction <add>, %282, %cst_140 [1] : vector<8x32xf32> to vector<8xf32>
    %284 = vector.shape_cast %283 : vector<8xf32> to vector<8x1xf32>
    %cst_141 = arith.constant 3.200000e+01 : f32
    %285 = vector.broadcast %cst_141 : f32 to vector<8x1xf32>
    %286 = arith.divf %284, %285 : vector<8x1xf32>
    %287 = vector.broadcast %279 : vector<8x1xf32> to vector<8x32xf32>
    %288 = arith.subf %271, %287 : vector<8x32xf32>
    %cst_142 = arith.constant 9.99999996E-13 : f32
    %289 = vector.broadcast %cst_142 : f32 to vector<8x1xf32>
    %290 = arith.addf %286, %289 : vector<8x1xf32>
    %291 = math.rsqrt %290 : vector<8x1xf32>
    %292 = vector.broadcast %291 : vector<8x1xf32> to vector<8x32xf32>
    %293 = arith.mulf %288, %292 : vector<8x32xf32>
    %294 = vector.broadcast %273 : vector<1x32xf32> to vector<8x32xf32>
    %295 = arith.mulf %293, %294 : vector<8x32xf32>
    %296 = vector.broadcast %275 : vector<1x32xf32> to vector<8x32xf32>
    %297 = arith.addf %295, %296 : vector<8x32xf32>
    %c0_143 = arith.constant 0 : index
    %c0_144 = arith.constant 0 : index
    %298 = vector.load %arg17[%c0_143, %c0_144] : memref<32x32xf32, #tpu.memory_space<vmem>>, vector<32x32xf32>
    %cst_145 = arith.constant dense<0.000000e+00> : vector<8x32xf32>
    %299 = tpu.matmul %297, %298, %cst_145 {dimension_numbers = #tpu.dot_dimension_numbers<[1], [0], [0], [1], [0, 0, 1, 1], [], []>} : vector<8x32xf32>, vector<32x32xf32>, vector<8x32xf32> -> vector<8x32xf32>
    %c0_146 = arith.constant 0 : index
    %c0_147 = arith.constant 0 : index
    %300 = vector.load %arg18[%c0_146, %c0_147] : memref<1x32xf32, #tpu.memory_space<vmem>>, vector<1x32xf32>
    %301 = vector.broadcast %300 : vector<1x32xf32> to vector<8x32xf32>
    %302 = arith.addf %299, %301 : vector<8x32xf32>
    %cst_148 = arith.constant 0.000000e+00 : f32
    %303 = vector.broadcast %cst_148 : f32 to vector<8x32xf32>
    %304 = arith.maximumf %302, %303 : vector<8x32xf32>
    %c0_149 = arith.constant 0 : index
    %c0_150 = arith.constant 0 : index
    %c0_151 = arith.constant 0 : index
    %305 = vector.load %arg19[%c0_149, %c0_150, %c0_151] : memref<1x8x32xf32, #tpu.memory_space<vmem>>, vector<1x8x32xf32>
    %306 = vector.shape_cast %305 : vector<1x8x32xf32> to vector<8x32xf32>
    %307 = vector.shape_cast %304 : vector<8x32xf32> to vector<1x8x32xf32>
    tpu.vector_store %arg19[%c0_149, %c0_150, %c0_151], %307 {strides = array<i32>} : memref<1x8x32xf32, #tpu.memory_space<vmem>>, vector<1x8x32xf32>,
    return
  }
  func.func @transform_0(%arg0: i32) -> (i32, i32, i32) {
    %c0_i32 = arith.constant 0 : i32
    %c0_i32_0 = arith.constant 0 : i32
    %c0_i32_1 = arith.constant 0 : i32
    return %arg0, %c0_i32, %c0_i32_0 : i32, i32, i32
  }
  func.func @transform_1(%arg0: i32) -> (i32, i32) {
    %c0_i32 = arith.constant 0 : i32
    %c0_i32_0 = arith.constant 0 : i32
    %c0_i32_1 = arith.constant 0 : i32
    return %c0_i32, %c0_i32_0 : i32, i32
  }
  func.func @transform_2(%arg0: i32) -> (i32, i32) {
    %c0_i32 = arith.constant 0 : i32
    %c0_i32_0 = arith.constant 0 : i32
    %c0_i32_1 = arith.constant 0 : i32
    return %c0_i32, %c0_i32_0 : i32, i32
  }
  func.func @transform_3(%arg0: i32) -> (i32, i32) {
    %c0_i32 = arith.constant 0 : i32
    %c0_i32_0 = arith.constant 0 : i32
    %c0_i32_1 = arith.constant 0 : i32
    return %c0_i32, %c0_i32_0 : i32, i32
  }
  func.func @transform_4(%arg0: i32) -> (i32, i32, i32) {
    %c0_i32 = arith.constant 0 : i32
    %c0_i32_0 = arith.constant 0 : i32
    %c0_i32_1 = arith.constant 0 : i32
    %c0_i32_2 = arith.constant 0 : i32
    return %c0_i32, %c0_i32_0, %c0_i32_1 : i32, i32, i32
  }
  func.func @transform_5(%arg0: i32) -> (i32, i32, i32) {
    %c0_i32 = arith.constant 0 : i32
    %c0_i32_0 = arith.constant 0 : i32
    %c0_i32_1 = arith.constant 0 : i32
    %c0_i32_2 = arith.constant 0 : i32
    return %c0_i32, %c0_i32_0, %c0_i32_1 : i32, i32, i32
  }
  func.func @transform_6(%arg0: i32) -> (i32, i32, i32) {
    %c0_i32 = arith.constant 0 : i32
    %c0_i32_0 = arith.constant 0 : i32
    %c0_i32_1 = arith.constant 0 : i32
    %c0_i32_2 = arith.constant 0 : i32
    return %c0_i32, %c0_i32_0, %c0_i32_1 : i32, i32, i32
  }
  func.func @transform_7(%arg0: i32) -> (i32, i32, i32) {
    %c0_i32 = arith.constant 0 : i32
    %c0_i32_0 = arith.constant 0 : i32
    %c0_i32_1 = arith.constant 0 : i32
    %c0_i32_2 = arith.constant 0 : i32
    return %c0_i32, %c0_i32_0, %c0_i32_1 : i32, i32, i32
  }
  func.func @transform_8(%arg0: i32) -> (i32, i32, i32) {
    %c0_i32 = arith.constant 0 : i32
    %c0_i32_0 = arith.constant 0 : i32
    %c0_i32_1 = arith.constant 0 : i32
    %c0_i32_2 = arith.constant 0 : i32
    return %c0_i32, %c0_i32_0, %c0_i32_1 : i32, i32, i32
  }
  func.func @transform_9(%arg0: i32) -> (i32, i32, i32) {
    %c0_i32 = arith.constant 0 : i32
    %c0_i32_0 = arith.constant 0 : i32
    %c0_i32_1 = arith.constant 0 : i32
    %c0_i32_2 = arith.constant 0 : i32
    return %c0_i32, %c0_i32_0, %c0_i32_1 : i32, i32, i32
  }
  func.func @transform_10(%arg0: i32) -> (i32, i32, i32) {
    %c0_i32 = arith.constant 0 : i32
    %c0_i32_0 = arith.constant 0 : i32
    %c0_i32_1 = arith.constant 0 : i32
    %c0_i32_2 = arith.constant 0 : i32
    return %c0_i32, %c0_i32_0, %c0_i32_1 : i32, i32, i32
  }
  func.func @transform_11(%arg0: i32) -> (i32, i32, i32) {
    %c0_i32 = arith.constant 0 : i32
    %c0_i32_0 = arith.constant 0 : i32
    %c0_i32_1 = arith.constant 0 : i32
    %c0_i32_2 = arith.constant 0 : i32
    return %c0_i32, %c0_i32_0, %c0_i32_1 : i32, i32, i32
  }
  func.func @transform_12(%arg0: i32) -> (i32, i32, i32) {
    %c0_i32 = arith.constant 0 : i32
    %c0_i32_0 = arith.constant 0 : i32
    %c0_i32_1 = arith.constant 0 : i32
    %c0_i32_2 = arith.constant 0 : i32
    return %c0_i32, %c0_i32_0, %c0_i32_1 : i32, i32, i32
  }
  func.func @transform_13(%arg0: i32) -> (i32, i32, i32) {
    %c0_i32 = arith.constant 0 : i32
    %c0_i32_0 = arith.constant 0 : i32
    %c0_i32_1 = arith.constant 0 : i32
    %c0_i32_2 = arith.constant 0 : i32
    return %c0_i32, %c0_i32_0, %c0_i32_1 : i32, i32, i32
  }
  func.func @transform_14(%arg0: i32) -> (i32, i32, i32) {
    %c0_i32 = arith.constant 0 : i32
    %c0_i32_0 = arith.constant 0 : i32
    %c0_i32_1 = arith.constant 0 : i32
    %c0_i32_2 = arith.constant 0 : i32
    return %c0_i32, %c0_i32_0, %c0_i32_1 : i32, i32, i32
  }
  func.func @transform_15(%arg0: i32) -> (i32, i32, i32) {
    %c0_i32 = arith.constant 0 : i32
    %c0_i32_0 = arith.constant 0 : i32
    %c0_i32_1 = arith.constant 0 : i32
    %c0_i32_2 = arith.constant 0 : i32
    return %c0_i32, %c0_i32_0, %c0_i32_1 : i32, i32, i32
  }
  func.func @transform_16(%arg0: i32) -> (i32, i32) {
    %c0_i32 = arith.constant 0 : i32
    %c0_i32_0 = arith.constant 0 : i32
    %c0_i32_1 = arith.constant 0 : i32
    return %c0_i32, %c0_i32_0 : i32, i32
  }
  func.func @transform_17(%arg0: i32) -> (i32, i32) {
    %c0_i32 = arith.constant 0 : i32
    %c0_i32_0 = arith.constant 0 : i32
    %c0_i32_1 = arith.constant 0 : i32
    return %c0_i32, %c0_i32_0 : i32, i32
  }
  func.func @transform_18(%arg0: i32) -> (i32, i32, i32) {
    %c0_i32 = arith.constant 0 : i32
    %c0_i32_0 = arith.constant 0 : i32
    %c0_i32_1 = arith.constant 0 : i32
    return %arg0, %c0_i32, %c0_i32_0 : i32, i32, i32
  }
}

</mosaic_0001>

<llo_original>
// kernel: tpu_custom_call.1
$region0: #{tpu_custom_call.1}
  #allocation0 [shape = 'u32[]', space=smem, size = 0x4, offset = 0x4, fixed_abs, tag = 'smem constant byte address 0x4 - core index']
  #allocation1 [shape = 'u32[144,128]{1,0:T(1,128)}', space=vmem, size = 0x12000, scoped, tag = 'internal scratch']
  %s0 = inlined_call_operand.hbm [shape: f32[2,8,32], index: 0, kind: input, shape index: {}]
  %s1 = inlined_call_operand.hbm [shape: f32[8,32], index: 1, kind: input, shape index: {}]
  %s2 = inlined_call_operand.hbm [shape: f32[1,32], index: 2, kind: input, shape index: {}]
  %s3 = inlined_call_operand.hbm [shape: f32[1,32], index: 3, kind: input, shape index: {}]
  %s4 = inlined_call_operand.vmem [shape: f32[2,32,96], index: 4, kind: input, shape index: {}]
  %s5 = inlined_call_operand.vmem [shape: f32[2,1,96], index: 5, kind: input, shape index: {}]
  %s6 = inlined_call_operand.vmem [shape: f32[2,32,32], index: 6, kind: input, shape index: {}]
  %s7 = inlined_call_operand.hbm [shape: f32[2,1,32], index: 7, kind: input, shape index: {}]
  %s8 = inlined_call_operand.hbm [shape: f32[2,1,32], index: 8, kind: input, shape index: {}]
  %s9 = inlined_call_operand.hbm [shape: f32[2,1,32], index: 9, kind: input, shape index: {}]
  %s10 = inlined_call_operand.vmem [shape: f32[2,32,64], index: 10, kind: input, shape index: {}]
  %s11 = inlined_call_operand.vmem [shape: f32[2,1,64], index: 11, kind: input, shape index: {}]
  %s12 = inlined_call_operand.vmem [shape: f32[2,64,32], index: 12, kind: input, shape index: {}]
  %s13 = inlined_call_operand.vmem [shape: f32[2,1,32], index: 13, kind: input, shape index: {}]
  %s14 = inlined_call_operand.vmem [shape: f32[2,1,32], index: 14, kind: input, shape index: {}]
  %s15 = inlined_call_operand.vmem [shape: f32[2,1,32], index: 15, kind: input, shape index: {}]
  %s16 = inlined_call_operand.vmem [shape: f32[32,32], index: 16, kind: input, shape index: {}]
  %s17 = inlined_call_operand.vmem [shape: f32[1,32], index: 17, kind: input, shape index: {}]
  %s18 = inlined_call_operand.hbm [shape: f32[2,8,32], index: 18, kind: output, shape index: {}]
  %s19 = sld [smem:[#allocation0]]
  $region133: #{tpu_custom_call.1} parent=0
    _
  %s21 = ssub.s32 1, %s19
  %s22 = scalar_select 0, %s21, %s19
  $region1: #{tpu_custom_call.1} parent=0
    #allocation2 [shape = 'u8[8192]{0}', space=vmem, size = 0x2000, scoped, tag = 'input window, operand 0']
    #allocation3 [shape = 's32[2]{0}', space=sflag, size = 0x8, scoped, tag = 'scoped memory for tpu_custom_call.1']
    #allocation4 [shape = 's32[2]{0}', space=sflag, size = 0x8, scoped, tag = 'scoped memory for tpu_custom_call.1']
    #allocation5 [shape = 'u8[4096]{0}', space=vmem, size = 0x1000, scoped, tag = 'input window, operand 1, single buffered']
    #allocation6 [shape = 's32[1]{0}', space=sflag, size = 0x4, scoped, tag = 'scoped memory for tpu_custom_call.1']
    #allocation7 [shape = 'u8[512]{0}', space=vmem, size = 0x400, scoped, tag = 'input window, operand 2, single buffered']
    #allocation8 [shape = 'u8[512]{0}', space=vmem, size = 0x400, scoped, tag = 'input window, operand 3, single buffered']
    #allocation9 [shape = 's32[1]{0}', space=sflag, size = 0x4, scoped, tag = 'scoped memory for tpu_custom_call.1']
    #allocation10 [shape = 'u8[1024]{0}', space=vmem, size = 0x400, scoped, tag = 'input window, operand 7, single buffered']
    #allocation11 [shape = 'u8[1024]{0}', space=vmem, size = 0x400, scoped, tag = 'input window, operand 8, single buffered']
    #allocation12 [shape = 's32[1]{0}', space=sflag, size = 0x4, scoped, tag = 'scoped memory for tpu_custom_call.1']
    #allocation13 [shape = 'u8[1024]{0}', space=vmem, size = 0x400, scoped, tag = 'input window, operand 9, single buffered']
    #allocation14 [shape = 'u8[8192]{0}', space=vmem, size = 0x2000, scoped, tag = 'output window, operand 0']
    %23 = vsyncpa [#allocation3], 0
    %s24 = scalar_lea.sflag [#allocation3], 1
    %25 = vsyncpa %s24, 0
    %26 = vsyncpa [#allocation6], 0
    %27 = vsyncpa [#allocation9], 0
    %28 = vsyncpa [#allocation12], 0
    %29 = vsyncpa [#allocation4], 0
    %s30 = scalar_lea.sflag [#allocation4], 1
    %31 = vsyncpa %s30, 0
    loop: start=0, step=1, limit=4
    $region2: #{tpu_custom_call.1} parent=1 // loop_pre_header
      _
    $region3: #{tpu_custom_call.1} parent=1 // loop_header
      %s33 = sphi 0, %s37
      %p34 = scmp.ge.s32.totalorder %s33, 4
      %s43 = sphi 0, %s45
      %s46 = sphi 0, %s43
      %s47 = sphi 0, %s46
      %s63 = sphi 0, %s47
      %s67 = sphi 0, %s67
      %s69 = sphi 0, %s67
      %s70 = sphi 0, %s69
      %s84 = sphi 0, %s70
      %s88 = sphi 0, %s88
      %s90 = sphi 0, %s88
      %s91 = sphi 0, %s90
      %s105 = sphi 0, %s91
      %s109 = sphi 0, %s109
      %s111 = sphi 0, %s109
      %s112 = sphi 0, %s111
      %s126 = sphi 0, %s112
      %s130 = sphi 0, %s130
      %s132 = sphi 0, %s130
      %s133 = sphi 0, %s132
      %s147 = sphi 0, %s133
      %s151 = sphi 0, %s151
      %s153 = sphi 0, %s151
      %s154 = sphi 0, %s153
      %s168 = sphi 0, %s154
      %s172 = sphi 0, %s172
      %s174 = sphi 0, %s172
      %s175 = sphi 0, %s174
      %s189 = sphi 0, %s175
      %s193 = sphi 0, %s193
      %s195 = sphi 0, %s193
      %s196 = sphi 0, %s195
      %s210 = sphi 0, %s196
      %s214 = sphi 0, %s214
      %s216 = sphi 0, %s214
      %s217 = sphi 0, %s216
      %s231 = sphi 0, %s217
      %s235 = sphi 0, %s235
      %s237 = sphi 0, %s235
      %s238 = sphi 0, %s237
      %s252 = sphi 0, %s238
      %s256 = sphi 0, %s256
      %s258 = sphi 0, %s256
      %s259 = sphi 0, %s258
      %s273 = sphi 0, %s259
      %s277 = sphi 0, %s277
      %s279 = sphi 0, %s277
      %s280 = sphi 0, %s279
      %s294 = sphi 0, %s280
      %s298 = sphi 0, %s298
      %s300 = sphi 0, %s298
      %s301 = sphi 0, %s300
      %s315 = sphi 0, %s301
      %s319 = sphi 0, %s319
      %s321 = sphi 0, %s319
      %s322 = sphi 0, %s321
      %s336 = sphi 0, %s322
      %s340 = sphi 0, %s340
      %s342 = sphi 0, %s340
      %s343 = sphi 0, %s342
      %s357 = sphi 0, %s343
      %s361 = sphi 0, %s361
      %s363 = sphi 0, %s361
      %s364 = sphi 0, %s363
      %s378 = sphi 0, %s364
      %s382 = sphi 0, %s382
      %s384 = sphi 0, %s382
      %s385 = sphi 0, %s384
      %s399 = sphi 0, %s385
      %s403 = sphi 0, %s403
      %s405 = sphi 0, %s403
      %s406 = sphi 0, %s405
      %s420 = sphi 0, %s406
      %s426 = sphi 0, %s428
      %s429 = sphi 0, %s426
      %s430 = sphi 0, %s429
      %s446 = sphi 0, %s430
    $region4: #{tpu_custom_call.1} parent=1 // loop_header_branch
      %36 = sbr.rel (%p34) target = $region8
    $region5: #{tpu_custom_call.1} parent=1 // loop_body
      %s38 = ssub.s32 %s33, 1
      %s39 = ssub.s32 %s33, 2
      %s40 = sadd.s32 %s33, 1
      %s41 = ssub.s32 %s33, %s40
      %p42 = scmp.eq.s32.totalorder %s41, 0
      %s44 = sadd.s32 %s43, 1
      %s45 = scalar_select %p42, %s43, %s44
      %p48 = pneg %p42
      %p49 = scmp.eq.s32.totalorder %s33, 1
      %p50 = por %p48, %p49
      %p51 = scmp.ne.s32.totalorder %s43, %s46
      %p52 = scmp.eq.s32.totalorder %s33, 0
      %p53 = por %p51, %p52
      %p54 = scmp.ne.s32.totalorder %s43, %s46
      %p55 = scmp.eq.s32.totalorder %s38, 1
      %p56 = por %p54, %p55
      %p57 = scmp.ne.s32.totalorder %s46, %s47
      %p58 = scmp.eq.s32.totalorder %s38, 0
      %p59 = por %p57, %p58
      %p60 = scmp.ne.s32.totalorder %s46, %s47
      %p61 = scmp.eq.s32.totalorder %s39, 1
      %p62 = por %p60, %p61
      %p64 = scmp.ne.s32.totalorder %s47, %s63
      %p65 = scmp.eq.s32.totalorder %s39, 0
      %p66 = por %p64, %p65
      %s68 = sadd.s32 %s67, 1
      %p71 = scmp.eq.s32.totalorder %s33, 1
      %p72 = scmp.ne.s32.totalorder %s67, %s69
      %p73 = scmp.eq.s32.totalorder %s33, 0
      %p74 = por %p72, %p73
      %p75 = scmp.ne.s32.totalorder %s67, %s69
      %p76 = scmp.eq.s32.totalorder %s38, 1
      %p77 = por %p75, %p76
      %p78 = scmp.ne.s32.totalorder %s69, %s70
      %p79 = scmp.eq.s32.totalorder %s38, 0
      %p80 = por %p78, %p79
      %p81 = scmp.ne.s32.totalorder %s69, %s70
      %p82 = scmp.eq.s32.totalorder %s39, 1
      %p83 = por %p81, %p82
      %p85 = scmp.ne.s32.totalorder %s70, %s84
      %p86 = scmp.eq.s32.totalorder %s39, 0
      %p87 = por %p85, %p86
      %s89 = sadd.s32 %s88, 1
      %p92 = scmp.eq.s32.totalorder %s33, 1
      %p93 = scmp.ne.s32.totalorder %s88, %s90
      %p94 = scmp.eq.s32.totalorder %s33, 0
      %p95 = por %p93, %p94
      %p96 = scmp.ne.s32.totalorder %s88, %s90
      %p97 = scmp.eq.s32.totalorder %s38, 1
      %p98 = por %p96, %p97
      %p99 = scmp.ne.s32.totalorder %s90, %s91
      %p100 = scmp.eq.s32.totalorder %s38, 0
      %p101 = por %p99, %p100
      %p102 = scmp.ne.s32.totalorder %s90, %s91
      %p103 = scmp.eq.s32.totalorder %s39, 1
      %p104 = por %p102, %p103
      %p106 = scmp.ne.s32.totalorder %s91, %s105
      %p107 = scmp.eq.s32.totalorder %s39, 0
      %p108 = por %p106, %p107
      %s110 = sadd.s32 %s109, 1
      %p113 = scmp.eq.s32.totalorder %s33, 1
      %p114 = scmp.ne.s32.totalorder %s109, %s111
      %p115 = scmp.eq.s32.totalorder %s33, 0
      %p116 = por %p114, %p115
      %p117 = scmp.ne.s32.totalorder %s109, %s111
      %p118 = scmp.eq.s32.totalorder %s38, 1
      %p119 = por %p117, %p118
      %p120 = scmp.ne.s32.totalorder %s111, %s112
      %p121 = scmp.eq.s32.totalorder %s38, 0
      %p122 = por %p120, %p121
      %p123 = scmp.ne.s32.totalorder %s111, %s112
      %p124 = scmp.eq.s32.totalorder %s39, 1
      %p125 = por %p123, %p124
      %p127 = scmp.ne.s32.totalorder %s112, %s126
      %p128 = scmp.eq.s32.totalorder %s39, 0
      %p129 = por %p127, %p128
      %s131 = sadd.s32 %s130, 1
      %p134 = scmp.eq.s32.totalorder %s33, 1
      %p135 = scmp.ne.s32.totalorder %s130, %s132
      %p136 = scmp.eq.s32.totalorder %s33, 0
      %p137 = por %p135, %p136
      %p138 = scmp.ne.s32.totalorder %s130, %s132
      %p139 = scmp.eq.s32.totalorder %s38, 1
      %p140 = por %p138, %p139
      %p141 = scmp.ne.s32.totalorder %s132, %s133
      %p142 = scmp.eq.s32.totalorder %s38, 0
      %p143 = por %p141, %p142
      %p144 = scmp.ne.s32.totalorder %s132, %s133
      %p145 = scmp.eq.s32.totalorder %s39, 1
      %p146 = por %p144, %p145
      %p148 = scmp.ne.s32.totalorder %s133, %s147
      %p149 = scmp.eq.s32.totalorder %s39, 0
      %p150 = por %p148, %p149
      %s152 = sadd.s32 %s151, 1
      %p155 = scmp.eq.s32.totalorder %s33, 1
      %p156 = scmp.ne.s32.totalorder %s151, %s153
      %p157 = scmp.eq.s32.totalorder %s33, 0
      %p158 = por %p156, %p157
      %p159 = scmp.ne.s32.totalorder %s151, %s153
      %p160 = scmp.eq.s32.totalorder %s38, 1
      %p161 = por %p159, %p160
      %p162 = scmp.ne.s32.totalorder %s153, %s154
      %p163 = scmp.eq.s32.totalorder %s38, 0
      %p164 = por %p162, %p163
      %p165 = scmp.ne.s32.totalorder %s153, %s154
      %p166 = scmp.eq.s32.totalorder %s39, 1
      %p167 = por %p165, %p166
      %p169 = scmp.ne.s32.totalorder %s154, %s168
      %p170 = scmp.eq.s32.totalorder %s39, 0
      %p171 = por %p169, %p170
      %s173 = sadd.s32 %s172, 1
      %p176 = scmp.eq.s32.totalorder %s33, 1
      %p177 = scmp.ne.s32.totalorder %s172, %s174
      %p178 = scmp.eq.s32.totalorder %s33, 0
      %p179 = por %p177, %p178
      %p180 = scmp.ne.s32.totalorder %s172, %s174
      %p181 = scmp.eq.s32.totalorder %s38, 1
      %p182 = por %p180, %p181
      %p183 = scmp.ne.s32.totalorder %s174, %s175
      %p184 = scmp.eq.s32.totalorder %s38, 0
      %p185 = por %p183, %p184
      %p186 = scmp.ne.s32.totalorder %s174, %s175
      %p187 = scmp.eq.s32.totalorder %s39, 1
      %p188 = por %p186, %p187
      %p190 = scmp.ne.s32.totalorder %s175, %s189
      %p191 = scmp.eq.s32.totalorder %s39, 0
      %p192 = por %p190, %p191
      %s194 = sadd.s32 %s193, 1
      %p197 = scmp.eq.s32.totalorder %s33, 1
      %p198 = scmp.ne.s32.totalorder %s193, %s195
      %p199 = scmp.eq.s32.totalorder %s33, 0
      %p200 = por %p198, %p199
      %p201 = scmp.ne.s32.totalorder %s193, %s195
      %p202 = scmp.eq.s32.totalorder %s38, 1
      %p203 = por %p201, %p202
      %p204 = scmp.ne.s32.totalorder %s195, %s196
      %p205 = scmp.eq.s32.totalorder %s38, 0
      %p206 = por %p204, %p205
      %p207 = scmp.ne.s32.totalorder %s195, %s196
      %p208 = scmp.eq.s32.totalorder %s39, 1
      %p209 = por %p207, %p208
      %p211 = scmp.ne.s32.totalorder %s196, %s210
      %p212 = scmp.eq.s32.totalorder %s39, 0
      %p213 = por %p211, %p212
      %s215 = sadd.s32 %s214, 1
      %p218 = scmp.eq.s32.totalorder %s33, 1
      %p219 = scmp.ne.s32.totalorder %s214, %s216
      %p220 = scmp.eq.s32.totalorder %s33, 0
      %p221 = por %p219, %p220
      %p222 = scmp.ne.s32.totalorder %s214, %s216
      %p223 = scmp.eq.s32.totalorder %s38, 1
      %p224 = por %p222, %p223
      %p225 = scmp.ne.s32.totalorder %s216, %s217
      %p226 = scmp.eq.s32.totalorder %s38, 0
      %p227 = por %p225, %p226
      %p228 = scmp.ne.s32.totalorder %s216, %s217
      %p229 = scmp.eq.s32.totalorder %s39, 1
      %p230 = por %p228, %p229
      %p232 = scmp.ne.s32.totalorder %s217, %s231
      %p233 = scmp.eq.s32.totalorder %s39, 0
      %p234 = por %p232, %p233
      %s236 = sadd.s32 %s235, 1
      %p239 = scmp.eq.s32.totalorder %s33, 1
      %p240 = scmp.ne.s32.totalorder %s235, %s237
      %p241 = scmp.eq.s32.totalorder %s33, 0
      %p242 = por %p240, %p241
      %p243 = scmp.ne.s32.totalorder %s235, %s237
      %p244 = scmp.eq.s32.totalorder %s38, 1
      %p245 = por %p243, %p244
      %p246 = scmp.ne.s32.totalorder %s237, %s238
      %p247 = scmp.eq.s32.totalorder %s38, 0
      %p248 = por %p246, %p247
      %p249 = scmp.ne.s32.totalorder %s237, %s238
      %p250 = scmp.eq.s32.totalorder %s39, 1
      %p251 = por %p249, %p250
      %p253 = scmp.ne.s32.totalorder %s238, %s252
      %p254 = scmp.eq.s32.totalorder %s39, 0
      %p255 = por %p253, %p254
      %s257 = sadd.s32 %s256, 1
      %p260 = scmp.eq.s32.totalorder %s33, 1
      %p261 = scmp.ne.s32.totalorder %s256, %s258
      %p262 = scmp.eq.s32.totalorder %s33, 0
      %p263 = por %p261, %p262
      %p264 = scmp.ne.s32.totalorder %s256, %s258
      %p265 = scmp.eq.s32.totalorder %s38, 1
      %p266 = por %p264, %p265
      %p267 = scmp.ne.s32.totalorder %s258, %s259
      %p268 = scmp.eq.s32.totalorder %s38, 0
      %p269 = por %p267, %p268
      %p270 = scmp.ne.s32.totalorder %s258, %s259
      %p271 = scmp.eq.s32.totalorder %s39, 1
      %p272 = por %p270, %p271
      %p274 = scmp.ne.s32.totalorder %s259, %s273
      %p275 = scmp.eq.s32.totalorder %s39, 0
      %p276 = por %p274, %p275
      %s278 = sadd.s32 %s277, 1
      %p281 = scmp.eq.s32.totalorder %s33, 1
      %p282 = scmp.ne.s32.totalorder %s277, %s279
      %p283 = scmp.eq.s32.totalorder %s33, 0
      %p284 = por %p282, %p283
      %p285 = scmp.ne.s32.totalorder %s277, %s279
      %p286 = scmp.eq.s32.totalorder %s38, 1
      %p287 = por %p285, %p286
      %p288 = scmp.ne.s32.totalorder %s279, %s280
      %p289 = scmp.eq.s32.totalorder %s38, 0
      %p290 = por %p288, %p289
      %p291 = scmp.ne.s32.totalorder %s279, %s280
      %p292 = scmp.eq.s32.totalorder %s39, 1
      %p293 = por %p291, %p292
      %p295 = scmp.ne.s32.totalorder %s280, %s294
      %p296 = scmp.eq.s32.totalorder %s39, 0
      %p297 = por %p295, %p296
      %s299 = sadd.s32 %s298, 1
      %p302 = scmp.eq.s32.totalorder %s33, 1
      %p303 = scmp.ne.s32.totalorder %s298, %s300
      %p304 = scmp.eq.s32.totalorder %s33, 0
      %p305 = por %p303, %p304
      %p306 = scmp.ne.s32.totalorder %s298, %s300
      %p307 = scmp.eq.s32.totalorder %s38, 1
      %p308 = por %p306, %p307
      %p309 = scmp.ne.s32.totalorder %s300, %s301
      %p310 = scmp.eq.s32.totalorder %s38, 0
      %p311 = por %p309, %p310
      %p312 = scmp.ne.s32.totalorder %s300, %s301
      %p313 = scmp.eq.s32.totalorder %s39, 1
      %p314 = por %p312, %p313
      %p316 = scmp.ne.s32.totalorder %s301, %s315
      %p317 = scmp.eq.s32.totalorder %s39, 0
      %p318 = por %p316, %p317
      %s320 = sadd.s32 %s319, 1
      %p323 = scmp.eq.s32.totalorder %s33, 1
      %p324 = scmp.ne.s32.totalorder %s319, %s321
      %p325 = scmp.eq.s32.totalorder %s33, 0
      %p326 = por %p324, %p325
      %p327 = scmp.ne.s32.totalorder %s319, %s321
      %p328 = scmp.eq.s32.totalorder %s38, 1
      %p329 = por %p327, %p328
      %p330 = scmp.ne.s32.totalorder %s321, %s322
      %p331 = scmp.eq.s32.totalorder %s38, 0
      %p332 = por %p330, %p331
      %p333 = scmp.ne.s32.totalorder %s321, %s322
      %p334 = scmp.eq.s32.totalorder %s39, 1
      %p335 = por %p333, %p334
      %p337 = scmp.ne.s32.totalorder %s322, %s336
      %p338 = scmp.eq.s32.totalorder %s39, 0
      %p339 = por %p337, %p338
      %s341 = sadd.s32 %s340, 1
      %p344 = scmp.eq.s32.totalorder %s33, 1
      %p345 = scmp.ne.s32.totalorder %s340, %s342
      %p346 = scmp.eq.s32.totalorder %s33, 0
      %p347 = por %p345, %p346
      %p348 = scmp.ne.s32.totalorder %s340, %s342
      %p349 = scmp.eq.s32.totalorder %s38, 1
      %p350 = por %p348, %p349
      %p351 = scmp.ne.s32.totalorder %s342, %s343
      %p352 = scmp.eq.s32.totalorder %s38, 0
      %p353 = por %p351, %p352
      %p354 = scmp.ne.s32.totalorder %s342, %s343
      %p355 = scmp.eq.s32.totalorder %s39, 1
      %p356 = por %p354, %p355
      %p358 = scmp.ne.s32.totalorder %s343, %s357
      %p359 = scmp.eq.s32.totalorder %s39, 0
      %p360 = por %p358, %p359
      %s362 = sadd.s32 %s361, 1
      %p365 = scmp.eq.s32.totalorder %s33, 1
      %p366 = scmp.ne.s32.totalorder %s361, %s363
      %p367 = scmp.eq.s32.totalorder %s33, 0
      %p368 = por %p366, %p367
      %p369 = scmp.ne.s32.totalorder %s361, %s363
      %p370 = scmp.eq.s32.totalorder %s38, 1
      %p371 = por %p369, %p370
      %p372 = scmp.ne.s32.totalorder %s363, %s364
      %p373 = scmp.eq.s32.totalorder %s38, 0
      %p374 = por %p372, %p373
      %p375 = scmp.ne.s32.totalorder %s363, %s364
      %p376 = scmp.eq.s32.totalorder %s39, 1
      %p377 = por %p375, %p376
      %p379 = scmp.ne.s32.totalorder %s364, %s378
      %p380 = scmp.eq.s32.totalorder %s39, 0
      %p381 = por %p379, %p380
      %s383 = sadd.s32 %s382, 1
      %p386 = scmp.eq.s32.totalorder %s33, 1
      %p387 = scmp.ne.s32.totalorder %s382, %s384
      %p388 = scmp.eq.s32.totalorder %s33, 0
      %p389 = por %p387, %p388
      %p390 = scmp.ne.s32.totalorder %s382, %s384
      %p391 = scmp.eq.s32.totalorder %s38, 1
      %p392 = por %p390, %p391
      %p393 = scmp.ne.s32.totalorder %s384, %s385
      %p394 = scmp.eq.s32.totalorder %s38, 0
      %p395 = por %p393, %p394
      %p396 = scmp.ne.s32.totalorder %s384, %s385
      %p397 = scmp.eq.s32.totalorder %s39, 1
      %p398 = por %p396, %p397
      %p400 = scmp.ne.s32.totalorder %s385, %s399
      %p401 = scmp.eq.s32.totalorder %s39, 0
      %p402 = por %p400, %p401
      %s404 = sadd.s32 %s403, 1
      %p407 = scmp.eq.s32.totalorder %s33, 1
      %p408 = scmp.ne.s32.totalorder %s403, %s405
      %p409 = scmp.eq.s32.totalorder %s33, 0
      %p410 = por %p408, %p409
      %p411 = scmp.ne.s32.totalorder %s403, %s405
      %p412 = scmp.eq.s32.totalorder %s38, 1
      %p413 = por %p411, %p412
      %p414 = scmp.ne.s32.totalorder %s405, %s406
      %p415 = scmp.eq.s32.totalorder %s38, 0
      %p416 = por %p414, %p415
      %p417 = scmp.ne.s32.totalorder %s405, %s406
      %p418 = scmp.eq.s32.totalorder %s39, 1
      %p419 = por %p417, %p418
      %p421 = scmp.ne.s32.totalorder %s406, %s420
      %p422 = scmp.eq.s32.totalorder %s39, 0
      %p423 = por %p421, %p422
      %s424 = ssub.s32 %s33, %s40
      %p425 = scmp.eq.s32.totalorder %s424, 0
      %s427 = sadd.s32 %s426, 1
      %s428 = scalar_select %p425, %s426, %s427
      %p431 = pneg %p425
      %p432 = scmp.eq.s32.totalorder %s33, 1
      %p433 = por %p431, %p432
      %p434 = scmp.ne.s32.totalorder %s426, %s429
      %p435 = scmp.eq.s32.totalorder %s33, 0
      %p436 = por %p434, %p435
      %p437 = scmp.ne.s32.totalorder %s426, %s429
      %p438 = scmp.eq.s32.totalorder %s38, 1
      %p439 = por %p437, %p438
      %p440 = scmp.ne.s32.totalorder %s429, %s430
      %p441 = scmp.eq.s32.totalorder %s38, 0
      %p442 = por %p440, %p441
      %p443 = scmp.ne.s32.totalorder %s429, %s430
      %p444 = scmp.eq.s32.totalorder %s39, 1
      %p445 = por %p443, %p444
      %p447 = scmp.ne.s32.totalorder %s430, %s446
      %p448 = scmp.eq.s32.totalorder %s39, 0
      %p449 = por %p447, %p448
      %p450 = scmp.le.s32.totalorder 1, %s33
      %p451 = scmp.lt.s32.totalorder %s33, 3
      %p452 = pnand %p450, %p451
      %p453 = pneg %p452
      // Predicated region
      $region9: #{tpu_custom_call.1} parent=5 // pred_check
        _
      $region10: #{tpu_custom_call.1} parent=5 // pred_check_branch
        %455 = sbr.rel (%p452) target = $region12
      $region11: #{tpu_custom_call.1} parent=5 // pred_region
        %s456 = ssub.s32 %s33, 1
        // Predicated region
        $region13: #{tpu_custom_call.1} parent=11 // pred_check
          %p457 = pneg %p80
        $region14: #{tpu_custom_call.1} parent=11 // pred_check_branch
          %459 = sbr.rel (%p457) target = $region16
        $region15: #{tpu_custom_call.1} parent=11 // pred_region
          %s461 = ssub.s32 128, 128
          %462 = vsyncadd [#allocation6], %s461
          %s464 = sshll.u32 [#allocation5], 4
          %s465 = int_to_ptr.vmem [resolvable:$true] %s464
          %467 = dma.hbm_to_vmem [thread:$0]  %s1, 128, %s465, [#allocation6]
        $region16: #{tpu_custom_call.1} parent=11 // pred_fallthru
          _
        // Predicated region
        $region17: #{tpu_custom_call.1} parent=11 // pred_check
          %p468 = pneg %p101
        $region18: #{tpu_custom_call.1} parent=11 // pred_check_branch
          %470 = sbr.rel (%p468) target = $region20
        $region19: #{tpu_custom_call.1} parent=11 // pred_region
          %s472 = ssub.s32 16, 16
          %473 = vsyncadd [#allocation6], %s472
          %s475 = sshll.u32 [#allocation7], 4
          %s476 = int_to_ptr.vmem [resolvable:$true] %s475
          %478 = dma.hbm_to_vmem [thread:$0]  %s2, 16, %s476, [#allocation6]
        $region20: #{tpu_custom_call.1} parent=11 // pred_fallthru
          _
        // Predicated region
        $region21: #{tpu_custom_call.1} parent=11 // pred_check
          %p479 = pneg %p122
        $region22: #{tpu_custom_call.1} parent=11 // pred_check_branch
          %481 = sbr.rel (%p479) target = $region24
        $region23: #{tpu_custom_call.1} parent=11 // pred_region
          %s483 = ssub.s32 16, 16
          %484 = vsyncadd [#allocation9], %s483
          %s486 = sshll.u32 [#allocation8], 4
          %s487 = int_to_ptr.vmem [resolvable:$true] %s486
          %489 = dma.hbm_to_vmem [thread:$0]  %s3, 16, %s487, [#allocation9]
        $region24: #{tpu_custom_call.1} parent=11 // pred_fallthru
          _
        // Predicated region
        $region25: #{tpu_custom_call.1} parent=11 // pred_check
          %p490 = pneg %p143
        $region26: #{tpu_custom_call.1} parent=11 // pred_check_branch
          %492 = sbr.rel (%p490) target = $region28
        $region27: #{tpu_custom_call.1} parent=11 // pred_region
          _
        $region28: #{tpu_custom_call.1} parent=11 // pred_fallthru
          _
        // Predicated region
        $region29: #{tpu_custom_call.1} parent=11 // pred_check
          %p493 = pneg %p164
        $region30: #{tpu_custom_call.1} parent=11 // pred_check_branch
          %495 = sbr.rel (%p493) target = $region32
        $region31: #{tpu_custom_call.1} parent=11 // pred_region
          _
        $region32: #{tpu_custom_call.1} parent=11 // pred_fallthru
          _
        // Predicated region
        $region33: #{tpu_custom_call.1} parent=11 // pred_check
          %p496 = pneg %p185
        $region34: #{tpu_custom_call.1} parent=11 // pred_check_branch
          %498 = sbr.rel (%p496) target = $region36
        $region35: #{tpu_custom_call.1} parent=11 // pred_region
          _
        $region36: #{tpu_custom_call.1} parent=11 // pred_fallthru
          _
        // Predicated region
        $region37: #{tpu_custom_call.1} parent=11 // pred_check
          %p499 = pneg %p206
        $region38: #{tpu_custom_call.1} parent=11 // pred_check_branch
          %501 = sbr.rel (%p499) target = $region40
        $region39: #{tpu_custom_call.1} parent=11 // pred_region
          %s503 = ssub.s32 32, 32
          %504 = vsyncadd [#allocation9], %s503
          %s505 = sshll.u32 [#allocation10], 4
          %s506 = int_to_ptr.vmem [resolvable:$true] %s505
          %511 = dma.hbm_to_vmem [thread:$0]  %s7, 32, %s506, [#allocation9], 16, 16, 1
        $region40: #{tpu_custom_call.1} parent=11 // pred_fallthru
          _
        // Predicated region
        $region41: #{tpu_custom_call.1} parent=11 // pred_check
          %p512 = pneg %p227
        $region42: #{tpu_custom_call.1} parent=11 // pred_check_branch
          %514 = sbr.rel (%p512) target = $region44
        $region43: #{tpu_custom_call.1} parent=11 // pred_region
          %s516 = ssub.s32 32, 32
          %517 = vsyncadd [#allocation12], %s516
          %s518 = sshll.u32 [#allocation11], 4
          %s519 = int_to_ptr.vmem [resolvable:$true] %s518
          %524 = dma.hbm_to_vmem [thread:$0]  %s8, 32, %s519, [#allocation12], 16, 16, 1
        $region44: #{tpu_custom_call.1} parent=11 // pred_fallthru
          _
        // Predicated region
        $region45: #{tpu_custom_call.1} parent=11 // pred_check
          %p525 = pneg %p248
        $region46: #{tpu_custom_call.1} parent=11 // pred_check_branch
          %527 = sbr.rel (%p525) target = $region48
        $region47: #{tpu_custom_call.1} parent=11 // pred_region
          %s529 = ssub.s32 32, 32
          %530 = vsyncadd [#allocation12], %s529
          %s531 = sshll.u32 [#allocation13], 4
          %s532 = int_to_ptr.vmem [resolvable:$true] %s531
          %537 = dma.hbm_to_vmem [thread:$0]  %s9, 32, %s532, [#allocation12], 16, 16, 1
        $region48: #{tpu_custom_call.1} parent=11 // pred_fallthru
          _
        // Predicated region
        $region49: #{tpu_custom_call.1} parent=11 // pred_check
          %p538 = pneg %p269
        $region50: #{tpu_custom_call.1} parent=11 // pred_check_branch
          %540 = sbr.rel (%p538) target = $region52
        $region51: #{tpu_custom_call.1} parent=11 // pred_region
          _
        $region52: #{tpu_custom_call.1} parent=11 // pred_fallthru
          _
        // Predicated region
        $region53: #{tpu_custom_call.1} parent=11 // pred_check
          %p541 = pneg %p290
        $region54: #{tpu_custom_call.1} parent=11 // pred_check_branch
          %543 = sbr.rel (%p541) target = $region56
        $region55: #{tpu_custom_call.1} parent=11 // pred_region
          _
        $region56: #{tpu_custom_call.1} parent=11 // pred_fallthru
          _
        // Predicated region
        $region57: #{tpu_custom_call.1} parent=11 // pred_check
          %p544 = pneg %p311
        $region58: #{tpu_custom_call.1} parent=11 // pred_check_branch
          %546 = sbr.rel (%p544) target = $region60
        $region59: #{tpu_custom_call.1} parent=11 // pred_region
          _
        $region60: #{tpu_custom_call.1} parent=11 // pred_fallthru
          _
        // Predicated region
        $region61: #{tpu_custom_call.1} parent=11 // pred_check
          %p547 = pneg %p332
        $region62: #{tpu_custom_call.1} parent=11 // pred_check_branch
          %549 = sbr.rel (%p547) target = $region64
        $region63: #{tpu_custom_call.1} parent=11 // pred_region
          _
        $region64: #{tpu_custom_call.1} parent=11 // pred_fallthru
          _
        // Predicated region
        $region65: #{tpu_custom_call.1} parent=11 // pred_check
          %p550 = pneg %p353
        $region66: #{tpu_custom_call.1} parent=11 // pred_check_branch
          %552 = sbr.rel (%p550) target = $region68
        $region67: #{tpu_custom_call.1} parent=11 // pred_region
          _
        $region68: #{tpu_custom_call.1} parent=11 // pred_fallthru
          _
        // Predicated region
        $region69: #{tpu_custom_call.1} parent=11 // pred_check
          %p553 = pneg %p374
        $region70: #{tpu_custom_call.1} parent=11 // pred_check_branch
          %555 = sbr.rel (%p553) target = $region72
        $region71: #{tpu_custom_call.1} parent=11 // pred_region
          _
        $region72: #{tpu_custom_call.1} parent=11 // pred_fallthru
          _
        // Predicated region
        $region73: #{tpu_custom_call.1} parent=11 // pred_check
          %p556 = pneg %p395
        $region74: #{tpu_custom_call.1} parent=11 // pred_check_branch
          %558 = sbr.rel (%p556) target = $region76
        $region75: #{tpu_custom_call.1} parent=11 // pred_region
          _
        $region76: #{tpu_custom_call.1} parent=11 // pred_fallthru
          _
        // Predicated region
        $region77: #{tpu_custom_call.1} parent=11 // pred_check
          %p559 = pneg %p416
        $region78: #{tpu_custom_call.1} parent=11 // pred_check_branch
          %561 = sbr.rel (%p559) target = $region80
        $region79: #{tpu_custom_call.1} parent=11 // pred_region
          _
        $region80: #{tpu_custom_call.1} parent=11 // pred_fallthru
          _
      $region12: #{tpu_custom_call.1} parent=5 // pred_fallthru
        _
      %p562 = scmp.lt.s32.totalorder %s33, 2
      // Predicated region
      $region81: #{tpu_custom_call.1} parent=5 // pred_check
        %p563 = pneg %p562
      $region82: #{tpu_custom_call.1} parent=5 // pred_check_branch
        %565 = sbr.rel (%p563) target = $region84
      $region83: #{tpu_custom_call.1} parent=5 // pred_region
        // Predicated region
        $region85: #{tpu_custom_call.1} parent=83 // pred_check
          %p566 = pneg %p53
        $region86: #{tpu_custom_call.1} parent=83 // pred_check_branch
          %568 = sbr.rel (%p566) target = $region88
        $region87: #{tpu_custom_call.1} parent=83 // pred_region
          %s569 = sand.u32 %s43, 1
          %s570 = scalar_lea.sflag [#allocation3], %s569
          %s571 = sand.u32 %s43, 1
          %s572 = smul.addr %s571, 8
          %s573 = scalar_lea.vmem [#allocation2], %s572
          %s575 = ssub.s32 128, 128
          %576 = vsyncadd %s570, %s575
          %s577 = smul.addr %s33, 128
          %s578 = scalar_lea.hbm %s0, %s577
          %s580 = sshll.u32 %s573, 4
          %s581 = int_to_ptr.vmem [resolvable:$true] %s580
          %583 = dma.hbm_to_vmem [thread:$0]  %s578, 128, %s581, %s570
        $region88: #{tpu_custom_call.1} parent=83 // pred_fallthru
          _
      $region84: #{tpu_custom_call.1} parent=5 // pred_fallthru
        _
      %p584 = scmp.le.s32.totalorder 1, %s33
      %p585 = scmp.lt.s32.totalorder %s33, 3
      %p586 = pnand %p584, %p585
      %p587 = pneg %p586
      // Predicated region
      $region89: #{tpu_custom_call.1} parent=5 // pred_check
        _
      $region90: #{tpu_custom_call.1} parent=5 // pred_check_branch
        %589 = sbr.rel (%p586) target = $region92
      $region91: #{tpu_custom_call.1} parent=5 // pred_region
        %s590 = ssub.s32 %s33, 1
        %s591 = sand.u32 %s46, 1
        %s592 = scalar_lea.sflag [#allocation3], %s591
        %s593 = sand.u32 %s46, 1
        %s594 = smul.addr %s593, 8
        %s595 = scalar_lea.vmem [#allocation2], %s594
        // Predicated region
        $region93: #{tpu_custom_call.1} parent=91 // pred_check
          %p596 = pneg %p59
        $region94: #{tpu_custom_call.1} parent=91 // pred_check_branch
          %598 = sbr.rel (%p596) target = $region96
        $region95: #{tpu_custom_call.1} parent=91 // pred_region
          %599 = dma.done %s592, 128
        $region96: #{tpu_custom_call.1} parent=91 // pred_fallthru
          _
        // Predicated region
        $region97: #{tpu_custom_call.1} parent=91 // pred_check
          %p600 = pneg %p80
        $region98: #{tpu_custom_call.1} parent=91 // pred_check_branch
          %602 = sbr.rel (%p600) target = $region100
        $region99: #{tpu_custom_call.1} parent=91 // pred_region
          %603 = dma.done [#allocation6], 128
        $region100: #{tpu_custom_call.1} parent=91 // pred_fallthru
          _
        // Predicated region
        $region101: #{tpu_custom_call.1} parent=91 // pred_check
          %p604 = pneg %p101
        $region102: #{tpu_custom_call.1} parent=91 // pred_check_branch
          %606 = sbr.rel (%p604) target = $region104
        $region103: #{tpu_custom_call.1} parent=91 // pred_region
          %607 = dma.done [#allocation6], 16
        $region104: #{tpu_custom_call.1} parent=91 // pred_fallthru
          _
        // Predicated region
        $region105: #{tpu_custom_call.1} parent=91 // pred_check
          %p608 = pneg %p122
        $region106: #{tpu_custom_call.1} parent=91 // pred_check_branch
          %610 = sbr.rel (%p608) target = $region108
        $region107: #{tpu_custom_call.1} parent=91 // pred_region
          %611 = dma.done [#allocation9], 16
        $region108: #{tpu_custom_call.1} parent=91 // pred_fallthru
          _
        // Predicated region
        $region109: #{tpu_custom_call.1} parent=91 // pred_check
          %p612 = pneg %p206
        $region110: #{tpu_custom_call.1} parent=91 // pred_check_branch
          %614 = sbr.rel (%p612) target = $region112
        $region111: #{tpu_custom_call.1} parent=91 // pred_region
          %615 = dma.done [#allocation9], 32
        $region112: #{tpu_custom_call.1} parent=91 // pred_fallthru
          _
        // Predicated region
        $region113: #{tpu_custom_call.1} parent=91 // pred_check
          %p616 = pneg %p227
        $region114: #{tpu_custom_call.1} parent=91 // pred_check_branch
          %618 = sbr.rel (%p616) target = $region116
        $region115: #{tpu_custom_call.1} parent=91 // pred_region
          %619 = dma.done [#allocation12], 32
        $region116: #{tpu_custom_call.1} parent=91 // pred_fallthru
          _
        // Predicated region
        $region117: #{tpu_custom_call.1} parent=91 // pred_check
          %p620 = pneg %p248
        $region118: #{tpu_custom_call.1} parent=91 // pred_check_branch
          %622 = sbr.rel (%p620) target = $region120
        $region119: #{tpu_custom_call.1} parent=91 // pred_region
          %623 = dma.done [#allocation12], 32
        $region120: #{tpu_custom_call.1} parent=91 // pred_fallthru
          _
        %s624 = sand.u32 %s46, 1
        %s625 = scalar_lea.sflag [#allocation3], %s624
        %s626 = sand.u32 %s46, 1
        %s627 = smul.addr %s626, 8
        %s628 = scalar_lea.vmem [#allocation2], %s627
        %p629 = pneg %p59
        %p630 = pneg %p56
        %p631 = pneg %p80
        %p632 = pneg %p77
        %p633 = pneg %p101
        %p634 = pneg %p98
        %p635 = pneg %p122
        %p636 = pneg %p119
        %p637 = pneg %p143
        %p638 = pneg %p140
        %p639 = pneg %p164
        %p640 = pneg %p161
        %p641 = pneg %p185
        %p642 = pneg %p182
        %p643 = pneg %p206
        %p644 = pneg %p203
        %p645 = pneg %p227
        %p646 = pneg %p224
        %p647 = pneg %p248
        %p648 = pneg %p245
        %p649 = pneg %p269
        %p650 = pneg %p266
        %p651 = pneg %p290
        %p652 = pneg %p287
        %p653 = pneg %p311
        %p654 = pneg %p308
        %p655 = pneg %p332
        %p656 = pneg %p329
        %p657 = pneg %p353
        %p658 = pneg %p350
        %p659 = pneg %p374
        %p660 = pneg %p371
        %p661 = pneg %p395
        %p662 = pneg %p392
        %p663 = pneg %p416
        %p664 = pneg %p413
        %p665 = pneg %p442
        %p666 = pneg %p439
        %s667 = sand.u32 %s429, 1
        %s668 = scalar_lea.sflag [#allocation4], %s667
        %s669 = sand.u32 %s429, 1
        %s670 = smul.addr %s669, 8
        %s671 = scalar_lea.vmem [#allocation14], %s670
        %v672 = vld [vmem:[%s595] sm:$0xff]
        %v673 = vld [vmem:[#allocation5] sm:$0xff]
        %v674 = vadd.f32 %v672, %v673
        %v675 = vld [vmem:[#allocation7] sm:$0x1]
        %v676 = vld [vmem:[#allocation8] sm:$0x1]
        %vm677 = vcmask 261120
        %v678 = vsel %vm677, %v674, 0.0
        %679 = vadd.xlane.f32.xlu0 %v678
        %v680 = vpop.xlane.xlu0 %679
        %v681 = vrcp.pop 32.0
        %v682 = vmul.f32 %v680, %v681
        %v683 = vsub.f32 %v674, %v682
        %v684 = vmul.f32 %v683, %v683
        %v685 = vsel %vm677, %v684, 0.0
        %686 = vadd.xlane.f32.xlu0 %v685
        %v687 = vpop.xlane.xlu0 %686
        %v688 = vmul.f32 %v687, %v681
        %v689 = vadd.f32 %v688, 1e-12
        %v690 = vrsqrt.pop %v689
        %v691 = vmul.f32 %v683, %v690
        %v693 = vlaneseq
        %v694 = vshrl.u32 %v693, 7
        %v695 = vsub.s32 0, %v694
        %v696 = vrot.slane %v675, %v695
        %v698 = vmul.f32 %v691, %v696
        %v700 = vlaneseq
        %v701 = vshrl.u32 %v700, 7
        %v702 = vsub.s32 0, %v701
        %v703 = vrot.slane %v676, %v702
        %v705 = vadd.f32 %v698, %v703
        %v706 = vld [vmem:[%s4] sm:$0xff]
        %v707 = vld [vmem:[%s4 + $0x8] sm:$0xff]
        %v708 = vld [vmem:[%s4 + $0x10] sm:$0xff]
        %v709 = vld [vmem:[%s4 + $0x18] sm:$0xff]
        %v710 = vld [vmem:[%s5] sm:$0x1]
        %v712 = vlaneseq
        %v713 = vshrl.u32 %v712, 7
        %v714 = vsub.s32 0, %v713
        %v715 = vrot.slane %v710, %v714
        %v718 = vsel %vm677, %v705, 0
        %720 = vmatprep.subr.mxu0 0.0
        %721 = vmatpush1.msra.mxu0 %v706
        %722 = vmatprep.subr.mxu0 0.0
        %723 = vmatpush1.msra.mxu0 %v707
        %724 = vmatprep.subr.mxu0 0.0
        %725 = vmatpush1.msra.mxu0 %v708
        %726 = vmatprep.subr.mxu0 0.0
        %727 = vmatpush1.msra.mxu0 %v709
        %728 = vmatprep.subr.mxu0 0.0
        %729 = vmatpush1.msra.mxu0 0.0
        %730 = vmatprep.subr.mxu0 0.0
        %731 = vmatpush1.msra.mxu0 0.0
        %732 = vmatprep.subr.mxu0 0.0
        %733 = vmatpush1.msra.mxu0 0.0
        %734 = vmatprep.subr.mxu0 0.0
        %735 = vmatpush1.msra.mxu0 0.0
        %736 = vmatprep.subr.mxu0 0.0
        %737 = vmatpush1.msra.mxu0 0.0
        %738 = vmatprep.subr.mxu0 0.0
        %739 = vmatpush1.msra.mxu0 0.0
        %740 = vmatprep.subr.mxu0 0.0
        %741 = vmatpush1.msra.mxu0 0.0
        %742 = vmatprep.subr.mxu0 0.0
        %743 = vmatpush1.msra.mxu0 0.0
        %744 = vmatprep.subr.mxu0 0.0
        %745 = vmatpush1.msra.mxu0 0.0
        %746 = vmatprep.subr.mxu0 0.0
        %747 = vmatpush1.msra.mxu0 0.0
        %748 = vmatprep.subr.mxu0 0.0
        %749 = vmatpush1.msra.mxu0 0.0
        %750 = vmatprep.subr.mxu0 0.0
        %751 = vmatpush1.msra.mxu0 0.0
        %752 = vmatprep.subr.mxu0 0.0
        %753 = vmatpush1.msra.mxu0 0.0
        %754 = vmatprep.subr.mxu0 0.0
        %755 = vmatpush1.msra.mxu0 0.0
        %756 = vmatprep.subr.mxu0 0.0
        %757 = vmatpush1.msra.mxu0 0.0
        %758 = vmatprep.subr.mxu0 0.0
        %759 = vmatpush1.msra.mxu0 0.0
        %760 = vmatprep.subr.mxu0 0.0
        %761 = vmatpush1.msra.mxu0 0.0
        %762 = vmatprep.subr.mxu0 0.0
        %763 = vmatpush1.msra.mxu0 0.0
        %764 = vmatprep.subr.mxu0 0.0
        %765 = vmatpush1.msra.mxu0 0.0
        %766 = vmatprep.subr.mxu0 0.0
        %767 = vmatpush1.msra.mxu0 0.0
        %768 = vmatprep.subr.mxu0 0.0
        %769 = vmatpush1.msra.mxu0 0.0
        %770 = vmatprep.subr.mxu0 0.0
        %771 = vmatpush1.msra.mxu0 0.0
        %772 = vmatprep.subr.mxu0 0.0
        %773 = vmatpush1.msra.mxu0 0.0
        %774 = vmatprep.subr.mxu0 0.0
        %775 = vmatpush1.msra.mxu0 0.0
        %776 = vmatprep.subr.mxu0 0.0
        %777 = vmatpush1.msra.mxu0 0.0
        %778 = vmatprep.subr.mxu0 0.0
        %779 = vmatpush1.msra.mxu0 0.0
        %780 = vmatprep.subr.mxu0 0.0
        %781 = vmatpush1.msra.mxu0 0.0
        %782 = vmatprep.subr.mxu0 0.0
        %783 = vmatpush1.msra.mxu0 0.0
        %784 = vmatprep.mubr.f32.mxu0 0.0
        %785 = vmatmul.mubr.f32.gmra.mrb[0].mxu0 %v718
        %v786 = vpop.f32.mrb[0].mxu0
        %v787 = vadd.f32 %v715, %v786
        %v788 = vpop.f32.mrb[0].mxu0
        %789 = vdwg.mxu0
        %v790 = vld [vmem:[%s6] sm:$0xff]
        %v791 = vld [vmem:[%s6 + $0x8] sm:$0xff]
        %v792 = vld [vmem:[%s6 + $0x10] sm:$0xff]
        %v793 = vld [vmem:[%s6 + $0x18] sm:$0xff]
        %795 = vrot.lane.b32.xlu0 %v787, 96
        %v796 = vpop.permute.xlu0 %795
        %vm797 = vcmask 130048
        %v798 = vsel %vm797, %v787, 0
        %v800 = vsel %vm797, %v796, 0
        %802 = vmatprep.subr.mxu0 0.0
        %803 = vmatpush1.xpose.msra.mxu0 %v800
        %804 = vmatprep.subr.mxu0 0.0
        %805 = vmatpush1.xpose.msra.mxu0 0.0
        %806 = vmatprep.subr.mxu0 0.0
        %807 = vmatpush1.xpose.msra.mxu0 0.0
        %808 = vmatprep.subr.mxu0 0.0
        %809 = vmatpush1.xpose.msra.mxu0 0.0
        %810 = vmatprep.subr.mxu0 0.0
        %811 = vmatpush1.xpose.msra.mxu0 0.0
        %812 = vmatprep.subr.mxu0 0.0
        %813 = vmatpush1.xpose.msra.mxu0 0.0
        %814 = vmatprep.subr.mxu0 0.0
        %815 = vmatpush1.xpose.msra.mxu0 0.0
        %816 = vmatprep.subr.mxu0 0.0
        %817 = vmatpush1.xpose.msra.mxu0 0.0
        %818 = vmatprep.subr.mxu0 0.0
        %819 = vmatpush1.xpose.msra.mxu0 0.0
        %820 = vmatprep.subr.mxu0 0.0
        %821 = vmatpush1.xpose.msra.mxu0 0.0
        %822 = vmatprep.subr.mxu0 0.0
        %823 = vmatpush1.xpose.msra.mxu0 0.0
        %824 = vmatprep.subr.mxu0 0.0
        %825 = vmatpush1.xpose.msra.mxu0 0.0
        %826 = vmatprep.subr.mxu0 0.0
        %827 = vmatpush1.xpose.msra.mxu0 0.0
        %828 = vmatprep.subr.mxu0 0.0
        %829 = vmatpush1.xpose.msra.mxu0 0.0
        %830 = vmatprep.subr.mxu0 0.0
        %831 = vmatpush1.xpose.msra.mxu0 0.0
        %832 = vmatprep.subr.mxu0 0.0
        %833 = vmatpush1.xpose.msra.mxu0 0.0
        %834 = vmatprep.subr.mxu0 0.0
        %835 = vmatpush1.xpose.msra.mxu0 0.0
        %836 = vmatprep.subr.mxu0 0.0
        %837 = vmatpush1.xpose.msra.mxu0 0.0
        %838 = vmatprep.subr.mxu0 0.0
        %839 = vmatpush1.xpose.msra.mxu0 0.0
        %840 = vmatprep.subr.mxu0 0.0
        %841 = vmatpush1.xpose.msra.mxu0 0.0
        %842 = vmatprep.subr.mxu0 0.0
        %843 = vmatpush1.xpose.msra.mxu0 0.0
        %844 = vmatprep.subr.mxu0 0.0
        %845 = vmatpush1.xpose.msra.mxu0 0.0
        %846 = vmatprep.subr.mxu0 0.0
        %847 = vmatpush1.xpose.msra.mxu0 0.0
        %848 = vmatprep.subr.mxu0 0.0
        %849 = vmatpush1.xpose.msra.mxu0 0.0
        %850 = vmatprep.subr.mxu0 0.0
        %851 = vmatpush1.xpose.msra.mxu0 0.0
        %852 = vmatprep.subr.mxu0 0.0
        %853 = vmatpush1.xpose.msra.mxu0 0.0
        %854 = vmatprep.subr.mxu0 0.0
        %855 = vmatpush1.xpose.msra.mxu0 0.0
        %856 = vmatprep.subr.mxu0 0.0
        %857 = vmatpush1.xpose.msra.mxu0 0.0
        %858 = vmatprep.subr.mxu0 0.0
        %859 = vmatpush1.xpose.msra.mxu0 0.0
        %860 = vmatprep.subr.mxu0 0.0
        %861 = vmatpush1.xpose.msra.mxu0 0.0
        %862 = vmatprep.subr.mxu0 0.0
        %863 = vmatpush1.xpose.msra.mxu0 0.0
        %864 = vmatprep.subr.mxu0 0.0
        %865 = vmatpush1.xpose.msra.mxu0 0.0
        %866 = vmatprep.mubr.f32.mxu0 0.0
        %867 = vmatmul.mubr.f32.gmra.mrb[0].mxu0 %v798
        %v868 = vpop.f32.mrb[0].mxu0
        %v869 = vadd.f32 0.0, %v868
        %v870 = vpop.f32.mrb[0].mxu0
        %871 = vdwg.mxu0
        %v872 = vmul.f32 %v869, 0.25
        %vm873 = vcmask 64512
        %v874 = vsel %vm873, %v872, -inf
        %875 = vmax.xlane.f32.xlu0 %v874
        %v876 = vpop.xlane.xlu0 %875
        %v877 = vsub.f32 %v872, %v876
        %v878 = vmul.f32 %v877, 1.442695
        %v879 = vpow.pop %v878
        %v880 = vsel %vm873, %v879, 0.0
        %881 = vadd.xlane.f32.xlu0 %v880
        %v882 = vpop.xlane.xlu0 %881
        %v883 = vrcp.pop %v882
        %v884 = vmul.f32 %v879, %v883
        %885 = vrot.lane.b32.xlu0 %v787, 64
        %v886 = vpop.permute.xlu0 %885
        %v889 = vsel %vm873, %v884, 0
        %891 = vmatprep.subr.mxu0 0.0
        %892 = vmatpush1.msra.mxu0 %v886
        %893 = vmatprep.subr.mxu0 0.0
        %894 = vmatpush1.msra.mxu0 0.0
        %895 = vmatprep.subr.mxu0 0.0
        %896 = vmatpush1.msra.mxu0 0.0
        %897 = vmatprep.subr.mxu0 0.0
        %898 = vmatpush1.msra.mxu0 0.0
        %899 = vmatprep.subr.mxu0 0.0
        %900 = vmatpush1.msra.mxu0 0.0
        %901 = vmatprep.subr.mxu0 0.0
        %902 = vmatpush1.msra.mxu0 0.0
        %903 = vmatprep.subr.mxu0 0.0
        %904 = vmatpush1.msra.mxu0 0.0
        %905 = vmatprep.subr.mxu0 0.0
        %906 = vmatpush1.msra.mxu0 0.0
        %907 = vmatprep.subr.mxu0 0.0
        %908 = vmatpush1.msra.mxu0 0.0
        %909 = vmatprep.subr.mxu0 0.0
        %910 = vmatpush1.msra.mxu0 0.0
        %911 = vmatprep.subr.mxu0 0.0
        %912 = vmatpush1.msra.mxu0 0.0
        %913 = vmatprep.subr.mxu0 0.0
        %914 = vmatpush1.msra.mxu0 0.0
        %915 = vmatprep.subr.mxu0 0.0
        %916 = vmatpush1.msra.mxu0 0.0
        %917 = vmatprep.subr.mxu0 0.0
        %918 = vmatpush1.msra.mxu0 0.0
        %919 = vmatprep.subr.mxu0 0.0
        %920 = vmatpush1.msra.mxu0 0.0
        %921 = vmatprep.subr.mxu0 0.0
        %922 = vmatpush1.msra.mxu0 0.0
        %923 = vmatprep.subr.mxu0 0.0
        %924 = vmatpush1.msra.mxu0 0.0
        %925 = vmatprep.subr.mxu0 0.0
        %926 = vmatpush1.msra.mxu0 0.0
        %927 = vmatprep.subr.mxu0 0.0
        %928 = vmatpush1.msra.mxu0 0.0
        %929 = vmatprep.subr.mxu0 0.0
        %930 = vmatpush1.msra.mxu0 0.0
        %931 = vmatprep.subr.mxu0 0.0
        %932 = vmatpush1.msra.mxu0 0.0
        %933 = vmatprep.subr.mxu0 0.0
        %934 = vmatpush1.msra.mxu0 0.0
        %935 = vmatprep.subr.mxu0 0.0
        %936 = vmatpush1.msra.mxu0 0.0
        %937 = vmatprep.subr.mxu0 0.0
        %938 = vmatpush1.msra.mxu0 0.0
        %939 = vmatprep.subr.mxu0 0.0
        %940 = vmatpush1.msra.mxu0 0.0
        %941 = vmatprep.subr.mxu0 0.0
        %942 = vmatpush1.msra.mxu0 0.0
        %943 = vmatprep.subr.mxu0 0.0
        %944 = vmatpush1.msra.mxu0 0.0
        %945 = vmatprep.subr.mxu0 0.0
        %946 = vmatpush1.msra.mxu0 0.0
        %947 = vmatprep.subr.mxu0 0.0
        %948 = vmatpush1.msra.mxu0 0.0
        %949 = vmatprep.subr.mxu0 0.0
        %950 = vmatpush1.msra.mxu0 0.0
        %951 = vmatprep.subr.mxu0 0.0
        %952 = vmatpush1.msra.mxu0 0.0
        %953 = vmatprep.subr.mxu0 0.0
        %954 = vmatpush1.msra.mxu0 0.0
        %955 = vmatprep.mubr.f32.mxu0 0.0
        %956 = vmatmul.mubr.f32.gmra.mrb[0].mxu0 %v889
        %v957 = vpop.f32.mrb[0].mxu0
        %v958 = vadd.f32 0.0, %v957
        %v959 = vpop.f32.mrb[0].mxu0
        %960 = vdwg.mxu0
        %961 = vrot.lane.b32.xlu0 %v787, 112
        %v962 = vpop.permute.xlu0 %961
        %963 = vrot.lane.b32.xlu0 %v787, 80
        %v964 = vpop.permute.xlu0 %963
        %v965 = vsel %vm797, %v962, 0
        %v967 = vsel %vm797, %v964, 0
        %969 = vmatprep.subr.mxu0 0.0
        %970 = vmatpush1.xpose.msra.mxu0 %v967
        %971 = vmatprep.subr.mxu0 0.0
        %972 = vmatpush1.xpose.msra.mxu0 0.0
        %973 = vmatprep.subr.mxu0 0.0
        %974 = vmatpush1.xpose.msra.mxu0 0.0
        %975 = vmatprep.subr.mxu0 0.0
        %976 = vmatpush1.xpose.msra.mxu0 0.0
        %977 = vmatprep.subr.mxu0 0.0
        %978 = vmatpush1.xpose.msra.mxu0 0.0
        %979 = vmatprep.subr.mxu0 0.0
        %980 = vmatpush1.xpose.msra.mxu0 0.0
        %981 = vmatprep.subr.mxu0 0.0
        %982 = vmatpush1.xpose.msra.mxu0 0.0
        %983 = vmatprep.subr.mxu0 0.0
        %984 = vmatpush1.xpose.msra.mxu0 0.0
        %985 = vmatprep.subr.mxu0 0.0
        %986 = vmatpush1.xpose.msra.mxu0 0.0
        %987 = vmatprep.subr.mxu0 0.0
        %988 = vmatpush1.xpose.msra.mxu0 0.0
        %989 = vmatprep.subr.mxu0 0.0
        %990 = vmatpush1.xpose.msra.mxu0 0.0
        %991 = vmatprep.subr.mxu0 0.0
        %992 = vmatpush1.xpose.msra.mxu0 0.0
        %993 = vmatprep.subr.mxu0 0.0
        %994 = vmatpush1.xpose.msra.mxu0 0.0
        %995 = vmatprep.subr.mxu0 0.0
        %996 = vmatpush1.xpose.msra.mxu0 0.0
        %997 = vmatprep.subr.mxu0 0.0
        %998 = vmatpush1.xpose.msra.mxu0 0.0
        %999 = vmatprep.subr.mxu0 0.0
        %1000 = vmatpush1.xpose.msra.mxu0 0.0
        %1001 = vmatprep.subr.mxu0 0.0
        %1002 = vmatpush1.xpose.msra.mxu0 0.0
        %1003 = vmatprep.subr.mxu0 0.0
        %1004 = vmatpush1.xpose.msra.mxu0 0.0
        %1005 = vmatprep.subr.mxu0 0.0
        %1006 = vmatpush1.xpose.msra.mxu0 0.0
        %1007 = vmatprep.subr.mxu0 0.0
        %1008 = vmatpush1.xpose.msra.mxu0 0.0
        %1009 = vmatprep.subr.mxu0 0.0
        %1010 = vmatpush1.xpose.msra.mxu0 0.0
        %1011 = vmatprep.subr.mxu0 0.0
        %1012 = vmatpush1.xpose.msra.mxu0 0.0
        %1013 = vmatprep.subr.mxu0 0.0
        %1014 = vmatpush1.xpose.msra.mxu0 0.0
        %1015 = vmatprep.subr.mxu0 0.0
        %1016 = vmatpush1.xpose.msra.mxu0 0.0
        %1017 = vmatprep.subr.mxu0 0.0
        %1018 = vmatpush1.xpose.msra.mxu0 0.0
        %1019 = vmatprep.subr.mxu0 0.0
        %1020 = vmatpush1.xpose.msra.mxu0 0.0
        %1021 = vmatprep.subr.mxu0 0.0
        %1022 = vmatpush1.xpose.msra.mxu0 0.0
        %1023 = vmatprep.subr.mxu0 0.0
        %1024 = vmatpush1.xpose.msra.mxu0 0.0
        %1025 = vmatprep.subr.mxu0 0.0
        %1026 = vmatpush1.xpose.msra.mxu0 0.0
        %1027 = vmatprep.subr.mxu0 0.0
        %1028 = vmatpush1.xpose.msra.mxu0 0.0
        %1029 = vmatprep.subr.mxu0 0.0
        %1030 = vmatpush1.xpose.msra.mxu0 0.0
        %1031 = vmatprep.subr.mxu0 0.0
        %1032 = vmatpush1.xpose.msra.mxu0 0.0
        %1033 = vmatprep.mubr.f32.mxu0 0.0
        %1034 = vmatmul.mubr.f32.gmra.mrb[0].mxu0 %v965
        %v1035 = vpop.f32.mrb[0].mxu0
        %v1036 = vadd.f32 0.0, %v1035
        %v1037 = vpop.f32.mrb[0].mxu0
        %1038 = vdwg.mxu0
        %v1039 = vmul.f32 %v1036, 0.25
        %v1040 = vsel %vm873, %v1039, -inf
        %1041 = vmax.xlane.f32.xlu0 %v1040
        %v1042 = vpop.xlane.xlu0 %1041
        %v1043 = vsub.f32 %v1039, %v1042
        %v1044 = vmul.f32 %v1043, 1.442695
        %v1045 = vpow.pop %v1044
        %v1046 = vsel %vm873, %v1045, 0.0
        %1047 = vadd.xlane.f32.xlu0 %v1046
        %v1048 = vpop.xlane.xlu0 %1047
        %v1049 = vrcp.pop %v1048
        %v1050 = vmul.f32 %v1045, %v1049
        %1051 = vrot.lane.b32.xlu0 %v787, 48
        %v1052 = vpop.permute.xlu0 %1051
        %v1055 = vsel %vm873, %v1050, 0
        %1057 = vmatprep.subr.mxu0 0.0
        %1058 = vmatpush1.msra.mxu0 %v1052
        %1059 = vmatprep.subr.mxu0 0.0
        %1060 = vmatpush1.msra.mxu0 0.0
        %1061 = vmatprep.subr.mxu0 0.0
        %1062 = vmatpush1.msra.mxu0 0.0
        %1063 = vmatprep.subr.mxu0 0.0
        %1064 = vmatpush1.msra.mxu0 0.0
        %1065 = vmatprep.subr.mxu0 0.0
        %1066 = vmatpush1.msra.mxu0 0.0
        %1067 = vmatprep.subr.mxu0 0.0
        %1068 = vmatpush1.msra.mxu0 0.0
        %1069 = vmatprep.subr.mxu0 0.0
        %1070 = vmatpush1.msra.mxu0 0.0
        %1071 = vmatprep.subr.mxu0 0.0
        %1072 = vmatpush1.msra.mxu0 0.0
        %1073 = vmatprep.subr.mxu0 0.0
        %1074 = vmatpush1.msra.mxu0 0.0
        %1075 = vmatprep.subr.mxu0 0.0
        %1076 = vmatpush1.msra.mxu0 0.0
        %1077 = vmatprep.subr.mxu0 0.0
        %1078 = vmatpush1.msra.mxu0 0.0
        %1079 = vmatprep.subr.mxu0 0.0
        %1080 = vmatpush1.msra.mxu0 0.0
        %1081 = vmatprep.subr.mxu0 0.0
        %1082 = vmatpush1.msra.mxu0 0.0
        %1083 = vmatprep.subr.mxu0 0.0
        %1084 = vmatpush1.msra.mxu0 0.0
        %1085 = vmatprep.subr.mxu0 0.0
        %1086 = vmatpush1.msra.mxu0 0.0
        %1087 = vmatprep.subr.mxu0 0.0
        %1088 = vmatpush1.msra.mxu0 0.0
        %1089 = vmatprep.subr.mxu0 0.0
        %1090 = vmatpush1.msra.mxu0 0.0
        %1091 = vmatprep.subr.mxu0 0.0
        %1092 = vmatpush1.msra.mxu0 0.0
        %1093 = vmatprep.subr.mxu0 0.0
        %1094 = vmatpush1.msra.mxu0 0.0
        %1095 = vmatprep.subr.mxu0 0.0
        %1096 = vmatpush1.msra.mxu0 0.0
        %1097 = vmatprep.subr.mxu0 0.0
        %1098 = vmatpush1.msra.mxu0 0.0
        %1099 = vmatprep.subr.mxu0 0.0
        %1100 = vmatpush1.msra.mxu0 0.0
        %1101 = vmatprep.subr.mxu0 0.0
        %1102 = vmatpush1.msra.mxu0 0.0
        %1103 = vmatprep.subr.mxu0 0.0
        %1104 = vmatpush1.msra.mxu0 0.0
        %1105 = vmatprep.subr.mxu0 0.0
        %1106 = vmatpush1.msra.mxu0 0.0
        %1107 = vmatprep.subr.mxu0 0.0
        %1108 = vmatpush1.msra.mxu0 0.0
        %1109 = vmatprep.subr.mxu0 0.0
        %1110 = vmatpush1.msra.mxu0 0.0
        %1111 = vmatprep.subr.mxu0 0.0
        %1112 = vmatpush1.msra.mxu0 0.0
        %1113 = vmatprep.subr.mxu0 0.0
        %1114 = vmatpush1.msra.mxu0 0.0
        %1115 = vmatprep.subr.mxu0 0.0
        %1116 = vmatpush1.msra.mxu0 0.0
        %1117 = vmatprep.subr.mxu0 0.0
        %1118 = vmatpush1.msra.mxu0 0.0
        %1119 = vmatprep.subr.mxu0 0.0
        %1120 = vmatpush1.msra.mxu0 0.0
        %1121 = vmatprep.mubr.f32.mxu0 0.0
        %1122 = vmatmul.mubr.f32.gmra.mrb[0].mxu0 %v1055
        %v1123 = vpop.f32.mrb[0].mxu0
        %v1124 = vadd.f32 0.0, %v1123
        %v1125 = vpop.f32.mrb[0].mxu0
        %1126 = vdwg.mxu0
        %v1128 = vsel %vm797, %v1124, 0
        %1130 = vmatprep.subr.mxu0 0.0
        %1131 = vmatpush1.msra.mxu0 %v792
        %1132 = vmatprep.subr.mxu0 0.0
        %1133 = vmatpush1.msra.mxu0 %v793
        %1134 = vmatprep.subr.mxu0 0.0
        %1135 = vmatpush1.msra.mxu0 0.0
        %1136 = vmatprep.subr.mxu0 0.0
        %1137 = vmatpush1.msra.mxu0 0.0
        %1138 = vmatprep.subr.mxu0 0.0
        %1139 = vmatpush1.msra.mxu0 0.0
        %1140 = vmatprep.subr.mxu0 0.0
        %1141 = vmatpush1.msra.mxu0 0.0
        %1142 = vmatprep.subr.mxu0 0.0
        %1143 = vmatpush1.msra.mxu0 0.0
        %1144 = vmatprep.subr.mxu0 0.0
        %1145 = vmatpush1.msra.mxu0 0.0
        %1146 = vmatprep.subr.mxu0 0.0
        %1147 = vmatpush1.msra.mxu0 0.0
        %1148 = vmatprep.subr.mxu0 0.0
        %1149 = vmatpush1.msra.mxu0 0.0
        %1150 = vmatprep.subr.mxu0 0.0
        %1151 = vmatpush1.msra.mxu0 0.0
        %1152 = vmatprep.subr.mxu0 0.0
        %1153 = vmatpush1.msra.mxu0 0.0
        %1154 = vmatprep.subr.mxu0 0.0
        %1155 = vmatpush1.msra.mxu0 0.0
        %1156 = vmatprep.subr.mxu0 0.0
        %1157 = vmatpush1.msra.mxu0 0.0
        %1158 = vmatprep.subr.mxu0 0.0
        %1159 = vmatpush1.msra.mxu0 0.0
        %1160 = vmatprep.subr.mxu0 0.0
        %1161 = vmatpush1.msra.mxu0 0.0
        %1162 = vmatprep.subr.mxu0 0.0
        %1163 = vmatpush1.msra.mxu0 0.0
        %1164 = vmatprep.subr.mxu0 0.0
        %1165 = vmatpush1.msra.mxu0 0.0
        %1166 = vmatprep.subr.mxu0 0.0
        %1167 = vmatpush1.msra.mxu0 0.0
        %1168 = vmatprep.subr.mxu0 0.0
        %1169 = vmatpush1.msra.mxu0 0.0
        %1170 = vmatprep.subr.mxu0 0.0
        %1171 = vmatpush1.msra.mxu0 0.0
        %1172 = vmatprep.subr.mxu0 0.0
        %1173 = vmatpush1.msra.mxu0 0.0
        %1174 = vmatprep.subr.mxu0 0.0
        %1175 = vmatpush1.msra.mxu0 0.0
        %1176 = vmatprep.subr.mxu0 0.0
        %1177 = vmatpush1.msra.mxu0 0.0
        %1178 = vmatprep.subr.mxu0 0.0
        %1179 = vmatpush1.msra.mxu0 0.0
        %1180 = vmatprep.subr.mxu0 0.0
        %1181 = vmatpush1.msra.mxu0 0.0
        %1182 = vmatprep.subr.mxu0 0.0
        %1183 = vmatpush1.msra.mxu0 0.0
        %1184 = vmatprep.subr.mxu0 0.0
        %1185 = vmatpush1.msra.mxu0 0.0
        %1186 = vmatprep.subr.mxu0 0.0
        %1187 = vmatpush1.msra.mxu0 0.0
        %1188 = vmatprep.subr.mxu0 0.0
        %1189 = vmatpush1.msra.mxu0 0.0
        %1190 = vmatprep.subr.mxu0 0.0
        %1191 = vmatpush1.msra.mxu0 0.0
        %1192 = vmatprep.subr.mxu0 0.0
        %1193 = vmatpush1.msra.mxu0 0.0
        %1194 = vmatprep.mubr.f32.mxu0 0.0
        %1195 = vmatmul.mubr.f32.gmra.mrb[0].mxu0 %v1128
        %v1196 = vpop.f32.mrb[0].mxu0
        %v1197 = vadd.f32 0.0, %v1196
        %v1198 = vpop.f32.mrb[0].mxu0
        %1199 = vdwg.mxu0
        %v1201 = vsel %vm797, %v958, 0
        %1203 = vmatprep.subr.mxu0 0.0
        %1204 = vmatpush1.msra.mxu0 %v790
        %1205 = vmatprep.subr.mxu0 0.0
        %1206 = vmatpush1.msra.mxu0 %v791
        %1207 = vmatprep.subr.mxu0 0.0
        %1208 = vmatpush1.msra.mxu0 0.0
        %1209 = vmatprep.subr.mxu0 0.0
        %1210 = vmatpush1.msra.mxu0 0.0
        %1211 = vmatprep.subr.mxu0 0.0
        %1212 = vmatpush1.msra.mxu0 0.0
        %1213 = vmatprep.subr.mxu0 0.0
        %1214 = vmatpush1.msra.mxu0 0.0
        %1215 = vmatprep.subr.mxu0 0.0
        %1216 = vmatpush1.msra.mxu0 0.0
        %1217 = vmatprep.subr.mxu0 0.0
        %1218 = vmatpush1.msra.mxu0 0.0
        %1219 = vmatprep.subr.mxu0 0.0
        %1220 = vmatpush1.msra.mxu0 0.0
        %1221 = vmatprep.subr.mxu0 0.0
        %1222 = vmatpush1.msra.mxu0 0.0
        %1223 = vmatprep.subr.mxu0 0.0
        %1224 = vmatpush1.msra.mxu0 0.0
        %1225 = vmatprep.subr.mxu0 0.0
        %1226 = vmatpush1.msra.mxu0 0.0
        %1227 = vmatprep.subr.mxu0 0.0
        %1228 = vmatpush1.msra.mxu0 0.0
        %1229 = vmatprep.subr.mxu0 0.0
        %1230 = vmatpush1.msra.mxu0 0.0
        %1231 = vmatprep.subr.mxu0 0.0
        %1232 = vmatpush1.msra.mxu0 0.0
        %1233 = vmatprep.subr.mxu0 0.0
        %1234 = vmatpush1.msra.mxu0 0.0
        %1235 = vmatprep.subr.mxu0 0.0
        %1236 = vmatpush1.msra.mxu0 0.0
        %1237 = vmatprep.subr.mxu0 0.0
        %1238 = vmatpush1.msra.mxu0 0.0
        %1239 = vmatprep.subr.mxu0 0.0
        %1240 = vmatpush1.msra.mxu0 0.0
        %1241 = vmatprep.subr.mxu0 0.0
        %1242 = vmatpush1.msra.mxu0 0.0
        %1243 = vmatprep.subr.mxu0 0.0
        %1244 = vmatpush1.msra.mxu0 0.0
        %1245 = vmatprep.subr.mxu0 0.0
        %1246 = vmatpush1.msra.mxu0 0.0
        %1247 = vmatprep.subr.mxu0 0.0
        %1248 = vmatpush1.msra.mxu0 0.0
        %1249 = vmatprep.subr.mxu0 0.0
        %1250 = vmatpush1.msra.mxu0 0.0
        %1251 = vmatprep.subr.mxu0 0.0
        %1252 = vmatpush1.msra.mxu0 0.0
        %1253 = vmatprep.subr.mxu0 0.0
        %1254 = vmatpush1.msra.mxu0 0.0
        %1255 = vmatprep.subr.mxu0 0.0
        %1256 = vmatpush1.msra.mxu0 0.0
        %1257 = vmatprep.subr.mxu0 0.0
        %1258 = vmatpush1.msra.mxu0 0.0
        %1259 = vmatprep.subr.mxu0 0.0
        %1260 = vmatpush1.msra.mxu0 0.0
        %1261 = vmatprep.subr.mxu0 0.0
        %1262 = vmatpush1.msra.mxu0 0.0
        %1263 = vmatprep.subr.mxu0 0.0
        %1264 = vmatpush1.msra.mxu0 0.0
        %1265 = vmatprep.subr.mxu0 0.0
        %1266 = vmatpush1.msra.mxu0 0.0
        %1267 = vmatprep.mubr.f32.mxu0 0.0
        %1268 = vmatmul.mubr.f32.gmra.mrb[0].mxu0 %v1201
        %v1269 = vpop.f32.mrb[0].mxu0
        %v1270 = vadd.f32 %v1197, %v1269
        %v1271 = vpop.f32.mrb[0].mxu0
        %1272 = vdwg.mxu0
        %v1273 = vld [vmem:[#allocation10] sm:$0x1]
        %v1275 = vlaneseq
        %v1276 = vshrl.u32 %v1275, 7
        %v1277 = vsub.s32 0, %v1276
        %v1278 = vrot.slane %v1273, %v1277
        %v1280 = vadd.f32 %v1270, %v1278
        %v1281 = vadd.f32 %v705, %v1280
        %v1282 = vld [vmem:[#allocation11] sm:$0x1]
        %v1283 = vld [vmem:[#allocation13] sm:$0x1]
        %v1284 = vsel %vm677, %v1281, 0.0
        %1285 = vadd.xlane.f32.xlu0 %v1284
        %v1286 = vpop.xlane.xlu0 %1285
        %v1287 = vmul.f32 %v1286, %v681
        %v1288 = vsub.f32 %v1281, %v1287
        %v1289 = vmul.f32 %v1288, %v1288
        %v1290 = vsel %vm677, %v1289, 0.0
        %1291 = vadd.xlane.f32.xlu0 %v1290
        %v1292 = vpop.xlane.xlu0 %1291
        %v1293 = vmul.f32 %v1292, %v681
        %v1294 = vadd.f32 %v1293, 1e-12
        %v1295 = vrsqrt.pop %v1294
        %v1296 = vmul.f32 %v1288, %v1295
        %v1298 = vlaneseq
        %v1299 = vshrl.u32 %v1298, 7
        %v1300 = vsub.s32 0, %v1299
        %v1301 = vrot.slane %v1282, %v1300
        %v1303 = vmul.f32 %v1296, %v1301
        %v1305 = vlaneseq
        %v1306 = vshrl.u32 %v1305, 7
        %v1307 = vsub.s32 0, %v1306
        %v1308 = vrot.slane %v1283, %v1307
        %v1310 = vadd.f32 %v1303, %v1308
        %v1311 = vld [vmem:[%s10] sm:$0xff]
        %v1312 = vld [vmem:[%s10 + $0x8] sm:$0xff]
        %v1313 = vld [vmem:[%s10 + $0x10] sm:$0xff]
        %v1314 = vld [vmem:[%s10 + $0x18] sm:$0xff]
        %v1315 = vld [vmem:[%s11] sm:$0x1]
        %v1317 = vlaneseq
        %v1318 = vshrl.u32 %v1317, 7
        %v1319 = vsub.s32 0, %v1318
        %v1320 = vrot.slane %v1315, %v1319
        %v1323 = vsel %vm677, %v1310, 0
        %1325 = vmatprep.subr.mxu0 0.0
        %1326 = vmatpush1.msra.mxu0 %v1311
        %1327 = vmatprep.subr.mxu0 0.0
        %1328 = vmatpush1.msra.mxu0 %v1312
        %1329 = vmatprep.subr.mxu0 0.0
        %1330 = vmatpush1.msra.mxu0 %v1313
        %1331 = vmatprep.subr.mxu0 0.0
        %1332 = vmatpush1.msra.mxu0 %v1314
        %1333 = vmatprep.subr.mxu0 0.0
        %1334 = vmatpush1.msra.mxu0 0.0
        %1335 = vmatprep.subr.mxu0 0.0
        %1336 = vmatpush1.msra.mxu0 0.0
        %1337 = vmatprep.subr.mxu0 0.0
        %1338 = vmatpush1.msra.mxu0 0.0
        %1339 = vmatprep.subr.mxu0 0.0
        %1340 = vmatpush1.msra.mxu0 0.0
        %1341 = vmatprep.subr.mxu0 0.0
        %1342 = vmatpush1.msra.mxu0 0.0
        %1343 = vmatprep.subr.mxu0 0.0
        %1344 = vmatpush1.msra.mxu0 0.0
        %1345 = vmatprep.subr.mxu0 0.0
        %1346 = vmatpush1.msra.mxu0 0.0
        %1347 = vmatprep.subr.mxu0 0.0
        %1348 = vmatpush1.msra.mxu0 0.0
        %1349 = vmatprep.subr.mxu0 0.0
        %1350 = vmatpush1.msra.mxu0 0.0
        %1351 = vmatprep.subr.mxu0 0.0
        %1352 = vmatpush1.msra.mxu0 0.0
        %1353 = vmatprep.subr.mxu0 0.0
        %1354 = vmatpush1.msra.mxu0 0.0
        %1355 = vmatprep.subr.mxu0 0.0
        %1356 = vmatpush1.msra.mxu0 0.0
        %1357 = vmatprep.subr.mxu0 0.0
        %1358 = vmatpush1.msra.mxu0 0.0
        %1359 = vmatprep.subr.mxu0 0.0
        %1360 = vmatpush1.msra.mxu0 0.0
        %1361 = vmatprep.subr.mxu0 0.0
        %1362 = vmatpush1.msra.mxu0 0.0
        %1363 = vmatprep.subr.mxu0 0.0
        %1364 = vmatpush1.msra.mxu0 0.0
        %1365 = vmatprep.subr.mxu0 0.0
        %1366 = vmatpush1.msra.mxu0 0.0
        %1367 = vmatprep.subr.mxu0 0.0
        %1368 = vmatpush1.msra.mxu0 0.0
        %1369 = vmatprep.subr.mxu0 0.0
        %1370 = vmatpush1.msra.mxu0 0.0
        %1371 = vmatprep.subr.mxu0 0.0
        %1372 = vmatpush1.msra.mxu0 0.0
        %1373 = vmatprep.subr.mxu0 0.0
        %1374 = vmatpush1.msra.mxu0 0.0
        %1375 = vmatprep.subr.mxu0 0.0
        %1376 = vmatpush1.msra.mxu0 0.0
        %1377 = vmatprep.subr.mxu0 0.0
        %1378 = vmatpush1.msra.mxu0 0.0
        %1379 = vmatprep.subr.mxu0 0.0
        %1380 = vmatpush1.msra.mxu0 0.0
        %1381 = vmatprep.subr.mxu0 0.0
        %1382 = vmatpush1.msra.mxu0 0.0
        %1383 = vmatprep.subr.mxu0 0.0
        %1384 = vmatpush1.msra.mxu0 0.0
        %1385 = vmatprep.subr.mxu0 0.0
        %1386 = vmatpush1.msra.mxu0 0.0
        %1387 = vmatprep.subr.mxu0 0.0
        %1388 = vmatpush1.msra.mxu0 0.0
        %1389 = vmatprep.mubr.f32.mxu0 0.0
        %1390 = vmatmul.mubr.f32.gmra.mrb[0].mxu0 %v1323
        %v1391 = vpop.f32.mrb[0].mxu0
        %v1392 = vadd.f32 %v1320, %v1391
        %v1393 = vpop.f32.mrb[0].mxu0
        %1394 = vdwg.mxu0
        %v1395 = vmul.f32 %v1392, %v1392
        %v1396 = vmul.f32 %v1392, %v1395
        %v1397 = vmul.f32 %v1396, 0.044715
        %v1398 = vadd.f32 %v1392, %v1397
        %v1399 = vmul.f32 %v1398, 0.7978846
        %v1400 = vtanh.pop %v1399
        %v1401 = vadd.f32 %v1400, 1.0
        %v1402 = vmul.f32 %v1401, 0.5
        %v1403 = vmul.f32 %v1392, %v1402
        %v1404 = vld [vmem:[%s12] sm:$0xff]
        %v1405 = vld [vmem:[%s12 + $0x8] sm:$0xff]
        %v1406 = vld [vmem:[%s12 + $0x10] sm:$0xff]
        %v1407 = vld [vmem:[%s12 + $0x18] sm:$0xff]
        %v1408 = vld [vmem:[%s12 + $0x20] sm:$0xff]
        %v1409 = vld [vmem:[%s12 + $0x28] sm:$0xff]
        %v1410 = vld [vmem:[%s12 + $0x30] sm:$0xff]
        %v1411 = vld [vmem:[%s12 + $0x38] sm:$0xff]
        %v1412 = vld [vmem:[%s13] sm:$0x1]
        %v1414 = vlaneseq
        %v1415 = vshrl.u32 %v1414, 7
        %v1416 = vsub.s32 0, %v1415
        %v1417 = vrot.slane %v1412, %v1416
        %vm1419 = vcmask 523264
        %v1421 = vsel %vm1419, %v1403, 0
        %1423 = vmatprep.subr.mxu0 0.0
        %1424 = vmatpush1.msra.mxu0 %v1404
        %1425 = vmatprep.subr.mxu0 0.0
        %1426 = vmatpush1.msra.mxu0 %v1405
        %1427 = vmatprep.subr.mxu0 0.0
        %1428 = vmatpush1.msra.mxu0 %v1406
        %1429 = vmatprep.subr.mxu0 0.0
        %1430 = vmatpush1.msra.mxu0 %v1407
        %1431 = vmatprep.subr.mxu0 0.0
        %1432 = vmatpush1.msra.mxu0 %v1408
        %1433 = vmatprep.subr.mxu0 0.0
        %1434 = vmatpush1.msra.mxu0 %v1409
        %1435 = vmatprep.subr.mxu0 0.0
        %1436 = vmatpush1.msra.mxu0 %v1410
        %1437 = vmatprep.subr.mxu0 0.0
        %1438 = vmatpush1.msra.mxu0 %v1411
        %1439 = vmatprep.subr.mxu0 0.0
        %1440 = vmatpush1.msra.mxu0 0.0
        %1441 = vmatprep.subr.mxu0 0.0
        %1442 = vmatpush1.msra.mxu0 0.0
        %1443 = vmatprep.subr.mxu0 0.0
        %1444 = vmatpush1.msra.mxu0 0.0
        %1445 = vmatprep.subr.mxu0 0.0
        %1446 = vmatpush1.msra.mxu0 0.0
        %1447 = vmatprep.subr.mxu0 0.0
        %1448 = vmatpush1.msra.mxu0 0.0
        %1449 = vmatprep.subr.mxu0 0.0
        %1450 = vmatpush1.msra.mxu0 0.0
        %1451 = vmatprep.subr.mxu0 0.0
        %1452 = vmatpush1.msra.mxu0 0.0
        %1453 = vmatprep.subr.mxu0 0.0
        %1454 = vmatpush1.msra.mxu0 0.0
        %1455 = vmatprep.subr.mxu0 0.0
        %1456 = vmatpush1.msra.mxu0 0.0
        %1457 = vmatprep.subr.mxu0 0.0
        %1458 = vmatpush1.msra.mxu0 0.0
        %1459 = vmatprep.subr.mxu0 0.0
        %1460 = vmatpush1.msra.mxu0 0.0
        %1461 = vmatprep.subr.mxu0 0.0
        %1462 = vmatpush1.msra.mxu0 0.0
        %1463 = vmatprep.subr.mxu0 0.0
        %1464 = vmatpush1.msra.mxu0 0.0
        %1465 = vmatprep.subr.mxu0 0.0
        %1466 = vmatpush1.msra.mxu0 0.0
        %1467 = vmatprep.subr.mxu0 0.0
        %1468 = vmatpush1.msra.mxu0 0.0
        %1469 = vmatprep.subr.mxu0 0.0
        %1470 = vmatpush1.msra.mxu0 0.0
        %1471 = vmatprep.subr.mxu0 0.0
        %1472 = vmatpush1.msra.mxu0 0.0
        %1473 = vmatprep.subr.mxu0 0.0
        %1474 = vmatpush1.msra.mxu0 0.0
        %1475 = vmatprep.subr.mxu0 0.0
        %1476 = vmatpush1.msra.mxu0 0.0
        %1477 = vmatprep.subr.mxu0 0.0
        %1478 = vmatpush1.msra.mxu0 0.0
        %1479 = vmatprep.subr.mxu0 0.0
        %1480 = vmatpush1.msra.mxu0 0.0
        %1481 = vmatprep.subr.mxu0 0.0
        %1482 = vmatpush1.msra.mxu0 0.0
        %1483 = vmatprep.subr.mxu0 0.0
        %1484 = vmatpush1.msra.mxu0 0.0
        %1485 = vmatprep.subr.mxu0 0.0
        %1486 = vmatpush1.msra.mxu0 0.0
        %1487 = vmatprep.mubr.f32.mxu0 0.0
        %1488 = vmatmul.mubr.f32.gmra.mrb[0].mxu0 %v1421
        %v1489 = vpop.f32.mrb[0].mxu0
        %v1490 = vadd.f32 %v1417, %v1489
        %v1491 = vpop.f32.mrb[0].mxu0
        %1492 = vdwg.mxu0
        %v1493 = vadd.f32 %v1310, %v1490
        %v1494 = vld [vmem:[%s14] sm:$0x1]
        %v1495 = vld [vmem:[%s15] sm:$0x1]
        %v1496 = vsel %vm677, %v1493, 0.0
        %1497 = vadd.xlane.f32.xlu0 %v1496
        %v1498 = vpop.xlane.xlu0 %1497
        %v1499 = vmul.f32 %v1498, %v681
        %v1500 = vsub.f32 %v1493, %v1499
        %v1501 = vmul.f32 %v1500, %v1500
        %v1502 = vsel %vm677, %v1501, 0.0
        %1503 = vadd.xlane.f32.xlu0 %v1502
        %v1504 = vpop.xlane.xlu0 %1503
        %v1505 = vmul.f32 %v1504, %v681
        %v1506 = vadd.f32 %v1505, 1e-12
        %v1507 = vrsqrt.pop %v1506
        %v1508 = vmul.f32 %v1500, %v1507
        %v1510 = vlaneseq
        %v1511 = vshrl.u32 %v1510, 7
        %v1512 = vsub.s32 0, %v1511
        %v1513 = vrot.slane %v1494, %v1512
        %v1515 = vmul.f32 %v1508, %v1513
        %v1517 = vlaneseq
        %v1518 = vshrl.u32 %v1517, 7
        %v1519 = vsub.s32 0, %v1518
        %v1520 = vrot.slane %v1495, %v1519
        %v1522 = vadd.f32 %v1515, %v1520
        %s1523 = scalar_lea.vmem %s4, 32
        %v1524 = vld [vmem:[%s1523] sm:$0xff]
        %v1525 = vld [vmem:[%s1523 + $0x8] sm:$0xff]
        %v1526 = vld [vmem:[%s1523 + $0x10] sm:$0xff]
        %v1527 = vld [vmem:[%s1523 + $0x18] sm:$0xff]
        %s1528 = scalar_lea.vmem %s5, 1
        %v1529 = vld [vmem:[%s1528] sm:$0x1]
        %v1531 = vlaneseq
        %v1532 = vshrl.u32 %v1531, 7
        %v1533 = vsub.s32 0, %v1532
        %v1534 = vrot.slane %v1529, %v1533
        %v1537 = vsel %vm677, %v1522, 0
        %1539 = vmatprep.subr.mxu0 0.0
        %1540 = vmatpush1.msra.mxu0 %v1524
        %1541 = vmatprep.subr.mxu0 0.0
        %1542 = vmatpush1.msra.mxu0 %v1525
        %1543 = vmatprep.subr.mxu0 0.0
        %1544 = vmatpush1.msra.mxu0 %v1526
        %1545 = vmatprep.subr.mxu0 0.0
        %1546 = vmatpush1.msra.mxu0 %v1527
        %1547 = vmatprep.subr.mxu0 0.0
        %1548 = vmatpush1.msra.mxu0 0.0
        %1549 = vmatprep.subr.mxu0 0.0
        %1550 = vmatpush1.msra.mxu0 0.0
        %1551 = vmatprep.subr.mxu0 0.0
        %1552 = vmatpush1.msra.mxu0 0.0
        %1553 = vmatprep.subr.mxu0 0.0
        %1554 = vmatpush1.msra.mxu0 0.0
        %1555 = vmatprep.subr.mxu0 0.0
        %1556 = vmatpush1.msra.mxu0 0.0
        %1557 = vmatprep.subr.mxu0 0.0
        %1558 = vmatpush1.msra.mxu0 0.0
        %1559 = vmatprep.subr.mxu0 0.0
        %1560 = vmatpush1.msra.mxu0 0.0
        %1561 = vmatprep.subr.mxu0 0.0
        %1562 = vmatpush1.msra.mxu0 0.0
        %1563 = vmatprep.subr.mxu0 0.0
        %1564 = vmatpush1.msra.mxu0 0.0
        %1565 = vmatprep.subr.mxu0 0.0
        %1566 = vmatpush1.msra.mxu0 0.0
        %1567 = vmatprep.subr.mxu0 0.0
        %1568 = vmatpush1.msra.mxu0 0.0
        %1569 = vmatprep.subr.mxu0 0.0
        %1570 = vmatpush1.msra.mxu0 0.0
        %1571 = vmatprep.subr.mxu0 0.0
        %1572 = vmatpush1.msra.mxu0 0.0
        %1573 = vmatprep.subr.mxu0 0.0
        %1574 = vmatpush1.msra.mxu0 0.0
        %1575 = vmatprep.subr.mxu0 0.0
        %1576 = vmatpush1.msra.mxu0 0.0
        %1577 = vmatprep.subr.mxu0 0.0
        %1578 = vmatpush1.msra.mxu0 0.0
        %1579 = vmatprep.subr.mxu0 0.0
        %1580 = vmatpush1.msra.mxu0 0.0
        %1581 = vmatprep.subr.mxu0 0.0
        %1582 = vmatpush1.msra.mxu0 0.0
        %1583 = vmatprep.subr.mxu0 0.0
        %1584 = vmatpush1.msra.mxu0 0.0
        %1585 = vmatprep.subr.mxu0 0.0
        %1586 = vmatpush1.msra.mxu0 0.0
        %1587 = vmatprep.subr.mxu0 0.0
        %1588 = vmatpush1.msra.mxu0 0.0
        %1589 = vmatprep.subr.mxu0 0.0
        %1590 = vmatpush1.msra.mxu0 0.0
        %1591 = vmatprep.subr.mxu0 0.0
        %1592 = vmatpush1.msra.mxu0 0.0
        %1593 = vmatprep.subr.mxu0 0.0
        %1594 = vmatpush1.msra.mxu0 0.0
        %1595 = vmatprep.subr.mxu0 0.0
        %1596 = vmatpush1.msra.mxu0 0.0
        %1597 = vmatprep.subr.mxu0 0.0
        %1598 = vmatpush1.msra.mxu0 0.0
        %1599 = vmatprep.subr.mxu0 0.0
        %1600 = vmatpush1.msra.mxu0 0.0
        %1601 = vmatprep.subr.mxu0 0.0
        %1602 = vmatpush1.msra.mxu0 0.0
        %1603 = vmatprep.mubr.f32.mxu0 0.0
        %1604 = vmatmul.mubr.f32.gmra.mrb[0].mxu0 %v1537
        %v1605 = vpop.f32.mrb[0].mxu0
        %v1606 = vadd.f32 %v1534, %v1605
        %v1607 = vpop.f32.mrb[0].mxu0
        %1608 = vdwg.mxu0
        %s1609 = scalar_lea.vmem %s6, 32
        %v1610 = vld [vmem:[%s1609] sm:$0xff]
        %v1611 = vld [vmem:[%s1609 + $0x8] sm:$0xff]
        %v1612 = vld [vmem:[%s1609 + $0x10] sm:$0xff]
        %v1613 = vld [vmem:[%s1609 + $0x18] sm:$0xff]
        %1615 = vrot.lane.b32.xlu0 %v1606, 96
        %v1616 = vpop.permute.xlu0 %1615
        %v1617 = vsel %vm797, %v1606, 0
        %v1619 = vsel %vm797, %v1616, 0
        %1621 = vmatprep.subr.mxu0 0.0
        %1622 = vmatpush1.xpose.msra.mxu0 %v1619
        %1623 = vmatprep.subr.mxu0 0.0
        %1624 = vmatpush1.xpose.msra.mxu0 0.0
        %1625 = vmatprep.subr.mxu0 0.0
        %1626 = vmatpush1.xpose.msra.mxu0 0.0
        %1627 = vmatprep.subr.mxu0 0.0
        %1628 = vmatpush1.xpose.msra.mxu0 0.0
        %1629 = vmatprep.subr.mxu0 0.0
        %1630 = vmatpush1.xpose.msra.mxu0 0.0
        %1631 = vmatprep.subr.mxu0 0.0
        %1632 = vmatpush1.xpose.msra.mxu0 0.0
        %1633 = vmatprep.subr.mxu0 0.0
        %1634 = vmatpush1.xpose.msra.mxu0 0.0
        %1635 = vmatprep.subr.mxu0 0.0
        %1636 = vmatpush1.xpose.msra.mxu0 0.0
        %1637 = vmatprep.subr.mxu0 0.0
        %1638 = vmatpush1.xpose.msra.mxu0 0.0
        %1639 = vmatprep.subr.mxu0 0.0
        %1640 = vmatpush1.xpose.msra.mxu0 0.0
        %1641 = vmatprep.subr.mxu0 0.0
        %1642 = vmatpush1.xpose.msra.mxu0 0.0
        %1643 = vmatprep.subr.mxu0 0.0
        %1644 = vmatpush1.xpose.msra.mxu0 0.0
        %1645 = vmatprep.subr.mxu0 0.0
        %1646 = vmatpush1.xpose.msra.mxu0 0.0
        %1647 = vmatprep.subr.mxu0 0.0
        %1648 = vmatpush1.xpose.msra.mxu0 0.0
        %1649 = vmatprep.subr.mxu0 0.0
        %1650 = vmatpush1.xpose.msra.mxu0 0.0
        %1651 = vmatprep.subr.mxu0 0.0
        %1652 = vmatpush1.xpose.msra.mxu0 0.0
        %1653 = vmatprep.subr.mxu0 0.0
        %1654 = vmatpush1.xpose.msra.mxu0 0.0
        %1655 = vmatprep.subr.mxu0 0.0
        %1656 = vmatpush1.xpose.msra.mxu0 0.0
        %1657 = vmatprep.subr.mxu0 0.0
        %1658 = vmatpush1.xpose.msra.mxu0 0.0
        %1659 = vmatprep.subr.mxu0 0.0
        %1660 = vmatpush1.xpose.msra.mxu0 0.0
        %1661 = vmatprep.subr.mxu0 0.0
        %1662 = vmatpush1.xpose.msra.mxu0 0.0
        %1663 = vmatprep.subr.mxu0 0.0
        %1664 = vmatpush1.xpose.msra.mxu0 0.0
        %1665 = vmatprep.subr.mxu0 0.0
        %1666 = vmatpush1.xpose.msra.mxu0 0.0
        %1667 = vmatprep.subr.mxu0 0.0
        %1668 = vmatpush1.xpose.msra.mxu0 0.0
        %1669 = vmatprep.subr.mxu0 0.0
        %1670 = vmatpush1.xpose.msra.mxu0 0.0
        %1671 = vmatprep.subr.mxu0 0.0
        %1672 = vmatpush1.xpose.msra.mxu0 0.0
        %1673 = vmatprep.subr.mxu0 0.0
        %1674 = vmatpush1.xpose.msra.mxu0 0.0
        %1675 = vmatprep.subr.mxu0 0.0
        %1676 = vmatpush1.xpose.msra.mxu0 0.0
        %1677 = vmatprep.subr.mxu0 0.0
        %1678 = vmatpush1.xpose.msra.mxu0 0.0
        %1679 = vmatprep.subr.mxu0 0.0
        %1680 = vmatpush1.xpose.msra.mxu0 0.0
        %1681 = vmatprep.subr.mxu0 0.0
        %1682 = vmatpush1.xpose.msra.mxu0 0.0
        %1683 = vmatprep.subr.mxu0 0.0
        %1684 = vmatpush1.xpose.msra.mxu0 0.0
        %1685 = vmatprep.mubr.f32.mxu0 0.0
        %1686 = vmatmul.mubr.f32.gmra.mrb[0].mxu0 %v1617
        %v1687 = vpop.f32.mrb[0].mxu0
        %v1688 = vadd.f32 0.0, %v1687
        %v1689 = vpop.f32.mrb[0].mxu0
        %1690 = vdwg.mxu0
        %v1691 = vmul.f32 %v1688, 0.25
        %v1692 = vsel %vm873, %v1691, -inf
        %1693 = vmax.xlane.f32.xlu0 %v1692
        %v1694 = vpop.xlane.xlu0 %1693
        %v1695 = vsub.f32 %v1691, %v1694
        %v1696 = vmul.f32 %v1695, 1.442695
        %v1697 = vpow.pop %v1696
        %v1698 = vsel %vm873, %v1697, 0.0
        %1699 = vadd.xlane.f32.xlu0 %v1698
        %v1700 = vpop.xlane.xlu0 %1699
        %v1701 = vrcp.pop %v1700
        %v1702 = vmul.f32 %v1697, %v1701
        %1703 = vrot.lane.b32.xlu0 %v1606, 64
        %v1704 = vpop.permute.xlu0 %1703
        %v1707 = vsel %vm873, %v1702, 0
        %1709 = vmatprep.subr.mxu0 0.0
        %1710 = vmatpush1.msra.mxu0 %v1704
        %1711 = vmatprep.subr.mxu0 0.0
        %1712 = vmatpush1.msra.mxu0 0.0
        %1713 = vmatprep.subr.mxu0 0.0
        %1714 = vmatpush1.msra.mxu0 0.0
        %1715 = vmatprep.subr.mxu0 0.0
        %1716 = vmatpush1.msra.mxu0 0.0
        %1717 = vmatprep.subr.mxu0 0.0
        %1718 = vmatpush1.msra.mxu0 0.0
        %1719 = vmatprep.subr.mxu0 0.0
        %1720 = vmatpush1.msra.mxu0 0.0
        %1721 = vmatprep.subr.mxu0 0.0
        %1722 = vmatpush1.msra.mxu0 0.0
        %1723 = vmatprep.subr.mxu0 0.0
        %1724 = vmatpush1.msra.mxu0 0.0
        %1725 = vmatprep.subr.mxu0 0.0
        %1726 = vmatpush1.msra.mxu0 0.0
        %1727 = vmatprep.subr.mxu0 0.0
        %1728 = vmatpush1.msra.mxu0 0.0
        %1729 = vmatprep.subr.mxu0 0.0
        %1730 = vmatpush1.msra.mxu0 0.0
        %1731 = vmatprep.subr.mxu0 0.0
        %1732 = vmatpush1.msra.mxu0 0.0
        %1733 = vmatprep.subr.mxu0 0.0
        %1734 = vmatpush1.msra.mxu0 0.0
        %1735 = vmatprep.subr.mxu0 0.0
        %1736 = vmatpush1.msra.mxu0 0.0
        %1737 = vmatprep.subr.mxu0 0.0
        %1738 = vmatpush1.msra.mxu0 0.0
        %1739 = vmatprep.subr.mxu0 0.0
        %1740 = vmatpush1.msra.mxu0 0.0
        %1741 = vmatprep.subr.mxu0 0.0
        %1742 = vmatpush1.msra.mxu0 0.0
        %1743 = vmatprep.subr.mxu0 0.0
        %1744 = vmatpush1.msra.mxu0 0.0
        %1745 = vmatprep.subr.mxu0 0.0
        %1746 = vmatpush1.msra.mxu0 0.0
        %1747 = vmatprep.subr.mxu0 0.0
        %1748 = vmatpush1.msra.mxu0 0.0
        %1749 = vmatprep.subr.mxu0 0.0
        %1750 = vmatpush1.msra.mxu0 0.0
        %1751 = vmatprep.subr.mxu0 0.0
        %1752 = vmatpush1.msra.mxu0 0.0
        %1753 = vmatprep.subr.mxu0 0.0
        %1754 = vmatpush1.msra.mxu0 0.0
        %1755 = vmatprep.subr.mxu0 0.0
        %1756 = vmatpush1.msra.mxu0 0.0
        %1757 = vmatprep.subr.mxu0 0.0
        %1758 = vmatpush1.msra.mxu0 0.0
        %1759 = vmatprep.subr.mxu0 0.0
        %1760 = vmatpush1.msra.mxu0 0.0
        %1761 = vmatprep.subr.mxu0 0.0
        %1762 = vmatpush1.msra.mxu0 0.0
        %1763 = vmatprep.subr.mxu0 0.0
        %1764 = vmatpush1.msra.mxu0 0.0
        %1765 = vmatprep.subr.mxu0 0.0
        %1766 = vmatpush1.msra.mxu0 0.0
        %1767 = vmatprep.subr.mxu0 0.0
        %1768 = vmatpush1.msra.mxu0 0.0
        %1769 = vmatprep.subr.mxu0 0.0
        %1770 = vmatpush1.msra.mxu0 0.0
        %1771 = vmatprep.subr.mxu0 0.0
        %1772 = vmatpush1.msra.mxu0 0.0
        %1773 = vmatprep.mubr.f32.mxu0 0.0
        %1774 = vmatmul.mubr.f32.gmra.mrb[0].mxu0 %v1707
        %v1775 = vpop.f32.mrb[0].mxu0
        %v1776 = vadd.f32 0.0, %v1775
        %v1777 = vpop.f32.mrb[0].mxu0
        %1778 = vdwg.mxu0
        %1779 = vrot.lane.b32.xlu0 %v1606, 112
        %v1780 = vpop.permute.xlu0 %1779
        %1781 = vrot.lane.b32.xlu0 %v1606, 80
        %v1782 = vpop.permute.xlu0 %1781
        %v1783 = vsel %vm797, %v1780, 0
        %v1785 = vsel %vm797, %v1782, 0
        %1787 = vmatprep.subr.mxu0 0.0
        %1788 = vmatpush1.xpose.msra.mxu0 %v1785
        %1789 = vmatprep.subr.mxu0 0.0
        %1790 = vmatpush1.xpose.msra.mxu0 0.0
        %1791 = vmatprep.subr.mxu0 0.0
        %1792 = vmatpush1.xpose.msra.mxu0 0.0
        %1793 = vmatprep.subr.mxu0 0.0
        %1794 = vmatpush1.xpose.msra.mxu0 0.0
        %1795 = vmatprep.subr.mxu0 0.0
        %1796 = vmatpush1.xpose.msra.mxu0 0.0
        %1797 = vmatprep.subr.mxu0 0.0
        %1798 = vmatpush1.xpose.msra.mxu0 0.0
        %1799 = vmatprep.subr.mxu0 0.0
        %1800 = vmatpush1.xpose.msra.mxu0 0.0
        %1801 = vmatprep.subr.mxu0 0.0
        %1802 = vmatpush1.xpose.msra.mxu0 0.0
        %1803 = vmatprep.subr.mxu0 0.0
        %1804 = vmatpush1.xpose.msra.mxu0 0.0
        %1805 = vmatprep.subr.mxu0 0.0
        %1806 = vmatpush1.xpose.msra.mxu0 0.0
        %1807 = vmatprep.subr.mxu0 0.0
        %1808 = vmatpush1.xpose.msra.mxu0 0.0
        %1809 = vmatprep.subr.mxu0 0.0
        %1810 = vmatpush1.xpose.msra.mxu0 0.0
        %1811 = vmatprep.subr.mxu0 0.0
        %1812 = vmatpush1.xpose.msra.mxu0 0.0
        %1813 = vmatprep.subr.mxu0 0.0
        %1814 = vmatpush1.xpose.msra.mxu0 0.0
        %1815 = vmatprep.subr.mxu0 0.0
        %1816 = vmatpush1.xpose.msra.mxu0 0.0
        %1817 = vmatprep.subr.mxu0 0.0
        %1818 = vmatpush1.xpose.msra.mxu0 0.0
        %1819 = vmatprep.subr.mxu0 0.0
        %1820 = vmatpush1.xpose.msra.mxu0 0.0
        %1821 = vmatprep.subr.mxu0 0.0
        %1822 = vmatpush1.xpose.msra.mxu0 0.0
        %1823 = vmatprep.subr.mxu0 0.0
        %1824 = vmatpush1.xpose.msra.mxu0 0.0
        %1825 = vmatprep.subr.mxu0 0.0
        %1826 = vmatpush1.xpose.msra.mxu0 0.0
        %1827 = vmatprep.subr.mxu0 0.0
        %1828 = vmatpush1.xpose.msra.mxu0 0.0
        %1829 = vmatprep.subr.mxu0 0.0
        %1830 = vmatpush1.xpose.msra.mxu0 0.0
        %1831 = vmatprep.subr.mxu0 0.0
        %1832 = vmatpush1.xpose.msra.mxu0 0.0
        %1833 = vmatprep.subr.mxu0 0.0
        %1834 = vmatpush1.xpose.msra.mxu0 0.0
        %1835 = vmatprep.subr.mxu0 0.0
        %1836 = vmatpush1.xpose.msra.mxu0 0.0
        %1837 = vmatprep.subr.mxu0 0.0
        %1838 = vmatpush1.xpose.msra.mxu0 0.0
        %1839 = vmatprep.subr.mxu0 0.0
        %1840 = vmatpush1.xpose.msra.mxu0 0.0
        %1841 = vmatprep.subr.mxu0 0.0
        %1842 = vmatpush1.xpose.msra.mxu0 0.0
        %1843 = vmatprep.subr.mxu0 0.0
        %1844 = vmatpush1.xpose.msra.mxu0 0.0
        %1845 = vmatprep.subr.mxu0 0.0
        %1846 = vmatpush1.xpose.msra.mxu0 0.0
        %1847 = vmatprep.subr.mxu0 0.0
        %1848 = vmatpush1.xpose.msra.mxu0 0.0
        %1849 = vmatprep.subr.mxu0 0.0
        %1850 = vmatpush1.xpose.msra.mxu0 0.0
        %1851 = vmatprep.mubr.f32.mxu0 0.0
        %1852 = vmatmul.mubr.f32.gmra.mrb[0].mxu0 %v1783
        %v1853 = vpop.f32.mrb[0].mxu0
        %v1854 = vadd.f32 0.0, %v1853
        %v1855 = vpop.f32.mrb[0].mxu0
        %1856 = vdwg.mxu0
        %v1857 = vmul.f32 %v1854, 0.25
        %v1858 = vsel %vm873, %v1857, -inf
        %1859 = vmax.xlane.f32.xlu0 %v1858
        %v1860 = vpop.xlane.xlu0 %1859
        %v1861 = vsub.f32 %v1857, %v1860
        %v1862 = vmul.f32 %v1861, 1.442695
        %v1863 = vpow.pop %v1862
        %v1864 = vsel %vm873, %v1863, 0.0
        %1865 = vadd.xlane.f32.xlu0 %v1864
        %v1866 = vpop.xlane.xlu0 %1865
        %v1867 = vrcp.pop %v1866
        %v1868 = vmul.f32 %v1863, %v1867
        %1869 = vrot.lane.b32.xlu0 %v1606, 48
        %v1870 = vpop.permute.xlu0 %1869
        %v1873 = vsel %vm873, %v1868, 0
        %1875 = vmatprep.subr.mxu0 0.0
        %1876 = vmatpush1.msra.mxu0 %v1870
        %1877 = vmatprep.subr.mxu0 0.0
        %1878 = vmatpush1.msra.mxu0 0.0
        %1879 = vmatprep.subr.mxu0 0.0
        %1880 = vmatpush1.msra.mxu0 0.0
        %1881 = vmatprep.subr.mxu0 0.0
        %1882 = vmatpush1.msra.mxu0 0.0
        %1883 = vmatprep.subr.mxu0 0.0
        %1884 = vmatpush1.msra.mxu0 0.0
        %1885 = vmatprep.subr.mxu0 0.0
        %1886 = vmatpush1.msra.mxu0 0.0
        %1887 = vmatprep.subr.mxu0 0.0
        %1888 = vmatpush1.msra.mxu0 0.0
        %1889 = vmatprep.subr.mxu0 0.0
        %1890 = vmatpush1.msra.mxu0 0.0
        %1891 = vmatprep.subr.mxu0 0.0
        %1892 = vmatpush1.msra.mxu0 0.0
        %1893 = vmatprep.subr.mxu0 0.0
        %1894 = vmatpush1.msra.mxu0 0.0
        %1895 = vmatprep.subr.mxu0 0.0
        %1896 = vmatpush1.msra.mxu0 0.0
        %1897 = vmatprep.subr.mxu0 0.0
        %1898 = vmatpush1.msra.mxu0 0.0
        %1899 = vmatprep.subr.mxu0 0.0
        %1900 = vmatpush1.msra.mxu0 0.0
        %1901 = vmatprep.subr.mxu0 0.0
        %1902 = vmatpush1.msra.mxu0 0.0
        %1903 = vmatprep.subr.mxu0 0.0
        %1904 = vmatpush1.msra.mxu0 0.0
        %1905 = vmatprep.subr.mxu0 0.0
        %1906 = vmatpush1.msra.mxu0 0.0
        %1907 = vmatprep.subr.mxu0 0.0
        %1908 = vmatpush1.msra.mxu0 0.0
        %1909 = vmatprep.subr.mxu0 0.0
        %1910 = vmatpush1.msra.mxu0 0.0
        %1911 = vmatprep.subr.mxu0 0.0
        %1912 = vmatpush1.msra.mxu0 0.0
        %1913 = vmatprep.subr.mxu0 0.0
        %1914 = vmatpush1.msra.mxu0 0.0
        %1915 = vmatprep.subr.mxu0 0.0
        %1916 = vmatpush1.msra.mxu0 0.0
        %1917 = vmatprep.subr.mxu0 0.0
        %1918 = vmatpush1.msra.mxu0 0.0
        %1919 = vmatprep.subr.mxu0 0.0
        %1920 = vmatpush1.msra.mxu0 0.0
        %1921 = vmatprep.subr.mxu0 0.0
        %1922 = vmatpush1.msra.mxu0 0.0
        %1923 = vmatprep.subr.mxu0 0.0
        %1924 = vmatpush1.msra.mxu0 0.0
        %1925 = vmatprep.subr.mxu0 0.0
        %1926 = vmatpush1.msra.mxu0 0.0
        %1927 = vmatprep.subr.mxu0 0.0
        %1928 = vmatpush1.msra.mxu0 0.0
        %1929 = vmatprep.subr.mxu0 0.0
        %1930 = vmatpush1.msra.mxu0 0.0
        %1931 = vmatprep.subr.mxu0 0.0
        %1932 = vmatpush1.msra.mxu0 0.0
        %1933 = vmatprep.subr.mxu0 0.0
        %1934 = vmatpush1.msra.mxu0 0.0
        %1935 = vmatprep.subr.mxu0 0.0
        %1936 = vmatpush1.msra.mxu0 0.0
        %1937 = vmatprep.subr.mxu0 0.0
        %1938 = vmatpush1.msra.mxu0 0.0
        %1939 = vmatprep.mubr.f32.mxu0 0.0
        %1940 = vmatmul.mubr.f32.gmra.mrb[0].mxu0 %v1873
        %v1941 = vpop.f32.mrb[0].mxu0
        %v1942 = vadd.f32 0.0, %v1941
        %v1943 = vpop.f32.mrb[0].mxu0
        %1944 = vdwg.mxu0
        %v1946 = vsel %vm797, %v1942, 0
        %1948 = vmatprep.subr.mxu0 0.0
        %1949 = vmatpush1.msra.mxu0 %v1612
        %1950 = vmatprep.subr.mxu0 0.0
        %1951 = vmatpush1.msra.mxu0 %v1613
        %1952 = vmatprep.subr.mxu0 0.0
        %1953 = vmatpush1.msra.mxu0 0.0
        %1954 = vmatprep.subr.mxu0 0.0
        %1955 = vmatpush1.msra.mxu0 0.0
        %1956 = vmatprep.subr.mxu0 0.0
        %1957 = vmatpush1.msra.mxu0 0.0
        %1958 = vmatprep.subr.mxu0 0.0
        %1959 = vmatpush1.msra.mxu0 0.0
        %1960 = vmatprep.subr.mxu0 0.0
        %1961 = vmatpush1.msra.mxu0 0.0
        %1962 = vmatprep.subr.mxu0 0.0
        %1963 = vmatpush1.msra.mxu0 0.0
        %1964 = vmatprep.subr.mxu0 0.0
        %1965 = vmatpush1.msra.mxu0 0.0
        %1966 = vmatprep.subr.mxu0 0.0
        %1967 = vmatpush1.msra.mxu0 0.0
        %1968 = vmatprep.subr.mxu0 0.0
        %1969 = vmatpush1.msra.mxu0 0.0
        %1970 = vmatprep.subr.mxu0 0.0
        %1971 = vmatpush1.msra.mxu0 0.0
        %1972 = vmatprep.subr.mxu0 0.0
        %1973 = vmatpush1.msra.mxu0 0.0
        %1974 = vmatprep.subr.mxu0 0.0
        %1975 = vmatpush1.msra.mxu0 0.0
        %1976 = vmatprep.subr.mxu0 0.0
        %1977 = vmatpush1.msra.mxu0 0.0
        %1978 = vmatprep.subr.mxu0 0.0
        %1979 = vmatpush1.msra.mxu0 0.0
        %1980 = vmatprep.subr.mxu0 0.0
        %1981 = vmatpush1.msra.mxu0 0.0
        %1982 = vmatprep.subr.mxu0 0.0
        %1983 = vmatpush1.msra.mxu0 0.0
        %1984 = vmatprep.subr.mxu0 0.0
        %1985 = vmatpush1.msra.mxu0 0.0
        %1986 = vmatprep.subr.mxu0 0.0
        %1987 = vmatpush1.msra.mxu0 0.0
        %1988 = vmatprep.subr.mxu0 0.0
        %1989 = vmatpush1.msra.mxu0 0.0
        %1990 = vmatprep.subr.mxu0 0.0
        %1991 = vmatpush1.msra.mxu0 0.0
        %1992 = vmatprep.subr.mxu0 0.0
        %1993 = vmatpush1.msra.mxu0 0.0
        %1994 = vmatprep.subr.mxu0 0.0
        %1995 = vmatpush1.msra.mxu0 0.0
        %1996 = vmatprep.subr.mxu0 0.0
        %1997 = vmatpush1.msra.mxu0 0.0
        %1998 = vmatprep.subr.mxu0 0.0
        %1999 = vmatpush1.msra.mxu0 0.0
        %2000 = vmatprep.subr.mxu0 0.0
        %2001 = vmatpush1.msra.mxu0 0.0
        %2002 = vmatprep.subr.mxu0 0.0
        %2003 = vmatpush1.msra.mxu0 0.0
        %2004 = vmatprep.subr.mxu0 0.0
        %2005 = vmatpush1.msra.mxu0 0.0
        %2006 = vmatprep.subr.mxu0 0.0
        %2007 = vmatpush1.msra.mxu0 0.0
        %2008 = vmatprep.subr.mxu0 0.0
        %2009 = vmatpush1.msra.mxu0 0.0
        %2010 = vmatprep.subr.mxu0 0.0
        %2011 = vmatpush1.msra.mxu0 0.0
        %2012 = vmatprep.mubr.f32.mxu0 0.0
        %2013 = vmatmul.mubr.f32.gmra.mrb[0].mxu0 %v1946
        %v2014 = vpop.f32.mrb[0].mxu0
        %v2015 = vadd.f32 0.0, %v2014
        %v2016 = vpop.f32.mrb[0].mxu0
        %2017 = vdwg.mxu0
        %v2019 = vsel %vm797, %v1776, 0
        %2021 = vmatprep.subr.mxu0 0.0
        %2022 = vmatpush1.msra.mxu0 %v1610
        %2023 = vmatprep.subr.mxu0 0.0
        %2024 = vmatpush1.msra.mxu0 %v1611
        %2025 = vmatprep.subr.mxu0 0.0
        %2026 = vmatpush1.msra.mxu0 0.0
        %2027 = vmatprep.subr.mxu0 0.0
        %2028 = vmatpush1.msra.mxu0 0.0
        %2029 = vmatprep.subr.mxu0 0.0
        %2030 = vmatpush1.msra.mxu0 0.0
        %2031 = vmatprep.subr.mxu0 0.0
        %2032 = vmatpush1.msra.mxu0 0.0
        %2033 = vmatprep.subr.mxu0 0.0
        %2034 = vmatpush1.msra.mxu0 0.0
        %2035 = vmatprep.subr.mxu0 0.0
        %2036 = vmatpush1.msra.mxu0 0.0
        %2037 = vmatprep.subr.mxu0 0.0
        %2038 = vmatpush1.msra.mxu0 0.0
        %2039 = vmatprep.subr.mxu0 0.0
        %2040 = vmatpush1.msra.mxu0 0.0
        %2041 = vmatprep.subr.mxu0 0.0
        %2042 = vmatpush1.msra.mxu0 0.0
        %2043 = vmatprep.subr.mxu0 0.0
        %2044 = vmatpush1.msra.mxu0 0.0
        %2045 = vmatprep.subr.mxu0 0.0
        %2046 = vmatpush1.msra.mxu0 0.0
        %2047 = vmatprep.subr.mxu0 0.0
        %2048 = vmatpush1.msra.mxu0 0.0
        %2049 = vmatprep.subr.mxu0 0.0
        %2050 = vmatpush1.msra.mxu0 0.0
        %2051 = vmatprep.subr.mxu0 0.0
        %2052 = vmatpush1.msra.mxu0 0.0
        %2053 = vmatprep.subr.mxu0 0.0
        %2054 = vmatpush1.msra.mxu0 0.0
        %2055 = vmatprep.subr.mxu0 0.0
        %2056 = vmatpush1.msra.mxu0 0.0
        %2057 = vmatprep.subr.mxu0 0.0
        %2058 = vmatpush1.msra.mxu0 0.0
        %2059 = vmatprep.subr.mxu0 0.0
        %2060 = vmatpush1.msra.mxu0 0.0
        %2061 = vmatprep.subr.mxu0 0.0
        %2062 = vmatpush1.msra.mxu0 0.0
        %2063 = vmatprep.subr.mxu0 0.0
        %2064 = vmatpush1.msra.mxu0 0.0
        %2065 = vmatprep.subr.mxu0 0.0
        %2066 = vmatpush1.msra.mxu0 0.0
        %2067 = vmatprep.subr.mxu0 0.0
        %2068 = vmatpush1.msra.mxu0 0.0
        %2069 = vmatprep.subr.mxu0 0.0
        %2070 = vmatpush1.msra.mxu0 0.0
        %2071 = vmatprep.subr.mxu0 0.0
        %2072 = vmatpush1.msra.mxu0 0.0
        %2073 = vmatprep.subr.mxu0 0.0
        %2074 = vmatpush1.msra.mxu0 0.0
        %2075 = vmatprep.subr.mxu0 0.0
        %2076 = vmatpush1.msra.mxu0 0.0
        %2077 = vmatprep.subr.mxu0 0.0
        %2078 = vmatpush1.msra.mxu0 0.0
        %2079 = vmatprep.subr.mxu0 0.0
        %2080 = vmatpush1.msra.mxu0 0.0
        %2081 = vmatprep.subr.mxu0 0.0
        %2082 = vmatpush1.msra.mxu0 0.0
        %2083 = vmatprep.subr.mxu0 0.0
        %2084 = vmatpush1.msra.mxu0 0.0
        %2085 = vmatprep.mubr.f32.mxu0 0.0
        %2086 = vmatmul.mubr.f32.gmra.mrb[0].mxu0 %v2019
        %v2087 = vpop.f32.mrb[0].mxu0
        %v2088 = vadd.f32 %v2015, %v2087
        %v2089 = vpop.f32.mrb[0].mxu0
        %2090 = vdwg.mxu0
        %s2091 = scalar_lea.vmem [#allocation10], 1
        %v2092 = vld [vmem:[%s2091] sm:$0x1]
        %v2094 = vlaneseq
        %v2095 = vshrl.u32 %v2094, 7
        %v2096 = vsub.s32 0, %v2095
        %v2097 = vrot.slane %v2092, %v2096
        %v2099 = vadd.f32 %v2088, %v2097
        %v2100 = vadd.f32 %v1522, %v2099
        %s2101 = scalar_lea.vmem [#allocation11], 1
        %v2102 = vld [vmem:[%s2101] sm:$0x1]
        %s2103 = scalar_lea.vmem [#allocation13], 1
        %v2104 = vld [vmem:[%s2103] sm:$0x1]
        %v2105 = vsel %vm677, %v2100, 0.0
        %2106 = vadd.xlane.f32.xlu0 %v2105
        %v2107 = vpop.xlane.xlu0 %2106
        %v2108 = vmul.f32 %v2107, %v681
        %v2109 = vsub.f32 %v2100, %v2108
        %v2110 = vmul.f32 %v2109, %v2109
        %v2111 = vsel %vm677, %v2110, 0.0
        %2112 = vadd.xlane.f32.xlu0 %v2111
        %v2113 = vpop.xlane.xlu0 %2112
        %v2114 = vmul.f32 %v2113, %v681
        %v2115 = vadd.f32 %v2114, 1e-12
        %v2116 = vrsqrt.pop %v2115
        %v2117 = vmul.f32 %v2109, %v2116
        %v2119 = vlaneseq
        %v2120 = vshrl.u32 %v2119, 7
        %v2121 = vsub.s32 0, %v2120
        %v2122 = vrot.slane %v2102, %v2121
        %v2124 = vmul.f32 %v2117, %v2122
        %v2126 = vlaneseq
        %v2127 = vshrl.u32 %v2126, 7
        %v2128 = vsub.s32 0, %v2127
        %v2129 = vrot.slane %v2104, %v2128
        %v2131 = vadd.f32 %v2124, %v2129
        %s2132 = scalar_lea.vmem %s10, 32
        %v2133 = vld [vmem:[%s2132] sm:$0xff]
        %v2134 = vld [vmem:[%s2132 + $0x8] sm:$0xff]
        %v2135 = vld [vmem:[%s2132 + $0x10] sm:$0xff]
        %v2136 = vld [vmem:[%s2132 + $0x18] sm:$0xff]
        %s2137 = scalar_lea.vmem %s11, 1
        %v2138 = vld [vmem:[%s2137] sm:$0x1]
        %v2140 = vlaneseq
        %v2141 = vshrl.u32 %v2140, 7
        %v2142 = vsub.s32 0, %v2141
        %v2143 = vrot.slane %v2138, %v2142
        %v2146 = vsel %vm677, %v2131, 0
        %2148 = vmatprep.subr.mxu0 0.0
        %2149 = vmatpush1.msra.mxu0 %v2133
        %2150 = vmatprep.subr.mxu0 0.0
        %2151 = vmatpush1.msra.mxu0 %v2134
        %2152 = vmatprep.subr.mxu0 0.0
        %2153 = vmatpush1.msra.mxu0 %v2135
        %2154 = vmatprep.subr.mxu0 0.0
        %2155 = vmatpush1.msra.mxu0 %v2136
        %2156 = vmatprep.subr.mxu0 0.0
        %2157 = vmatpush1.msra.mxu0 0.0
        %2158 = vmatprep.subr.mxu0 0.0
        %2159 = vmatpush1.msra.mxu0 0.0
        %2160 = vmatprep.subr.mxu0 0.0
        %2161 = vmatpush1.msra.mxu0 0.0
        %2162 = vmatprep.subr.mxu0 0.0
        %2163 = vmatpush1.msra.mxu0 0.0
        %2164 = vmatprep.subr.mxu0 0.0
        %2165 = vmatpush1.msra.mxu0 0.0
        %2166 = vmatprep.subr.mxu0 0.0
        %2167 = vmatpush1.msra.mxu0 0.0
        %2168 = vmatprep.subr.mxu0 0.0
        %2169 = vmatpush1.msra.mxu0 0.0
        %2170 = vmatprep.subr.mxu0 0.0
        %2171 = vmatpush1.msra.mxu0 0.0
        %2172 = vmatprep.subr.mxu0 0.0
        %2173 = vmatpush1.msra.mxu0 0.0
        %2174 = vmatprep.subr.mxu0 0.0
        %2175 = vmatpush1.msra.mxu0 0.0
        %2176 = vmatprep.subr.mxu0 0.0
        %2177 = vmatpush1.msra.mxu0 0.0
        %2178 = vmatprep.subr.mxu0 0.0
        %2179 = vmatpush1.msra.mxu0 0.0
        %2180 = vmatprep.subr.mxu0 0.0
        %2181 = vmatpush1.msra.mxu0 0.0
        %2182 = vmatprep.subr.mxu0 0.0
        %2183 = vmatpush1.msra.mxu0 0.0
        %2184 = vmatprep.subr.mxu0 0.0
        %2185 = vmatpush1.msra.mxu0 0.0
        %2186 = vmatprep.subr.mxu0 0.0
        %2187 = vmatpush1.msra.mxu0 0.0
        %2188 = vmatprep.subr.mxu0 0.0
        %2189 = vmatpush1.msra.mxu0 0.0
        %2190 = vmatprep.subr.mxu0 0.0
        %2191 = vmatpush1.msra.mxu0 0.0
        %2192 = vmatprep.subr.mxu0 0.0
        %2193 = vmatpush1.msra.mxu0 0.0
        %2194 = vmatprep.subr.mxu0 0.0
        %2195 = vmatpush1.msra.mxu0 0.0
        %2196 = vmatprep.subr.mxu0 0.0
        %2197 = vmatpush1.msra.mxu0 0.0
        %2198 = vmatprep.subr.mxu0 0.0
        %2199 = vmatpush1.msra.mxu0 0.0
        %2200 = vmatprep.subr.mxu0 0.0
        %2201 = vmatpush1.msra.mxu0 0.0
        %2202 = vmatprep.subr.mxu0 0.0
        %2203 = vmatpush1.msra.mxu0 0.0
        %2204 = vmatprep.subr.mxu0 0.0
        %2205 = vmatpush1.msra.mxu0 0.0
        %2206 = vmatprep.subr.mxu0 0.0
        %2207 = vmatpush1.msra.mxu0 0.0
        %2208 = vmatprep.subr.mxu0 0.0
        %2209 = vmatpush1.msra.mxu0 0.0
        %2210 = vmatprep.subr.mxu0 0.0
        %2211 = vmatpush1.msra.mxu0 0.0
        %2212 = vmatprep.mubr.f32.mxu0 0.0
        %2213 = vmatmul.mubr.f32.gmra.mrb[0].mxu0 %v2146
        %v2214 = vpop.f32.mrb[0].mxu0
        %v2215 = vadd.f32 %v2143, %v2214
        %v2216 = vpop.f32.mrb[0].mxu0
        %2217 = vdwg.mxu0
        %v2218 = vmul.f32 %v2215, %v2215
        %v2219 = vmul.f32 %v2215, %v2218
        %v2220 = vmul.f32 %v2219, 0.044715
        %v2221 = vadd.f32 %v2215, %v2220
        %v2222 = vmul.f32 %v2221, 0.7978846
        %v2223 = vtanh.pop %v2222
        %v2224 = vadd.f32 %v2223, 1.0
        %v2225 = vmul.f32 %v2224, 0.5
        %v2226 = vmul.f32 %v2215, %v2225
        %s2227 = scalar_lea.vmem %s12, 64
        %v2228 = vld [vmem:[%s2227] sm:$0xff]
        %v2229 = vld [vmem:[%s2227 + $0x8] sm:$0xff]
        %v2230 = vld [vmem:[%s2227 + $0x10] sm:$0xff]
        %v2231 = vld [vmem:[%s2227 + $0x18] sm:$0xff]
        %v2232 = vld [vmem:[%s2227 + $0x20] sm:$0xff]
        %v2233 = vld [vmem:[%s2227 + $0x28] sm:$0xff]
        %v2234 = vld [vmem:[%s2227 + $0x30] sm:$0xff]
        %v2235 = vld [vmem:[%s2227 + $0x38] sm:$0xff]
        %s2236 = scalar_lea.vmem %s13, 1
        %v2237 = vld [vmem:[%s2236] sm:$0x1]
        %v2239 = vlaneseq
        %v2240 = vshrl.u32 %v2239, 7
        %v2241 = vsub.s32 0, %v2240
        %v2242 = vrot.slane %v2237, %v2241
        %v2245 = vsel %vm1419, %v2226, 0
        %2247 = vmatprep.subr.mxu0 0.0
        %2248 = vmatpush1.msra.mxu0 %v2228
        %2249 = vmatprep.subr.mxu0 0.0
        %2250 = vmatpush1.msra.mxu0 %v2229
        %2251 = vmatprep.subr.mxu0 0.0
        %2252 = vmatpush1.msra.mxu0 %v2230
        %2253 = vmatprep.subr.mxu0 0.0
        %2254 = vmatpush1.msra.mxu0 %v2231
        %2255 = vmatprep.subr.mxu0 0.0
        %2256 = vmatpush1.msra.mxu0 %v2232
        %2257 = vmatprep.subr.mxu0 0.0
        %2258 = vmatpush1.msra.mxu0 %v2233
        %2259 = vmatprep.subr.mxu0 0.0
        %2260 = vmatpush1.msra.mxu0 %v2234
        %2261 = vmatprep.subr.mxu0 0.0
        %2262 = vmatpush1.msra.mxu0 %v2235
        %2263 = vmatprep.subr.mxu0 0.0
        %2264 = vmatpush1.msra.mxu0 0.0
        %2265 = vmatprep.subr.mxu0 0.0
        %2266 = vmatpush1.msra.mxu0 0.0
        %2267 = vmatprep.subr.mxu0 0.0
        %2268 = vmatpush1.msra.mxu0 0.0
        %2269 = vmatprep.subr.mxu0 0.0
        %2270 = vmatpush1.msra.mxu0 0.0
        %2271 = vmatprep.subr.mxu0 0.0
        %2272 = vmatpush1.msra.mxu0 0.0
        %2273 = vmatprep.subr.mxu0 0.0
        %2274 = vmatpush1.msra.mxu0 0.0
        %2275 = vmatprep.subr.mxu0 0.0
        %2276 = vmatpush1.msra.mxu0 0.0
        %2277 = vmatprep.subr.mxu0 0.0
        %2278 = vmatpush1.msra.mxu0 0.0
        %2279 = vmatprep.subr.mxu0 0.0
        %2280 = vmatpush1.msra.mxu0 0.0
        %2281 = vmatprep.subr.mxu0 0.0
        %2282 = vmatpush1.msra.mxu0 0.0
        %2283 = vmatprep.subr.mxu0 0.0
        %2284 = vmatpush1.msra.mxu0 0.0
        %2285 = vmatprep.subr.mxu0 0.0
        %2286 = vmatpush1.msra.mxu0 0.0
        %2287 = vmatprep.subr.mxu0 0.0
        %2288 = vmatpush1.msra.mxu0 0.0
        %2289 = vmatprep.subr.mxu0 0.0
        %2290 = vmatpush1.msra.mxu0 0.0
        %2291 = vmatprep.subr.mxu0 0.0
        %2292 = vmatpush1.msra.mxu0 0.0
        %2293 = vmatprep.subr.mxu0 0.0
        %2294 = vmatpush1.msra.mxu0 0.0
        %2295 = vmatprep.subr.mxu0 0.0
        %2296 = vmatpush1.msra.mxu0 0.0
        %2297 = vmatprep.subr.mxu0 0.0
        %2298 = vmatpush1.msra.mxu0 0.0
        %2299 = vmatprep.subr.mxu0 0.0
        %2300 = vmatpush1.msra.mxu0 0.0
        %2301 = vmatprep.subr.mxu0 0.0
        %2302 = vmatpush1.msra.mxu0 0.0
        %2303 = vmatprep.subr.mxu0 0.0
        %2304 = vmatpush1.msra.mxu0 0.0
        %2305 = vmatprep.subr.mxu0 0.0
        %2306 = vmatpush1.msra.mxu0 0.0
        %2307 = vmatprep.subr.mxu0 0.0
        %2308 = vmatpush1.msra.mxu0 0.0
        %2309 = vmatprep.subr.mxu0 0.0
        %2310 = vmatpush1.msra.mxu0 0.0
        %2311 = vmatprep.mubr.f32.mxu0 0.0
        %2312 = vmatmul.mubr.f32.gmra.mrb[0].mxu0 %v2245
        %v2313 = vpop.f32.mrb[0].mxu0
        %v2314 = vadd.f32 %v2242, %v2313
        %v2315 = vpop.f32.mrb[0].mxu0
        %2316 = vdwg.mxu0
        %v2317 = vadd.f32 %v2131, %v2314
        %s2318 = scalar_lea.vmem %s14, 1
        %v2319 = vld [vmem:[%s2318] sm:$0x1]
        %s2320 = scalar_lea.vmem %s15, 1
        %v2321 = vld [vmem:[%s2320] sm:$0x1]
        %v2322 = vsel %vm677, %v2317, 0.0
        %2323 = vadd.xlane.f32.xlu0 %v2322
        %v2324 = vpop.xlane.xlu0 %2323
        %v2325 = vmul.f32 %v2324, %v681
        %v2326 = vsub.f32 %v2317, %v2325
        %v2327 = vmul.f32 %v2326, %v2326
        %v2328 = vsel %vm677, %v2327, 0.0
        %2329 = vadd.xlane.f32.xlu0 %v2328
        %v2330 = vpop.xlane.xlu0 %2329
        %v2331 = vmul.f32 %v2330, %v681
        %v2332 = vadd.f32 %v2331, 1e-12
        %v2333 = vrsqrt.pop %v2332
        %v2334 = vmul.f32 %v2326, %v2333
        %v2336 = vlaneseq
        %v2337 = vshrl.u32 %v2336, 7
        %v2338 = vsub.s32 0, %v2337
        %v2339 = vrot.slane %v2319, %v2338
        %v2341 = vmul.f32 %v2334, %v2339
        %v2343 = vlaneseq
        %v2344 = vshrl.u32 %v2343, 7
        %v2345 = vsub.s32 0, %v2344
        %v2346 = vrot.slane %v2321, %v2345
        %v2348 = vadd.f32 %v2341, %v2346
        %v2349 = vld [vmem:[%s16] sm:$0xff]
        %v2350 = vld [vmem:[%s16 + $0x8] sm:$0xff]
        %v2351 = vld [vmem:[%s16 + $0x10] sm:$0xff]
        %v2352 = vld [vmem:[%s16 + $0x18] sm:$0xff]
        %v2353 = vld [vmem:[%s17] sm:$0x1]
        %v2355 = vlaneseq
        %v2356 = vshrl.u32 %v2355, 7
        %v2357 = vsub.s32 0, %v2356
        %v2358 = vrot.slane %v2353, %v2357
        %v2361 = vsel %vm677, %v2348, 0
        %2363 = vmatprep.subr.mxu0 0.0
        %2364 = vmatpush1.msra.mxu0 %v2349
        %2365 = vmatprep.subr.mxu0 0.0
        %2366 = vmatpush1.msra.mxu0 %v2350
        %2367 = vmatprep.subr.mxu0 0.0
        %2368 = vmatpush1.msra.mxu0 %v2351
        %2369 = vmatprep.subr.mxu0 0.0
        %2370 = vmatpush1.msra.mxu0 %v2352
        %2371 = vmatprep.subr.mxu0 0.0
        %2372 = vmatpush1.msra.mxu0 0.0
        %2373 = vmatprep.subr.mxu0 0.0
        %2374 = vmatpush1.msra.mxu0 0.0
        %2375 = vmatprep.subr.mxu0 0.0
        %2376 = vmatpush1.msra.mxu0 0.0
        %2377 = vmatprep.subr.mxu0 0.0
        %2378 = vmatpush1.msra.mxu0 0.0
        %2379 = vmatprep.subr.mxu0 0.0
        %2380 = vmatpush1.msra.mxu0 0.0
        %2381 = vmatprep.subr.mxu0 0.0
        %2382 = vmatpush1.msra.mxu0 0.0
        %2383 = vmatprep.subr.mxu0 0.0
        %2384 = vmatpush1.msra.mxu0 0.0
        %2385 = vmatprep.subr.mxu0 0.0
        %2386 = vmatpush1.msra.mxu0 0.0
        %2387 = vmatprep.subr.mxu0 0.0
        %2388 = vmatpush1.msra.mxu0 0.0
        %2389 = vmatprep.subr.mxu0 0.0
        %2390 = vmatpush1.msra.mxu0 0.0
        %2391 = vmatprep.subr.mxu0 0.0
        %2392 = vmatpush1.msra.mxu0 0.0
        %2393 = vmatprep.subr.mxu0 0.0
        %2394 = vmatpush1.msra.mxu0 0.0
        %2395 = vmatprep.subr.mxu0 0.0
        %2396 = vmatpush1.msra.mxu0 0.0
        %2397 = vmatprep.subr.mxu0 0.0
        %2398 = vmatpush1.msra.mxu0 0.0
        %2399 = vmatprep.subr.mxu0 0.0
        %2400 = vmatpush1.msra.mxu0 0.0
        %2401 = vmatprep.subr.mxu0 0.0
        %2402 = vmatpush1.msra.mxu0 0.0
        %2403 = vmatprep.subr.mxu0 0.0
        %2404 = vmatpush1.msra.mxu0 0.0
        %2405 = vmatprep.subr.mxu0 0.0
        %2406 = vmatpush1.msra.mxu0 0.0
        %2407 = vmatprep.subr.mxu0 0.0
        %2408 = vmatpush1.msra.mxu0 0.0
        %2409 = vmatprep.subr.mxu0 0.0
        %2410 = vmatpush1.msra.mxu0 0.0
        %2411 = vmatprep.subr.mxu0 0.0
        %2412 = vmatpush1.msra.mxu0 0.0
        %2413 = vmatprep.subr.mxu0 0.0
        %2414 = vmatpush1.msra.mxu0 0.0
        %2415 = vmatprep.subr.mxu0 0.0
        %2416 = vmatpush1.msra.mxu0 0.0
        %2417 = vmatprep.subr.mxu0 0.0
        %2418 = vmatpush1.msra.mxu0 0.0
        %2419 = vmatprep.subr.mxu0 0.0
        %2420 = vmatpush1.msra.mxu0 0.0
        %2421 = vmatprep.subr.mxu0 0.0
        %2422 = vmatpush1.msra.mxu0 0.0
        %2423 = vmatprep.subr.mxu0 0.0
        %2424 = vmatpush1.msra.mxu0 0.0
        %2425 = vmatprep.subr.mxu0 0.0
        %2426 = vmatpush1.msra.mxu0 0.0
        %2427 = vmatprep.mubr.f32.mxu0 0.0
        %2428 = vmatmul.mubr.f32.gmra.mrb[0].mxu0 %v2361
        %v2429 = vpop.f32.mrb[0].mxu0
        %v2430 = vadd.f32 %v2358, %v2429
        %v2431 = vpop.f32.mrb[0].mxu0
        %2432 = vdwg.mxu0
        %v2433 = vmax.f32 %v2430, 0.0
        %2434 = vst.msk [vmem:[%s671] sm:$0xff] %vm677, %v2433
        %s2435 = sand.u32 %s429, 1
        %s2436 = scalar_lea.sflag [#allocation4], %s2435
        %s2437 = sand.u32 %s429, 1
        %s2438 = smul.addr %s2437, 8
        %s2439 = scalar_lea.vmem [#allocation14], %s2438
        // Predicated region
        $region121: #{tpu_custom_call.1} parent=91 // pred_check
          %p2440 = pneg %p439
        $region122: #{tpu_custom_call.1} parent=91 // pred_check_branch
          %2442 = sbr.rel (%p2440) target = $region124
        $region123: #{tpu_custom_call.1} parent=91 // pred_region
          %s2444 = ssub.s32 128, 128
          %2445 = vsyncadd %s2436, %s2444
          %s2446 = smul.addr %s38, 128
          %s2447 = scalar_lea.hbm %s18, %s2446
          %s2449 = sshll.u32 %s2439, 4
          %s2450 = int_to_ptr.vmem [resolvable:$true] %s2449
          %2452 = dma.vmem_to_hbm [thread:$0]  %s2450, 128, %s2447, %s2436
        $region124: #{tpu_custom_call.1} parent=91 // pred_fallthru
          _
      $region92: #{tpu_custom_call.1} parent=5 // pred_fallthru
        _
      %p2453 = scmp.le.s32.totalorder 2, %s33
      // Predicated region
      $region125: #{tpu_custom_call.1} parent=5 // pred_check
        %p2454 = pneg %p2453
      $region126: #{tpu_custom_call.1} parent=5 // pred_check_branch
        %2456 = sbr.rel (%p2454) target = $region128
      $region127: #{tpu_custom_call.1} parent=5 // pred_region
        %s2457 = ssub.s32 %s33, 2
        // Predicated region
        $region129: #{tpu_custom_call.1} parent=127 // pred_check
          %p2458 = pneg %p445
        $region130: #{tpu_custom_call.1} parent=127 // pred_check_branch
          %2460 = sbr.rel (%p2458) target = $region132
        $region131: #{tpu_custom_call.1} parent=127 // pred_region
          %s2461 = sand.u32 %s430, 1
          %s2462 = scalar_lea.sflag [#allocation4], %s2461
          %s2463 = sand.u32 %s430, 1
          %s2464 = smul.addr %s2463, 8
          %s2465 = scalar_lea.vmem [#allocation14], %s2464
          %2466 = dma.done %s2462, 128
        $region132: #{tpu_custom_call.1} parent=127 // pred_fallthru
          _
      $region128: #{tpu_custom_call.1} parent=5 // pred_fallthru
        _
    $region6: #{tpu_custom_call.1} parent=1 // loop_footer
      %s37 = sadd.s32 1, %s33
    $region7: #{tpu_custom_call.1} parent=1 // loop_footer_branch
      %32 = sbr.rel target = $region3
    $region8: #{tpu_custom_call.1} parent=1 // loop_exit
      _
    %2467 = vsyncpa [#allocation3], 1
    %s2468 = scalar_lea.sflag [#allocation3], 1
    %2469 = vsyncpa %s2468, 1
    %2470 = vsyncpa [#allocation6], 1
    %2471 = vsyncpa [#allocation9], 1
    %2472 = vsyncpa [#allocation12], 1
    %2473 = vsyncpa [#allocation4], 1
    %s2474 = scalar_lea.sflag [#allocation4], 1
    %2475 = vsyncpa %s2474, 1

</llo_original>
